<compile_context>
chip_gen: v7x
topology: tpu7x:2x2x1
jax: 0.10.0
libtpu: 0.0.40
codegen_flags: <defaults>
</compile_context>

<pallas_src>
import math
from dataclasses import dataclass

import jax
import jax.numpy as jnp
from jax import lax
from jax.experimental import pallas as pl
from jax.experimental.pallas import tpu as pltpu

_EPS = 1e-6          # RMSNorm eps
_LANE = 128          # TPU vreg lane width
_NEG_INF = -1e30
_LV_OFF = _LANE // 2  # lane offset of logvar inside the merged mu|logvar tile


@dataclass(frozen=True)
class BSPConfig:
    batch: int = 2
    bsp_seq: int = 4          # bsp_transformer_seq_length  (== x.shape[1])
    bse2p_seq: int = 8        # bse2p/bsp2e_transformer_seq_length (== x.shape[2])
    bse_latent: int = 16      # latent_dim of the BSE stage (== x.shape[3])
    bsp_latent: int = 16      # bsp_latent_dim (transformer dim)
    chunk: int = 32           # bse2p_chunk_size == bsp2e_chunk_size
    n_heads: int = 2
    n_layers: int = 2
    ffn_hidden: int = 64
    rope_theta: float = 10000.0
    start_pos: int = 0


def _derived(cfg):
    d = cfg.bsp_latent
    hid = 2 * d                                   # pre_vae_hidden_dim
    nch = (cfg.bse2p_seq * d) // cfg.chunk        # num_chunks
    return dict(
        D=d, HID=hid, NCH=nch,
        DIN=nch * cfg.chunk,                      # flattened chunked input width
        ENC=nch * hid,                            # encoder1 / decoder1 output width
        DEC=nch * cfg.chunk,                      # bsp2e flat output width
        ST=cfg.bsp_seq - 1,
        HD=d // cfg.n_heads,
        N=cfg.batch * cfg.bsp_seq,
    )


def _cns_layout(cfg, dv):
    """Row layout of the packed constants slab (rows, 128)."""
    NL, N, D = cfg.n_layers, dv["N"], dv["D"]
    EPN = max(N, D)
    r8 = lambda v: ((v + 7) // 8) * 8
    AG = 0                       # attention-norm gains   [NL rows, lanes 0:D)
    FG = AG + NL                 # ffn-norm gains
    FN = FG + NL                 # final-norm gain        [1 row]
    CS = r8(FN + 1)              # cos | sin | mask rows  [N rows]
    PR = r8(CS + N)              # rotate-half permutation [D rows, lanes 0:D)
    EP = r8(PR + D)              # identity-pad [I|0]     [EPN rows]
    WD = r8(EP + EPN)            # decoder1 weight        [D rows]
    ROWS = r8(WD + D)
    return dict(AG=AG, FG=FG, FN=FN, CS=CS, PR=PR, EP=EP, WD=WD,
                ROWS=ROWS, EPN=EPN)


# ---------------------------------------------------------------------------
# Fused kernel
# ---------------------------------------------------------------------------
def _make_bsp_kernel(cfg, dv, lay):
    D, H, HD, NL = dv["D"], cfg.n_heads, dv["HD"], cfg.n_layers
    HID, NCH, N = dv["HID"], dv["NCH"], dv["N"]
    FFH = cfg.ffn_hidden
    att_scale = 1.0 / math.sqrt(HD)
    AG, FG, FN = lay["AG"], lay["FG"], lay["FN"]
    CS, PR, EP, WD = lay["CS"], lay["PR"], lay["EP"], lay["WD"]

    def _silu(y):
        # sigmoid via EUP exp + approx EUP reciprocal (keeps the divide off VALU)
        return y * pl.reciprocal(1.0 + jnp.exp(-y), approx=True)

    def _rms(y, g, n=None):
        # RMSNorm; `n` = number of real (non-padded) features.  Padded lanes of
        # `y` must already be zero so the lane-sum only counts real features.
        denom = float(n if n is not None else y.shape[-1])
        ms = jnp.sum(y * y, axis=-1, keepdims=True) * (1.0 / denom)
        return y * lax.rsqrt(ms + _EPS) * g

    def kernel(x_ref, eps_ref, bigw_ref, rows_ref, cns_ref,
               wqkvo_ref, w13f_ref, w2f_ref, out_ref):
        f32 = jnp.float32

        # ---- packed bias/gain rows ----------------------------------------
        b1, g1 = rows_ref[0:1, :], rows_ref[1:2, :]
        b2, g2 = rows_ref[2:3, :], rows_ref[3:4, :]
        bml = rows_ref[4:5, :]
        bd1, gd1, bd2 = rows_ref[5:6, :], rows_ref[6:7, :], rows_ref[7:8, :]

        # ---- packed constants ----------------------------------------------
        cosD = cns_ref[CS:CS + N, 0:D]
        sinD = cns_ref[CS:CS + N, D:2 * D]
        maskb = cns_ref[CS:CS + N, 2 * D:2 * D + N]      # block-diag causal bias
        protD = cns_ref[PR:PR + D, 0:D]                  # kron(I_H, rotate_half)
        eyeN = cns_ref[EP:EP + N, :]                     # [I_N | 0]  (N, 128)
        eyeD = cns_ref[EP:EP + D, :]                     # [I_D | 0]  (D, 128)
        fng = cns_ref[FN:FN + 1, 0:D]
        wd1 = cns_ref[WD:WD + D, :]

        # ------------------------------ BSE2P -------------------------------
        x = x_ref[...]                                               # (N, 128)
        h1 = jnp.dot(x, bigw_ref[0], preferred_element_type=f32) + b1
        h1 = _silu(h1)
        # per-chunk RMSNorm: block-ones matmul broadcasts each chunk's sum(sq)
        ss = jnp.dot(h1 * h1, bigw_ref[1], preferred_element_type=f32)
        h1 = h1 * lax.rsqrt(ss * (1.0 / HID) + _EPS) * g1
        h2 = _silu(jnp.dot(h1, bigw_ref[2], preferred_element_type=f32) + b2)
        h2 = _rms(h2, g2, n=HID)                                     # padded lanes stay 0
        # merged mu|logvar matmul: mu -> lanes [0,D), logvar -> [64, 64+D)
        ml = jnp.dot(h2, bigw_ref[3], preferred_element_type=f32) + bml
        out_ref[0] = ml                                              # packed mu|logvar
        # reparameterize (lane slice instead of roll; lane-pad z via [I|0] matmul)
        zd = ml[:, 0:D] + eps_ref[...] * jnp.exp(0.5 * ml[:, _LV_OFF:_LV_OFF + D])
        out_ref[1] = jnp.dot(zd, eyeD, preferred_element_type=f32)   # lane-dense z

        # --------------- Transformer (layers unrolled, batch merged) ---------
        # All N = B*SP rows processed at once; block-diag causal mask keeps
        # batches independent and causality makes the extra last-position rows
        # irrelevant to the rows we keep (sliced in the wrapper).
        h = zd                                                       # (N, D)
        for l in range(NL):
            ag = cns_ref[AG + l:AG + l + 1, 0:D]
            fg = cns_ref[FG + l:FG + l + 1, 0:D]
            wqkvo_l = wqkvo_ref[l]                                   # (D, 4D)
            # -- attention --
            hn = _rms(h, ag)
            qkv = jnp.dot(hn, wqkvo_l[:, 0:3 * D], preferred_element_type=f32)
            q = qkv[:, 0:D]
            k = qkv[:, D:2 * D]
            v = qkv[:, 2 * D:3 * D]
            # full-width RoPE (rotate-half per head via block-diag permutation)
            q = q * cosD + jnp.dot(q, protD, preferred_element_type=f32) * sinD
            k = k * cosD + jnp.dot(k, protD, preferred_element_type=f32) * sinD
            att = None
            for hh in range(H):
                sl = slice(hh * HD, (hh + 1) * HD)
                s = lax.dot_general(q[:, sl], k[:, sl], (((1,), (1,)), ((), ())),
                                    preferred_element_type=f32) * att_scale
                s = s + maskb
                s = s - jnp.max(s, axis=-1, keepdims=True)
                e = jnp.exp(s)
                p = e * pl.reciprocal(jnp.sum(e, axis=-1, keepdims=True),
                                      approx=False)
                # lane-dense store of the attention weights (off critical path)
                out_ref[4 + l * H + hh] = jnp.dot(p, eyeN,
                                                  preferred_element_type=f32)
                oh = jnp.dot(p, v[:, sl], preferred_element_type=f32)
                # fold "concat heads -> Wo" into per-head partial matmuls
                part = jnp.dot(oh, wqkvo_l[sl, 3 * D:4 * D],
                               preferred_element_type=f32)
                att = part if att is None else att + part
            h = h + att
            # -- SwiGLU FFN (W1|W3 fused, lane-dense (D,128) weight) --
            hn = _rms(h, fg)
            ug = jnp.dot(hn, w13f_ref[l], preferred_element_type=f32)
            u = _silu(ug[:, 0:FFH])
            g = ug[:, FFH:2 * FFH]
            h = h + jnp.dot(u * g, w2f_ref[l], preferred_element_type=f32)
        h = _rms(h, fng)                                             # final norm
        out_ref[2] = jnp.dot(h, eyeD, preferred_element_type=f32)    # lane-dense post

        # ------------------------------ BSP2E --------------------------------
        d1 = _silu(jnp.dot(h, wd1, preferred_element_type=f32) + bd1)
        d1 = _rms(d1, gd1, n=HID * NCH)
        out_ref[3] = jnp.dot(d1, bigw_ref[4], preferred_element_type=f32) + bd2

    return kernel


# ---------------------------------------------------------------------------
# Parameter init (mirrors nn.Linear / RMSNorm init) and operand packing
# ---------------------------------------------------------------------------
def _uniform(key, shape, fan_in):
    bound = 1.0 / math.sqrt(fan_in)
    return jax.random.uniform(key, shape, jnp.float32, -bound, bound)


def init_bsp_params(key, cfg):
    dv = _derived(cfg)
    D, HID, NCH, FFH, NL = dv["D"], dv["HID"], dv["NCH"], cfg.ffn_hidden, cfg.n_layers
    CH = cfg.chunk
    ks = iter(jax.random.split(key, 64))
    p = {}
    # BSE2P
    p["enc1_w"] = _uniform(next(ks), (CH, HID), CH)
    p["enc1_b"] = _uniform(next(ks), (HID,), CH)
    p["enc1_g"] = jnp.ones((HID,), jnp.float32)
    p["enc2_w"] = _uniform(next(ks), (NCH * HID, HID), NCH * HID)
    p["enc2_b"] = _uniform(next(ks), (HID,), NCH * HID)
    p["enc2_g"] = jnp.ones((HID,), jnp.float32)
    p["mu_w"] = _uniform(next(ks), (HID, D), HID)
    p["mu_b"] = _uniform(next(ks), (D,), HID)
    p["lv_w"] = _uniform(next(ks), (HID, D), HID)
    p["lv_b"] = _uniform(next(ks), (D,), HID)

    # Transformer (LLaMA-style, bias-free projections)
    def stack(shape, fan_in):
        return jnp.stack([_uniform(next(ks), shape, fan_in) for _ in range(NL)])

    p["attn_g"] = jnp.ones((NL, D), jnp.float32)
    p["wq"] = stack((D, D), D)
    p["wk"] = stack((D, D), D)
    p["wv"] = stack((D, D), D)
    p["wo"] = stack((D, D), D)
    p["ffn_g"] = jnp.ones((NL, D), jnp.float32)
    p["w1f"] = stack((D, FFH), D)
    p["w3f"] = stack((D, FFH), D)
    p["w2f"] = stack((FFH, D), FFH)
    p["final_g"] = jnp.ones((D,), jnp.float32)
    # BSP2E
    p["dec1_w"] = _uniform(next(ks), (D, HID * NCH), D)
    p["dec1_b"] = _uniform(next(ks), (HID * NCH,), D)
    p["dec1_g"] = jnp.ones((HID * NCH,), jnp.float32)
    p["dec2_w"] = _uniform(next(ks), (HID, CH), HID)
    p["dec2_b"] = _uniform(next(ks), (CH,), HID)
    return p


def pack_bsp_operands(p, cfg):
    """Pre-pack / pre-pad everything ONCE into a handful of lane-dense slabs."""
    dv = _derived(cfg)
    lay = _cns_layout(cfg, dv)
    D, HID, NCH, HD = dv["D"], dv["HID"], dv["NCH"], dv["HD"]
    N, SP, H, NL = dv["N"], cfg.bsp_seq, cfg.n_heads, cfg.n_layers
    ENC, DEC = dv["ENC"], dv["DEC"]
    f32 = jnp.float32
    eye_nch = jnp.eye(NCH, dtype=f32)

    # --- big (128,128) square weights, stacked -------------------------------
    w1bd = jnp.kron(eye_nch, p["enc1_w"])                              # enc1 block-diag
    blk = jnp.kron(eye_nch, jnp.ones((HID, HID), f32))                 # per-chunk sum-of-sq
    w2 = jnp.zeros((ENC, _LANE), f32).at[:, :HID].set(p["enc2_w"])     # enc2 (lane-padded)
    wml = jnp.zeros((_LANE, _LANE), f32)
    wml = wml.at[:HID, :D].set(p["mu_w"]).at[:HID, _LV_OFF:_LV_OFF + D].set(p["lv_w"])
    wd2 = jnp.kron(eye_nch, p["dec2_w"])                               # dec2 block-diag
    bigw = jnp.stack([w1bd, blk, w2, wml, wd2])                        # (5,128,128)

    # --- bias / gain rows -----------------------------------------------------
    rows = jnp.zeros((8, _LANE), f32)
    rows = rows.at[0, :ENC].set(jnp.tile(p["enc1_b"], NCH))
    rows = rows.at[1, :ENC].set(jnp.tile(p["enc1_g"], NCH))
    rows = rows.at[2, :HID].set(p["enc2_b"])
    rows = rows.at[3, :HID].set(p["enc2_g"])
    rows = rows.at[4, :D].set(p["mu_b"]).at[4, _LV_OFF:_LV_OFF + D].set(p["lv_b"])
    rows = rows.at[5, :HID * NCH].set(p["dec1_b"])
    rows = rows.at[6, :HID * NCH].set(p["dec1_g"])
    rows = rows.at[7, :DEC].set(jnp.tile(p["dec2_b"], NCH))

    # --- constants slab: norm gains, RoPE, mask, [I|0], decoder1 weight ------
    idx = jnp.arange(N)
    pos = (cfg.start_pos + (idx % SP)).astype(f32)
    inv = cfg.rope_theta ** (-jnp.arange(0, HD, 2, dtype=f32) / HD)
    ang = pos[:, None] * inv[None, :]
    cos_h = jnp.concatenate([jnp.cos(ang), jnp.cos(ang)], axis=-1)     # (N, HD)
    sin_h = jnp.concatenate([jnp.sin(ang), jnp.sin(ang)], axis=-1)
    cosD = jnp.tile(cos_h, (1, H))                                     # (N, D)
    sinD = jnp.tile(sin_h, (1, H))
    half = HD // 2
    prot = jnp.zeros((HD, HD), f32)
    prot = prot.at[jnp.arange(half) + half, jnp.arange(half)].set(-1.0)
    prot = prot.at[jnp.arange(half), jnp.arange(half) + half].set(1.0)
    protD = jnp.kron(jnp.eye(H, dtype=f32), prot)                      # (D, D)
    bi, pi = idx // SP, idx % SP
    allowed = (bi[:, None] == bi[None, :]) & (pi[None, :] <= pi[:, None])
    maskb = jnp.where(allowed, 0.0, _NEG_INF).astype(f32)              # (N, N) block-diag causal

    cns = jnp.zeros((lay["ROWS"], _LANE), f32)
    cns = cns.at[lay["AG"]:lay["AG"] + NL, :D].set(p["attn_g"])
    cns = cns.at[lay["FG"]:lay["FG"] + NL, :D].set(p["ffn_g"])
    cns = cns.at[lay["FN"], :D].set(p["final_g"])
    cns = cns.at[lay["CS"]:lay["CS"] + N, :D].set(cosD)
    cns = cns.at[lay["CS"]:lay["CS"] + N, D:2 * D].set(sinD)
    cns = cns.at[lay["CS"]:lay["CS"] + N, 2 * D:2 * D + N].set(maskb)
    cns = cns.at[lay["PR"]:lay["PR"] + D, :D].set(protD)
    epn = lay["EPN"]
    cns = cns.at[lay["EP"]:lay["EP"] + epn, :epn].set(jnp.eye(epn, dtype=f32))
    cns = cns.at[lay["WD"]:lay["WD"] + D, :HID * NCH].set(p["dec1_w"])

    # --- per-layer transformer weights, fused --------------------------------
    wqkvo = jnp.concatenate([p["wq"], p["wk"], p["wv"], p["wo"]], axis=-1)  # (NL, D, 4D)
    w13f = jnp.concatenate([p["w1f"], p["w3f"]], axis=-1)                   # (NL, D, 2*FFH)

    return dict(bigw=bigw, rows=rows, cns=cns, wqkvo=wqkvo, w13f=w13f,
                w2f=p["w2f"])


# ---------------------------------------------------------------------------
# Forward wrapper
# ---------------------------------------------------------------------------
def make_bsp_forward(cfg):
    dv = _derived(cfg)
    lay = _cns_layout(cfg, dv)
    B, SP, ST = cfg.batch, cfg.bsp_seq, dv["ST"]
    D, H, NL = dv["D"], cfg.n_heads, cfg.n_layers
    N, S2, LD = dv["N"], cfg.bse2p_seq, cfg.bse_latent

    assert dv["DIN"] == _LANE and dv["ENC"] == _LANE and dv["DEC"] == _LANE
    assert 2 * cfg.ffn_hidden == _LANE
    assert D <= _LV_OFF and dv["HID"] <= _LANE
    assert 2 * D + N <= _LANE
    assert cfg.bsp_latent % cfg.n_heads == 0 and dv["HD"] % 2 == 0
    assert cfg.bse2p_seq * cfg.bse_latent == dv["DIN"]

    kernel = _make_bsp_kernel(cfg, dv, lay)
    vmem = pl.BlockSpec(memory_space=pltpu.MemorySpace.VMEM)   # whole array, VMEM-resident
    n_out = 4 + NL * H    # 0:mu|logvar  1:z  2:post  3:dec  4+: attention weights
    call = pl.pallas_call(
        kernel,
        out_shape=jax.ShapeDtypeStruct((n_out, N, _LANE), jnp.float32),
        in_specs=[vmem] * 8,
        out_specs=vmem,
    )

    def forward(ops, x, eps):
        x2d = x.reshape(N, S2 * LD).astype(jnp.float32)
        eps2d = eps.reshape(N, D).astype(jnp.float32)
        out = call(x2d, eps2d, ops["bigw"], ops["rows"], ops["cns"],
                   ops["wqkvo"], ops["w13f"], ops["w2f"])
        mu = out[0, :, :D].reshape(B, SP, D)
        logvar = out[0, :, _LV_OFF:_LV_OFF + D].reshape(B, SP, D)
        z = out[1, :, :D].reshape(B, SP, D)
        post_bsp = out[2, :, :D].reshape(B, SP, D)[:, :ST, :]
        post_bsp2e = out[3].reshape(B, SP, S2, LD)[:, :ST]
        attw4 = out[4:].reshape(NL, H, N, _LANE)
        attW = jnp.stack(
            [attw4[:, :, b * SP:b * SP + ST, b * SP:b * SP + ST] for b in range(B)],
            axis=1)                                            # (NL, B, H, ST, ST)
        return mu, logvar, z, post_bsp, attW, post_bsp2e

    return forward


if __name__ == "__main__":
    cfg = BSPConfig()
    root = jax.random.PRNGKey(0)
    k_p, k_x, k_e = jax.random.split(root, 3)

    params = init_bsp_params(k_p, cfg)
    ops = pack_bsp_operands(params, cfg)

    x = jax.random.normal(
        k_x, (cfg.batch, cfg.bsp_seq, cfg.bse2p_seq, cfg.bse_latent), jnp.float32)
    eps = jax.random.normal(
        k_e, (cfg.batch * cfg.bsp_seq, cfg.bsp_latent), jnp.float32)

    fwd = jax.jit(make_bsp_forward(cfg))
    outs = jax.block_until_ready(fwd(ops, x, eps))
    mu, logvar, z, post_bsp, attW, post_bsp2e = outs

    assert mu.shape == (cfg.batch, cfg.bsp_seq, cfg.bsp_latent)
    assert logvar.shape == (cfg.batch, cfg.bsp_seq, cfg.bsp_latent)
    assert z.shape == (cfg.batch, cfg.bsp_seq, cfg.bsp_latent)
    assert post_bsp.shape == (cfg.batch, cfg.bsp_seq - 1, cfg.bsp_latent)
    assert attW.shape == (cfg.n_layers, cfg.batch, cfg.n_heads,
                          cfg.bsp_seq - 1, cfg.bsp_seq - 1)
    assert post_bsp2e.shape == (cfg.batch, cfg.bsp_seq - 1,
                                cfg.bse2p_seq, cfg.bse_latent)
    print("KERNEL_OK")
</pallas_src>

<mosaic_0001>
module attributes {stable_mosaic.version = 11 : i64} {
  func.func @kernel(%arg0: memref<8x128xf32, #tpu.memory_space<vmem>>, %arg1: memref<8x16xf32, #tpu.memory_space<vmem>>, %arg2: memref<5x128x128xf32, #tpu.memory_space<vmem>>, %arg3: memref<8x128xf32, #tpu.memory_space<vmem>>, %arg4: memref<64x128xf32, #tpu.memory_space<vmem>>, %arg5: memref<2x16x64xf32, #tpu.memory_space<vmem>>, %arg6: memref<2x16x128xf32, #tpu.memory_space<vmem>>, %arg7: memref<2x64x16xf32, #tpu.memory_space<vmem>>, %arg8: memref<8x8x128xf32, #tpu.memory_space<vmem>>) attributes {dimension_semantics = [], scalar_prefetch = 0 : i64, scratch_operands = 0 : i64, tpu.core_type = #tpu.core_type<tc>} {
    %c0 = arith.constant 0 : index
    %c0_0 = arith.constant 0 : index
    %0 = vector.load %arg3[%c0, %c0_0] : memref<8x128xf32, #tpu.memory_space<vmem>>, vector<1x128xf32>
    %c1 = arith.constant 1 : index
    %c0_1 = arith.constant 0 : index
    %1 = vector.load %arg3[%c1, %c0_1] : memref<8x128xf32, #tpu.memory_space<vmem>>, vector<1x128xf32>
    %c2 = arith.constant 2 : index
    %c0_2 = arith.constant 0 : index
    %2 = vector.load %arg3[%c2, %c0_2] : memref<8x128xf32, #tpu.memory_space<vmem>>, vector<1x128xf32>
    %c3 = arith.constant 3 : index
    %c0_3 = arith.constant 0 : index
    %3 = vector.load %arg3[%c3, %c0_3] : memref<8x128xf32, #tpu.memory_space<vmem>>, vector<1x128xf32>
    %c4 = arith.constant 4 : index
    %c0_4 = arith.constant 0 : index
    %4 = vector.load %arg3[%c4, %c0_4] : memref<8x128xf32, #tpu.memory_space<vmem>>, vector<1x128xf32>
    %c5 = arith.constant 5 : index
    %c0_5 = arith.constant 0 : index
    %5 = vector.load %arg3[%c5, %c0_5] : memref<8x128xf32, #tpu.memory_space<vmem>>, vector<1x128xf32>
    %c6 = arith.constant 6 : index
    %c0_6 = arith.constant 0 : index
    %6 = vector.load %arg3[%c6, %c0_6] : memref<8x128xf32, #tpu.memory_space<vmem>>, vector<1x128xf32>
    %c7 = arith.constant 7 : index
    %c0_7 = arith.constant 0 : index
    %7 = vector.load %arg3[%c7, %c0_7] : memref<8x128xf32, #tpu.memory_space<vmem>>, vector<1x128xf32>
    %c8 = arith.constant 8 : index
    %c0_8 = arith.constant 0 : index
    %8 = vector.load %arg4[%c8, %c0_8] : memref<64x128xf32, #tpu.memory_space<vmem>>, vector<8x16xf32>
    %c8_9 = arith.constant 8 : index
    %c16 = arith.constant 16 : index
    %9 = vector.load %arg4[%c8_9, %c16] : memref<64x128xf32, #tpu.memory_space<vmem>>, vector<8x16xf32>
    %c8_10 = arith.constant 8 : index
    %c32 = arith.constant 32 : index
    %10 = vector.load %arg4[%c8_10, %c32] : memref<64x128xf32, #tpu.memory_space<vmem>>, vector<8x8xf32>
    %c16_11 = arith.constant 16 : index
    %c0_12 = arith.constant 0 : index
    %11 = vector.load %arg4[%c16_11, %c0_12] : memref<64x128xf32, #tpu.memory_space<vmem>>, vector<16x16xf32>
    %c32_13 = arith.constant 32 : index
    %c0_14 = arith.constant 0 : index
    %12 = vector.load %arg4[%c32_13, %c0_14] : memref<64x128xf32, #tpu.memory_space<vmem>>, vector<8x128xf32>
    %c32_15 = arith.constant 32 : index
    %c0_16 = arith.constant 0 : index
    %13 = vector.load %arg4[%c32_15, %c0_16] : memref<64x128xf32, #tpu.memory_space<vmem>>, vector<16x128xf32>
    %c4_17 = arith.constant 4 : index
    %c0_18 = arith.constant 0 : index
    %14 = vector.load %arg4[%c4_17, %c0_18] : memref<64x128xf32, #tpu.memory_space<vmem>>, vector<1x16xf32>
    %c48 = arith.constant 48 : index
    %c0_19 = arith.constant 0 : index
    %15 = vector.load %arg4[%c48, %c0_19] : memref<64x128xf32, #tpu.memory_space<vmem>>, vector<16x128xf32>
    %c0_20 = arith.constant 0 : index
    %c0_21 = arith.constant 0 : index
    %16 = vector.load %arg0[%c0_20, %c0_21] : memref<8x128xf32, #tpu.memory_space<vmem>>, vector<8x128xf32>
    %c0_22 = arith.constant 0 : index
    %c0_23 = arith.constant 0 : index
    %c0_24 = arith.constant 0 : index
    %17 = vector.load %arg2[%c0_22, %c0_23, %c0_24] : memref<5x128x128xf32, #tpu.memory_space<vmem>>, vector<1x128x128xf32>
    %18 = vector.shape_cast %17 : vector<1x128x128xf32> to vector<128x128xf32>
    %cst = arith.constant dense<0.000000e+00> : vector<8x128xf32>
    %19 = tpu.matmul %16, %18, %cst {dimension_numbers = #tpu.dot_dimension_numbers<[1], [0], [0], [1], [0, 0, 1, 1], [], []>} : vector<8x128xf32>, vector<128x128xf32>, vector<8x128xf32> -> vector<8x128xf32>
    %20 = vector.broadcast %0 : vector<1x128xf32> to vector<8x128xf32>
    %21 = arith.addf %19, %20 : vector<8x128xf32>
    %cst_25 = arith.constant 0.000000e+00 : f32
    %22 = vector.broadcast %cst_25 : f32 to vector<8x128xf32>
    %23 = arith.subf %22, %21 : vector<8x128xf32>
    %24 = math.exp %23 : vector<8x128xf32>
    %cst_26 = arith.constant 1.000000e+00 : f32
    %25 = vector.broadcast %cst_26 : f32 to vector<8x128xf32>
    %26 = arith.addf %25, %24 : vector<8x128xf32>
    %27 = tpu.reciprocal %26 {approx = true} : vector<8x128xf32> -> vector<8x128xf32>
    %28 = arith.mulf %21, %27 : vector<8x128xf32>
    %29 = arith.mulf %28, %28 : vector<8x128xf32>
    %c1_27 = arith.constant 1 : index
    %c0_28 = arith.constant 0 : index
    %c0_29 = arith.constant 0 : index
    %30 = vector.load %arg2[%c1_27, %c0_28, %c0_29] : memref<5x128x128xf32, #tpu.memory_space<vmem>>, vector<1x128x128xf32>
    %31 = vector.shape_cast %30 : vector<1x128x128xf32> to vector<128x128xf32>
    %cst_30 = arith.constant dense<0.000000e+00> : vector<8x128xf32>
    %32 = tpu.matmul %29, %31, %cst_30 {dimension_numbers = #tpu.dot_dimension_numbers<[1], [0], [0], [1], [0, 0, 1, 1], [], []>} : vector<8x128xf32>, vector<128x128xf32>, vector<8x128xf32> -> vector<8x128xf32>
    %cst_31 = arith.constant 3.125000e-02 : f32
    %33 = vector.broadcast %cst_31 : f32 to vector<8x128xf32>
    %34 = arith.mulf %32, %33 : vector<8x128xf32>
    %cst_32 = arith.constant 9.99999997E-7 : f32
    %35 = vector.broadcast %cst_32 : f32 to vector<8x128xf32>
    %36 = arith.addf %34, %35 : vector<8x128xf32>
    %37 = math.rsqrt %36 : vector<8x128xf32>
    %38 = arith.mulf %28, %37 : vector<8x128xf32>
    %39 = vector.broadcast %1 : vector<1x128xf32> to vector<8x128xf32>
    %40 = arith.mulf %38, %39 : vector<8x128xf32>
    %c2_33 = arith.constant 2 : index
    %c0_34 = arith.constant 0 : index
    %c0_35 = arith.constant 0 : index
    %41 = vector.load %arg2[%c2_33, %c0_34, %c0_35] : memref<5x128x128xf32, #tpu.memory_space<vmem>>, vector<1x128x128xf32>
    %42 = vector.shape_cast %41 : vector<1x128x128xf32> to vector<128x128xf32>
    %cst_36 = arith.constant dense<0.000000e+00> : vector<8x128xf32>
    %43 = tpu.matmul %40, %42, %cst_36 {dimension_numbers = #tpu.dot_dimension_numbers<[1], [0], [0], [1], [0, 0, 1, 1], [], []>} : vector<8x128xf32>, vector<128x128xf32>, vector<8x128xf32> -> vector<8x128xf32>
    %44 = vector.broadcast %2 : vector<1x128xf32> to vector<8x128xf32>
    %45 = arith.addf %43, %44 : vector<8x128xf32>
    %cst_37 = arith.constant 0.000000e+00 : f32
    %46 = vector.broadcast %cst_37 : f32 to vector<8x128xf32>
    %47 = arith.subf %46, %45 : vector<8x128xf32>
    %48 = math.exp %47 : vector<8x128xf32>
    %cst_38 = arith.constant 1.000000e+00 : f32
    %49 = vector.broadcast %cst_38 : f32 to vector<8x128xf32>
    %50 = arith.addf %49, %48 : vector<8x128xf32>
    %51 = tpu.reciprocal %50 {approx = true} : vector<8x128xf32> -> vector<8x128xf32>
    %52 = arith.mulf %45, %51 : vector<8x128xf32>
    %53 = arith.mulf %52, %52 : vector<8x128xf32>
    %cst_39 = arith.constant dense<0.000000e+00> : vector<8xf32>
    %54 = vector.multi_reduction <add>, %53, %cst_39 [1] : vector<8x128xf32> to vector<8xf32>
    %55 = vector.shape_cast %54 : vector<8xf32> to vector<8x1xf32>
    %cst_40 = arith.constant 3.125000e-02 : f32
    %56 = vector.broadcast %cst_40 : f32 to vector<8x1xf32>
    %57 = arith.mulf %55, %56 : vector<8x1xf32>
    %cst_41 = arith.constant 9.99999997E-7 : f32
    %58 = vector.broadcast %cst_41 : f32 to vector<8x1xf32>
    %59 = arith.addf %57, %58 : vector<8x1xf32>
    %60 = math.rsqrt %59 : vector<8x1xf32>
    %61 = vector.broadcast %60 : vector<8x1xf32> to vector<8x128xf32>
    %62 = arith.mulf %52, %61 : vector<8x128xf32>
    %63 = vector.broadcast %3 : vector<1x128xf32> to vector<8x128xf32>
    %64 = arith.mulf %62, %63 : vector<8x128xf32>
    %c3_42 = arith.constant 3 : index
    %c0_43 = arith.constant 0 : index
    %c0_44 = arith.constant 0 : index
    %65 = vector.load %arg2[%c3_42, %c0_43, %c0_44] : memref<5x128x128xf32, #tpu.memory_space<vmem>>, vector<1x128x128xf32>
    %66 = vector.shape_cast %65 : vector<1x128x128xf32> to vector<128x128xf32>
    %cst_45 = arith.constant dense<0.000000e+00> : vector<8x128xf32>
    %67 = tpu.matmul %64, %66, %cst_45 {dimension_numbers = #tpu.dot_dimension_numbers<[1], [0], [0], [1], [0, 0, 1, 1], [], []>} : vector<8x128xf32>, vector<128x128xf32>, vector<8x128xf32> -> vector<8x128xf32>
    %68 = vector.broadcast %4 : vector<1x128xf32> to vector<8x128xf32>
    %69 = arith.addf %67, %68 : vector<8x128xf32>
    %c0_46 = arith.constant 0 : index
    %c0_47 = arith.constant 0 : index
    %c0_48 = arith.constant 0 : index
    %70 = vector.load %arg8[%c0_46, %c0_47, %c0_48] : memref<8x8x128xf32, #tpu.memory_space<vmem>>, vector<1x8x128xf32>
    %71 = vector.shape_cast %70 : vector<1x8x128xf32> to vector<8x128xf32>
    %72 = vector.shape_cast %69 : vector<8x128xf32> to vector<1x8x128xf32>
    tpu.vector_store %arg8[%c0_46, %c0_47, %c0_48], %72 {strides = array<i32>} : memref<8x8x128xf32, #tpu.memory_space<vmem>>, vector<1x8x128xf32>,
    %73 = vector.extract_strided_slice %69 {offsets = [0, 0], sizes = [8, 16], strides = [1, 1]} : vector<8x128xf32> to vector<8x16xf32>
    %c0_49 = arith.constant 0 : index
    %c0_50 = arith.constant 0 : index
    %74 = vector.load %arg1[%c0_49, %c0_50] : memref<8x16xf32, #tpu.memory_space<vmem>>, vector<8x16xf32>
    %75 = vector.extract_strided_slice %69 {offsets = [0, 64], sizes = [8, 16], strides = [1, 1]} : vector<8x128xf32> to vector<8x16xf32>
    %cst_51 = arith.constant 5.000000e-01 : f32
    %76 = vector.broadcast %cst_51 : f32 to vector<8x16xf32>
    %77 = arith.mulf %76, %75 : vector<8x16xf32>
    %78 = math.exp %77 : vector<8x16xf32>
    %79 = arith.mulf %74, %78 : vector<8x16xf32>
    %80 = arith.addf %73, %79 : vector<8x16xf32>
    %cst_52 = arith.constant dense<0.000000e+00> : vector<8x128xf32>
    %81 = tpu.matmul %80, %13, %cst_52 {dimension_numbers = #tpu.dot_dimension_numbers<[1], [0], [0], [1], [0, 0, 1, 1], [], []>} : vector<8x16xf32>, vector<16x128xf32>, vector<8x128xf32> -> vector<8x128xf32>
    %c1_53 = arith.constant 1 : index
    %c0_54 = arith.constant 0 : index
    %c0_55 = arith.constant 0 : index
    %82 = vector.load %arg8[%c1_53, %c0_54, %c0_55] : memref<8x8x128xf32, #tpu.memory_space<vmem>>, vector<1x8x128xf32>
    %83 = vector.shape_cast %82 : vector<1x8x128xf32> to vector<8x128xf32>
    %84 = vector.shape_cast %81 : vector<8x128xf32> to vector<1x8x128xf32>
    tpu.vector_store %arg8[%c1_53, %c0_54, %c0_55], %84 {strides = array<i32>} : memref<8x8x128xf32, #tpu.memory_space<vmem>>, vector<1x8x128xf32>,
    %c0_56 = arith.constant 0 : index
    %c0_57 = arith.constant 0 : index
    %85 = vector.load %arg4[%c0_56, %c0_57] : memref<64x128xf32, #tpu.memory_space<vmem>>, vector<1x16xf32>
    %c2_58 = arith.constant 2 : index
    %c0_59 = arith.constant 0 : index
    %86 = vector.load %arg4[%c2_58, %c0_59] : memref<64x128xf32, #tpu.memory_space<vmem>>, vector<1x16xf32>
    %c0_60 = arith.constant 0 : index
    %c0_61 = arith.constant 0 : index
    %c0_62 = arith.constant 0 : index
    %87 = vector.load %arg5[%c0_60, %c0_61, %c0_62] : memref<2x16x64xf32, #tpu.memory_space<vmem>>, vector<1x16x64xf32>
    %88 = vector.shape_cast %87 : vector<1x16x64xf32> to vector<16x64xf32>
    %89 = arith.mulf %80, %80 : vector<8x16xf32>
    %cst_63 = arith.constant dense<0.000000e+00> : vector<8xf32>
    %90 = vector.multi_reduction <add>, %89, %cst_63 [1] : vector<8x16xf32> to vector<8xf32>
    %91 = vector.shape_cast %90 : vector<8xf32> to vector<8x1xf32>
    %cst_64 = arith.constant 6.250000e-02 : f32
    %92 = vector.broadcast %cst_64 : f32 to vector<8x1xf32>
    %93 = arith.mulf %91, %92 : vector<8x1xf32>
    %cst_65 = arith.constant 9.99999997E-7 : f32
    %94 = vector.broadcast %cst_65 : f32 to vector<8x1xf32>
    %95 = arith.addf %93, %94 : vector<8x1xf32>
    %96 = math.rsqrt %95 : vector<8x1xf32>
    %97 = vector.broadcast %96 : vector<8x1xf32> to vector<8x16xf32>
    %98 = arith.mulf %80, %97 : vector<8x16xf32>
    %99 = vector.broadcast %85 : vector<1x16xf32> to vector<8x16xf32>
    %100 = arith.mulf %98, %99 : vector<8x16xf32>
    %101 = vector.extract_strided_slice %88 {offsets = [0, 0], sizes = [16, 48], strides = [1, 1]} : vector<16x64xf32> to vector<16x48xf32>
    %cst_66 = arith.constant dense<0.000000e+00> : vector<8x48xf32>
    %102 = tpu.matmul %100, %101, %cst_66 {dimension_numbers = #tpu.dot_dimension_numbers<[1], [0], [0], [1], [0, 0, 1, 1], [], []>} : vector<8x16xf32>, vector<16x48xf32>, vector<8x48xf32> -> vector<8x48xf32>
    %103 = vector.extract_strided_slice %102 {offsets = [0, 0], sizes = [8, 16], strides = [1, 1]} : vector<8x48xf32> to vector<8x16xf32>
    %104 = vector.extract_strided_slice %102 {offsets = [0, 16], sizes = [8, 16], strides = [1, 1]} : vector<8x48xf32> to vector<8x16xf32>
    %105 = vector.extract_strided_slice %102 {offsets = [0, 32], sizes = [8, 16], strides = [1, 1]} : vector<8x48xf32> to vector<8x16xf32>
    %106 = arith.mulf %103, %8 : vector<8x16xf32>
    %cst_67 = arith.constant dense<0.000000e+00> : vector<8x16xf32>
    %107 = tpu.matmul %103, %11, %cst_67 {dimension_numbers = #tpu.dot_dimension_numbers<[1], [0], [0], [1], [0, 0, 1, 1], [], []>} : vector<8x16xf32>, vector<16x16xf32>, vector<8x16xf32> -> vector<8x16xf32>
    %108 = arith.mulf %107, %9 : vector<8x16xf32>
    %109 = arith.addf %106, %108 : vector<8x16xf32>
    %110 = arith.mulf %104, %8 : vector<8x16xf32>
    %cst_68 = arith.constant dense<0.000000e+00> : vector<8x16xf32>
    %111 = tpu.matmul %104, %11, %cst_68 {dimension_numbers = #tpu.dot_dimension_numbers<[1], [0], [0], [1], [0, 0, 1, 1], [], []>} : vector<8x16xf32>, vector<16x16xf32>, vector<8x16xf32> -> vector<8x16xf32>
    %112 = arith.mulf %111, %9 : vector<8x16xf32>
    %113 = arith.addf %110, %112 : vector<8x16xf32>
    %114 = vector.extract_strided_slice %109 {offsets = [0, 0], sizes = [8, 8], strides = [1, 1]} : vector<8x16xf32> to vector<8x8xf32>
    %115 = vector.extract_strided_slice %113 {offsets = [0, 0], sizes = [8, 8], strides = [1, 1]} : vector<8x16xf32> to vector<8x8xf32>
    %cst_69 = arith.constant dense<0.000000e+00> : vector<8x8xf32>
    %116 = tpu.matmul %114, %115, %cst_69 {dimension_numbers = #tpu.dot_dimension_numbers<[1], [1], [0], [0], [0, 0, 1, 0], [], []>} : vector<8x8xf32>, vector<8x8xf32>, vector<8x8xf32> -> vector<8x8xf32>
    %cst_70 = arith.constant 0.353553385 : f32
    %117 = vector.broadcast %cst_70 : f32 to vector<8x8xf32>
    %118 = arith.mulf %116, %117 : vector<8x8xf32>
    %119 = arith.addf %118, %10 : vector<8x8xf32>
    %cst_71 = arith.constant dense<0xFF800000> : vector<8xf32>
    %120 = vector.multi_reduction <maximumf>, %119, %cst_71 [1] : vector<8x8xf32> to vector<8xf32>
    %121 = vector.shape_cast %120 : vector<8xf32> to vector<8x1xf32>
    %122 = vector.broadcast %121 : vector<8x1xf32> to vector<8x8xf32>
    %123 = arith.subf %119, %122 : vector<8x8xf32>
    %124 = math.exp %123 : vector<8x8xf32>
    %cst_72 = arith.constant dense<0.000000e+00> : vector<8xf32>
    %125 = vector.multi_reduction <add>, %124, %cst_72 [1] : vector<8x8xf32> to vector<8xf32>
    %126 = vector.shape_cast %125 : vector<8xf32> to vector<8x1xf32>
    %127 = tpu.reciprocal %126 : vector<8x1xf32> -> vector<8x1xf32>
    %128 = vector.broadcast %127 : vector<8x1xf32> to vector<8x8xf32>
    %129 = arith.mulf %124, %128 : vector<8x8xf32>
    %cst_73 = arith.constant dense<0.000000e+00> : vector<8x128xf32>
    %130 = tpu.matmul %129, %12, %cst_73 {dimension_numbers = #tpu.dot_dimension_numbers<[1], [0], [0], [1], [0, 0, 1, 1], [], []>} : vector<8x8xf32>, vector<8x128xf32>, vector<8x128xf32> -> vector<8x128xf32>
    %c4_74 = arith.constant 4 : index
    %c0_75 = arith.constant 0 : index
    %c0_76 = arith.constant 0 : index
    %131 = vector.load %arg8[%c4_74, %c0_75, %c0_76] : memref<8x8x128xf32, #tpu.memory_space<vmem>>, vector<1x8x128xf32>
    %132 = vector.shape_cast %131 : vector<1x8x128xf32> to vector<8x128xf32>
    %133 = vector.shape_cast %130 : vector<8x128xf32> to vector<1x8x128xf32>
    tpu.vector_store %arg8[%c4_74, %c0_75, %c0_76], %133 {strides = array<i32>} : memref<8x8x128xf32, #tpu.memory_space<vmem>>, vector<1x8x128xf32>,
    %134 = vector.extract_strided_slice %105 {offsets = [0, 0], sizes = [8, 8], strides = [1, 1]} : vector<8x16xf32> to vector<8x8xf32>
    %cst_77 = arith.constant dense<0.000000e+00> : vector<8x8xf32>
    %135 = tpu.matmul %129, %134, %cst_77 {dimension_numbers = #tpu.dot_dimension_numbers<[1], [0], [0], [1], [0, 0, 1, 1], [], []>} : vector<8x8xf32>, vector<8x8xf32>, vector<8x8xf32> -> vector<8x8xf32>
    %136 = vector.extract_strided_slice %88 {offsets = [0, 48], sizes = [8, 16], strides = [1, 1]} : vector<16x64xf32> to vector<8x16xf32>
    %cst_78 = arith.constant dense<0.000000e+00> : vector<8x16xf32>
    %137 = tpu.matmul %135, %136, %cst_78 {dimension_numbers = #tpu.dot_dimension_numbers<[1], [0], [0], [1], [0, 0, 1, 1], [], []>} : vector<8x8xf32>, vector<8x16xf32>, vector<8x16xf32> -> vector<8x16xf32>
    %138 = vector.extract_strided_slice %109 {offsets = [0, 8], sizes = [8, 8], strides = [1, 1]} : vector<8x16xf32> to vector<8x8xf32>
    %139 = vector.extract_strided_slice %113 {offsets = [0, 8], sizes = [8, 8], strides = [1, 1]} : vector<8x16xf32> to vector<8x8xf32>
    %cst_79 = arith.constant dense<0.000000e+00> : vector<8x8xf32>
    %140 = tpu.matmul %138, %139, %cst_79 {dimension_numbers = #tpu.dot_dimension_numbers<[1], [1], [0], [0], [0, 0, 1, 0], [], []>} : vector<8x8xf32>, vector<8x8xf32>, vector<8x8xf32> -> vector<8x8xf32>
    %cst_80 = arith.constant 0.353553385 : f32
    %141 = vector.broadcast %cst_80 : f32 to vector<8x8xf32>
    %142 = arith.mulf %140, %141 : vector<8x8xf32>
    %143 = arith.addf %142, %10 : vector<8x8xf32>
    %cst_81 = arith.constant dense<0xFF800000> : vector<8xf32>
    %144 = vector.multi_reduction <maximumf>, %143, %cst_81 [1] : vector<8x8xf32> to vector<8xf32>
    %145 = vector.shape_cast %144 : vector<8xf32> to vector<8x1xf32>
    %146 = vector.broadcast %145 : vector<8x1xf32> to vector<8x8xf32>
    %147 = arith.subf %143, %146 : vector<8x8xf32>
    %148 = math.exp %147 : vector<8x8xf32>
    %cst_82 = arith.constant dense<0.000000e+00> : vector<8xf32>
    %149 = vector.multi_reduction <add>, %148, %cst_82 [1] : vector<8x8xf32> to vector<8xf32>
    %150 = vector.shape_cast %149 : vector<8xf32> to vector<8x1xf32>
    %151 = tpu.reciprocal %150 : vector<8x1xf32> -> vector<8x1xf32>
    %152 = vector.broadcast %151 : vector<8x1xf32> to vector<8x8xf32>
    %153 = arith.mulf %148, %152 : vector<8x8xf32>
    %cst_83 = arith.constant dense<0.000000e+00> : vector<8x128xf32>
    %154 = tpu.matmul %153, %12, %cst_83 {dimension_numbers = #tpu.dot_dimension_numbers<[1], [0], [0], [1], [0, 0, 1, 1], [], []>} : vector<8x8xf32>, vector<8x128xf32>, vector<8x128xf32> -> vector<8x128xf32>
    %c5_84 = arith.constant 5 : index
    %c0_85 = arith.constant 0 : index
    %c0_86 = arith.constant 0 : index
    %155 = vector.load %arg8[%c5_84, %c0_85, %c0_86] : memref<8x8x128xf32, #tpu.memory_space<vmem>>, vector<1x8x128xf32>
    %156 = vector.shape_cast %155 : vector<1x8x128xf32> to vector<8x128xf32>
    %157 = vector.shape_cast %154 : vector<8x128xf32> to vector<1x8x128xf32>
    tpu.vector_store %arg8[%c5_84, %c0_85, %c0_86], %157 {strides = array<i32>} : memref<8x8x128xf32, #tpu.memory_space<vmem>>, vector<1x8x128xf32>,
    %158 = vector.extract_strided_slice %105 {offsets = [0, 8], sizes = [8, 8], strides = [1, 1]} : vector<8x16xf32> to vector<8x8xf32>
    %cst_87 = arith.constant dense<0.000000e+00> : vector<8x8xf32>
    %159 = tpu.matmul %153, %158, %cst_87 {dimension_numbers = #tpu.dot_dimension_numbers<[1], [0], [0], [1], [0, 0, 1, 1], [], []>} : vector<8x8xf32>, vector<8x8xf32>, vector<8x8xf32> -> vector<8x8xf32>
    %160 = vector.extract_strided_slice %88 {offsets = [8, 48], sizes = [8, 16], strides = [1, 1]} : vector<16x64xf32> to vector<8x16xf32>
    %cst_88 = arith.constant dense<0.000000e+00> : vector<8x16xf32>
    %161 = tpu.matmul %159, %160, %cst_88 {dimension_numbers = #tpu.dot_dimension_numbers<[1], [0], [0], [1], [0, 0, 1, 1], [], []>} : vector<8x8xf32>, vector<8x16xf32>, vector<8x16xf32> -> vector<8x16xf32>
    %162 = arith.addf %137, %161 : vector<8x16xf32>
    %163 = arith.addf %80, %162 : vector<8x16xf32>
    %164 = arith.mulf %163, %163 : vector<8x16xf32>
    %cst_89 = arith.constant dense<0.000000e+00> : vector<8xf32>
    %165 = vector.multi_reduction <add>, %164, %cst_89 [1] : vector<8x16xf32> to vector<8xf32>
    %166 = vector.shape_cast %165 : vector<8xf32> to vector<8x1xf32>
    %cst_90 = arith.constant 6.250000e-02 : f32
    %167 = vector.broadcast %cst_90 : f32 to vector<8x1xf32>
    %168 = arith.mulf %166, %167 : vector<8x1xf32>
    %cst_91 = arith.constant 9.99999997E-7 : f32
    %169 = vector.broadcast %cst_91 : f32 to vector<8x1xf32>
    %170 = arith.addf %168, %169 : vector<8x1xf32>
    %171 = math.rsqrt %170 : vector<8x1xf32>
    %172 = vector.broadcast %171 : vector<8x1xf32> to vector<8x16xf32>
    %173 = arith.mulf %163, %172 : vector<8x16xf32>
    %174 = vector.broadcast %86 : vector<1x16xf32> to vector<8x16xf32>
    %175 = arith.mulf %173, %174 : vector<8x16xf32>
    %c0_92 = arith.constant 0 : index
    %c0_93 = arith.constant 0 : index
    %c0_94 = arith.constant 0 : index
    %176 = vector.load %arg6[%c0_92, %c0_93, %c0_94] : memref<2x16x128xf32, #tpu.memory_space<vmem>>, vector<1x16x128xf32>
    %177 = vector.shape_cast %176 : vector<1x16x128xf32> to vector<16x128xf32>
    %cst_95 = arith.constant dense<0.000000e+00> : vector<8x128xf32>
    %178 = tpu.matmul %175, %177, %cst_95 {dimension_numbers = #tpu.dot_dimension_numbers<[1], [0], [0], [1], [0, 0, 1, 1], [], []>} : vector<8x16xf32>, vector<16x128xf32>, vector<8x128xf32> -> vector<8x128xf32>
    %179 = vector.extract_strided_slice %178 {offsets = [0, 0], sizes = [8, 64], strides = [1, 1]} : vector<8x128xf32> to vector<8x64xf32>
    %cst_96 = arith.constant 0.000000e+00 : f32
    %180 = vector.broadcast %cst_96 : f32 to vector<8x64xf32>
    %181 = arith.subf %180, %179 : vector<8x64xf32>
    %182 = math.exp %181 : vector<8x64xf32>
    %cst_97 = arith.constant 1.000000e+00 : f32
    %183 = vector.broadcast %cst_97 : f32 to vector<8x64xf32>
    %184 = arith.addf %183, %182 : vector<8x64xf32>
    %185 = tpu.reciprocal %184 {approx = true} : vector<8x64xf32> -> vector<8x64xf32>
    %186 = arith.mulf %179, %185 : vector<8x64xf32>
    %187 = vector.extract_strided_slice %178 {offsets = [0, 64], sizes = [8, 64], strides = [1, 1]} : vector<8x128xf32> to vector<8x64xf32>
    %188 = arith.mulf %186, %187 : vector<8x64xf32>
    %c0_98 = arith.constant 0 : index
    %c0_99 = arith.constant 0 : index
    %c0_100 = arith.constant 0 : index
    %189 = vector.load %arg7[%c0_98, %c0_99, %c0_100] : memref<2x64x16xf32, #tpu.memory_space<vmem>>, vector<1x64x16xf32>
    %190 = vector.shape_cast %189 : vector<1x64x16xf32> to vector<64x16xf32>
    %cst_101 = arith.constant dense<0.000000e+00> : vector<8x16xf32>
    %191 = tpu.matmul %188, %190, %cst_101 {dimension_numbers = #tpu.dot_dimension_numbers<[1], [0], [0], [1], [0, 0, 1, 1], [], []>} : vector<8x64xf32>, vector<64x16xf32>, vector<8x16xf32> -> vector<8x16xf32>
    %192 = arith.addf %163, %191 : vector<8x16xf32>
    %c1_102 = arith.constant 1 : index
    %c0_103 = arith.constant 0 : index
    %193 = vector.load %arg4[%c1_102, %c0_103] : memref<64x128xf32, #tpu.memory_space<vmem>>, vector<1x16xf32>
    %c3_104 = arith.constant 3 : index
    %c0_105 = arith.constant 0 : index
    %194 = vector.load %arg4[%c3_104, %c0_105] : memref<64x128xf32, #tpu.memory_space<vmem>>, vector<1x16xf32>
    %c1_106 = arith.constant 1 : index
    %c0_107 = arith.constant 0 : index
    %c0_108 = arith.constant 0 : index
    %195 = vector.load %arg5[%c1_106, %c0_107, %c0_108] : memref<2x16x64xf32, #tpu.memory_space<vmem>>, vector<1x16x64xf32>
    %196 = vector.shape_cast %195 : vector<1x16x64xf32> to vector<16x64xf32>
    %197 = arith.mulf %192, %192 : vector<8x16xf32>
    %cst_109 = arith.constant dense<0.000000e+00> : vector<8xf32>
    %198 = vector.multi_reduction <add>, %197, %cst_109 [1] : vector<8x16xf32> to vector<8xf32>
    %199 = vector.shape_cast %198 : vector<8xf32> to vector<8x1xf32>
    %cst_110 = arith.constant 6.250000e-02 : f32
    %200 = vector.broadcast %cst_110 : f32 to vector<8x1xf32>
    %201 = arith.mulf %199, %200 : vector<8x1xf32>
    %cst_111 = arith.constant 9.99999997E-7 : f32
    %202 = vector.broadcast %cst_111 : f32 to vector<8x1xf32>
    %203 = arith.addf %201, %202 : vector<8x1xf32>
    %204 = math.rsqrt %203 : vector<8x1xf32>
    %205 = vector.broadcast %204 : vector<8x1xf32> to vector<8x16xf32>
    %206 = arith.mulf %192, %205 : vector<8x16xf32>
    %207 = vector.broadcast %193 : vector<1x16xf32> to vector<8x16xf32>
    %208 = arith.mulf %206, %207 : vector<8x16xf32>
    %209 = vector.extract_strided_slice %196 {offsets = [0, 0], sizes = [16, 48], strides = [1, 1]} : vector<16x64xf32> to vector<16x48xf32>
    %cst_112 = arith.constant dense<0.000000e+00> : vector<8x48xf32>
    %210 = tpu.matmul %208, %209, %cst_112 {dimension_numbers = #tpu.dot_dimension_numbers<[1], [0], [0], [1], [0, 0, 1, 1], [], []>} : vector<8x16xf32>, vector<16x48xf32>, vector<8x48xf32> -> vector<8x48xf32>
    %211 = vector.extract_strided_slice %210 {offsets = [0, 0], sizes = [8, 16], strides = [1, 1]} : vector<8x48xf32> to vector<8x16xf32>
    %212 = vector.extract_strided_slice %210 {offsets = [0, 16], sizes = [8, 16], strides = [1, 1]} : vector<8x48xf32> to vector<8x16xf32>
    %213 = vector.extract_strided_slice %210 {offsets = [0, 32], sizes = [8, 16], strides = [1, 1]} : vector<8x48xf32> to vector<8x16xf32>
    %214 = arith.mulf %211, %8 : vector<8x16xf32>
    %cst_113 = arith.constant dense<0.000000e+00> : vector<8x16xf32>
    %215 = tpu.matmul %211, %11, %cst_113 {dimension_numbers = #tpu.dot_dimension_numbers<[1], [0], [0], [1], [0, 0, 1, 1], [], []>} : vector<8x16xf32>, vector<16x16xf32>, vector<8x16xf32> -> vector<8x16xf32>
    %216 = arith.mulf %215, %9 : vector<8x16xf32>
    %217 = arith.addf %214, %216 : vector<8x16xf32>
    %218 = arith.mulf %212, %8 : vector<8x16xf32>
    %cst_114 = arith.constant dense<0.000000e+00> : vector<8x16xf32>
    %219 = tpu.matmul %212, %11, %cst_114 {dimension_numbers = #tpu.dot_dimension_numbers<[1], [0], [0], [1], [0, 0, 1, 1], [], []>} : vector<8x16xf32>, vector<16x16xf32>, vector<8x16xf32> -> vector<8x16xf32>
    %220 = arith.mulf %219, %9 : vector<8x16xf32>
    %221 = arith.addf %218, %220 : vector<8x16xf32>
    %222 = vector.extract_strided_slice %217 {offsets = [0, 0], sizes = [8, 8], strides = [1, 1]} : vector<8x16xf32> to vector<8x8xf32>
    %223 = vector.extract_strided_slice %221 {offsets = [0, 0], sizes = [8, 8], strides = [1, 1]} : vector<8x16xf32> to vector<8x8xf32>
    %cst_115 = arith.constant dense<0.000000e+00> : vector<8x8xf32>
    %224 = tpu.matmul %222, %223, %cst_115 {dimension_numbers = #tpu.dot_dimension_numbers<[1], [1], [0], [0], [0, 0, 1, 0], [], []>} : vector<8x8xf32>, vector<8x8xf32>, vector<8x8xf32> -> vector<8x8xf32>
    %cst_116 = arith.constant 0.353553385 : f32
    %225 = vector.broadcast %cst_116 : f32 to vector<8x8xf32>
    %226 = arith.mulf %224, %225 : vector<8x8xf32>
    %227 = arith.addf %226, %10 : vector<8x8xf32>
    %cst_117 = arith.constant dense<0xFF800000> : vector<8xf32>
    %228 = vector.multi_reduction <maximumf>, %227, %cst_117 [1] : vector<8x8xf32> to vector<8xf32>
    %229 = vector.shape_cast %228 : vector<8xf32> to vector<8x1xf32>
    %230 = vector.broadcast %229 : vector<8x1xf32> to vector<8x8xf32>
    %231 = arith.subf %227, %230 : vector<8x8xf32>
    %232 = math.exp %231 : vector<8x8xf32>
    %cst_118 = arith.constant dense<0.000000e+00> : vector<8xf32>
    %233 = vector.multi_reduction <add>, %232, %cst_118 [1] : vector<8x8xf32> to vector<8xf32>
    %234 = vector.shape_cast %233 : vector<8xf32> to vector<8x1xf32>
    %235 = tpu.reciprocal %234 : vector<8x1xf32> -> vector<8x1xf32>
    %236 = vector.broadcast %235 : vector<8x1xf32> to vector<8x8xf32>
    %237 = arith.mulf %232, %236 : vector<8x8xf32>
    %cst_119 = arith.constant dense<0.000000e+00> : vector<8x128xf32>
    %238 = tpu.matmul %237, %12, %cst_119 {dimension_numbers = #tpu.dot_dimension_numbers<[1], [0], [0], [1], [0, 0, 1, 1], [], []>} : vector<8x8xf32>, vector<8x128xf32>, vector<8x128xf32> -> vector<8x128xf32>
    %c6_120 = arith.constant 6 : index
    %c0_121 = arith.constant 0 : index
    %c0_122 = arith.constant 0 : index
    %239 = vector.load %arg8[%c6_120, %c0_121, %c0_122] : memref<8x8x128xf32, #tpu.memory_space<vmem>>, vector<1x8x128xf32>
    %240 = vector.shape_cast %239 : vector<1x8x128xf32> to vector<8x128xf32>
    %241 = vector.shape_cast %238 : vector<8x128xf32> to vector<1x8x128xf32>
    tpu.vector_store %arg8[%c6_120, %c0_121, %c0_122], %241 {strides = array<i32>} : memref<8x8x128xf32, #tpu.memory_space<vmem>>, vector<1x8x128xf32>,
    %242 = vector.extract_strided_slice %213 {offsets = [0, 0], sizes = [8, 8], strides = [1, 1]} : vector<8x16xf32> to vector<8x8xf32>
    %cst_123 = arith.constant dense<0.000000e+00> : vector<8x8xf32>
    %243 = tpu.matmul %237, %242, %cst_123 {dimension_numbers = #tpu.dot_dimension_numbers<[1], [0], [0], [1], [0, 0, 1, 1], [], []>} : vector<8x8xf32>, vector<8x8xf32>, vector<8x8xf32> -> vector<8x8xf32>
    %244 = vector.extract_strided_slice %196 {offsets = [0, 48], sizes = [8, 16], strides = [1, 1]} : vector<16x64xf32> to vector<8x16xf32>
    %cst_124 = arith.constant dense<0.000000e+00> : vector<8x16xf32>
    %245 = tpu.matmul %243, %244, %cst_124 {dimension_numbers = #tpu.dot_dimension_numbers<[1], [0], [0], [1], [0, 0, 1, 1], [], []>} : vector<8x8xf32>, vector<8x16xf32>, vector<8x16xf32> -> vector<8x16xf32>
    %246 = vector.extract_strided_slice %217 {offsets = [0, 8], sizes = [8, 8], strides = [1, 1]} : vector<8x16xf32> to vector<8x8xf32>
    %247 = vector.extract_strided_slice %221 {offsets = [0, 8], sizes = [8, 8], strides = [1, 1]} : vector<8x16xf32> to vector<8x8xf32>
    %cst_125 = arith.constant dense<0.000000e+00> : vector<8x8xf32>
    %248 = tpu.matmul %246, %247, %cst_125 {dimension_numbers = #tpu.dot_dimension_numbers<[1], [1], [0], [0], [0, 0, 1, 0], [], []>} : vector<8x8xf32>, vector<8x8xf32>, vector<8x8xf32> -> vector<8x8xf32>
    %cst_126 = arith.constant 0.353553385 : f32
    %249 = vector.broadcast %cst_126 : f32 to vector<8x8xf32>
    %250 = arith.mulf %248, %249 : vector<8x8xf32>
    %251 = arith.addf %250, %10 : vector<8x8xf32>
    %cst_127 = arith.constant dense<0xFF800000> : vector<8xf32>
    %252 = vector.multi_reduction <maximumf>, %251, %cst_127 [1] : vector<8x8xf32> to vector<8xf32>
    %253 = vector.shape_cast %252 : vector<8xf32> to vector<8x1xf32>
    %254 = vector.broadcast %253 : vector<8x1xf32> to vector<8x8xf32>
    %255 = arith.subf %251, %254 : vector<8x8xf32>
    %256 = math.exp %255 : vector<8x8xf32>
    %cst_128 = arith.constant dense<0.000000e+00> : vector<8xf32>
    %257 = vector.multi_reduction <add>, %256, %cst_128 [1] : vector<8x8xf32> to vector<8xf32>
    %258 = vector.shape_cast %257 : vector<8xf32> to vector<8x1xf32>
    %259 = tpu.reciprocal %258 : vector<8x1xf32> -> vector<8x1xf32>
    %260 = vector.broadcast %259 : vector<8x1xf32> to vector<8x8xf32>
    %261 = arith.mulf %256, %260 : vector<8x8xf32>
    %cst_129 = arith.constant dense<0.000000e+00> : vector<8x128xf32>
    %262 = tpu.matmul %261, %12, %cst_129 {dimension_numbers = #tpu.dot_dimension_numbers<[1], [0], [0], [1], [0, 0, 1, 1], [], []>} : vector<8x8xf32>, vector<8x128xf32>, vector<8x128xf32> -> vector<8x128xf32>
    %c7_130 = arith.constant 7 : index
    %c0_131 = arith.constant 0 : index
    %c0_132 = arith.constant 0 : index
    %263 = vector.load %arg8[%c7_130, %c0_131, %c0_132] : memref<8x8x128xf32, #tpu.memory_space<vmem>>, vector<1x8x128xf32>
    %264 = vector.shape_cast %263 : vector<1x8x128xf32> to vector<8x128xf32>
    %265 = vector.shape_cast %262 : vector<8x128xf32> to vector<1x8x128xf32>
    tpu.vector_store %arg8[%c7_130, %c0_131, %c0_132], %265 {strides = array<i32>} : memref<8x8x128xf32, #tpu.memory_space<vmem>>, vector<1x8x128xf32>,
    %266 = vector.extract_strided_slice %213 {offsets = [0, 8], sizes = [8, 8], strides = [1, 1]} : vector<8x16xf32> to vector<8x8xf32>
    %cst_133 = arith.constant dense<0.000000e+00> : vector<8x8xf32>
    %267 = tpu.matmul %261, %266, %cst_133 {dimension_numbers = #tpu.dot_dimension_numbers<[1], [0], [0], [1], [0, 0, 1, 1], [], []>} : vector<8x8xf32>, vector<8x8xf32>, vector<8x8xf32> -> vector<8x8xf32>
    %268 = vector.extract_strided_slice %196 {offsets = [8, 48], sizes = [8, 16], strides = [1, 1]} : vector<16x64xf32> to vector<8x16xf32>
    %cst_134 = arith.constant dense<0.000000e+00> : vector<8x16xf32>
    %269 = tpu.matmul %267, %268, %cst_134 {dimension_numbers = #tpu.dot_dimension_numbers<[1], [0], [0], [1], [0, 0, 1, 1], [], []>} : vector<8x8xf32>, vector<8x16xf32>, vector<8x16xf32> -> vector<8x16xf32>
    %270 = arith.addf %245, %269 : vector<8x16xf32>
    %271 = arith.addf %192, %270 : vector<8x16xf32>
    %272 = arith.mulf %271, %271 : vector<8x16xf32>
    %cst_135 = arith.constant dense<0.000000e+00> : vector<8xf32>
    %273 = vector.multi_reduction <add>, %272, %cst_135 [1] : vector<8x16xf32> to vector<8xf32>
    %274 = vector.shape_cast %273 : vector<8xf32> to vector<8x1xf32>
    %cst_136 = arith.constant 6.250000e-02 : f32
    %275 = vector.broadcast %cst_136 : f32 to vector<8x1xf32>
    %276 = arith.mulf %274, %275 : vector<8x1xf32>
    %cst_137 = arith.constant 9.99999997E-7 : f32
    %277 = vector.broadcast %cst_137 : f32 to vector<8x1xf32>
    %278 = arith.addf %276, %277 : vector<8x1xf32>
    %279 = math.rsqrt %278 : vector<8x1xf32>
    %280 = vector.broadcast %279 : vector<8x1xf32> to vector<8x16xf32>
    %281 = arith.mulf %271, %280 : vector<8x16xf32>
    %282 = vector.broadcast %194 : vector<1x16xf32> to vector<8x16xf32>
    %283 = arith.mulf %281, %282 : vector<8x16xf32>
    %c1_138 = arith.constant 1 : index
    %c0_139 = arith.constant 0 : index
    %c0_140 = arith.constant 0 : index
    %284 = vector.load %arg6[%c1_138, %c0_139, %c0_140] : memref<2x16x128xf32, #tpu.memory_space<vmem>>, vector<1x16x128xf32>
    %285 = vector.shape_cast %284 : vector<1x16x128xf32> to vector<16x128xf32>
    %cst_141 = arith.constant dense<0.000000e+00> : vector<8x128xf32>
    %286 = tpu.matmul %283, %285, %cst_141 {dimension_numbers = #tpu.dot_dimension_numbers<[1], [0], [0], [1], [0, 0, 1, 1], [], []>} : vector<8x16xf32>, vector<16x128xf32>, vector<8x128xf32> -> vector<8x128xf32>
    %287 = vector.extract_strided_slice %286 {offsets = [0, 0], sizes = [8, 64], strides = [1, 1]} : vector<8x128xf32> to vector<8x64xf32>
    %cst_142 = arith.constant 0.000000e+00 : f32
    %288 = vector.broadcast %cst_142 : f32 to vector<8x64xf32>
    %289 = arith.subf %288, %287 : vector<8x64xf32>
    %290 = math.exp %289 : vector<8x64xf32>
    %cst_143 = arith.constant 1.000000e+00 : f32
    %291 = vector.broadcast %cst_143 : f32 to vector<8x64xf32>
    %292 = arith.addf %291, %290 : vector<8x64xf32>
    %293 = tpu.reciprocal %292 {approx = true} : vector<8x64xf32> -> vector<8x64xf32>
    %294 = arith.mulf %287, %293 : vector<8x64xf32>
    %295 = vector.extract_strided_slice %286 {offsets = [0, 64], sizes = [8, 64], strides = [1, 1]} : vector<8x128xf32> to vector<8x64xf32>
    %296 = arith.mulf %294, %295 : vector<8x64xf32>
    %c1_144 = arith.constant 1 : index
    %c0_145 = arith.constant 0 : index
    %c0_146 = arith.constant 0 : index
    %297 = vector.load %arg7[%c1_144, %c0_145, %c0_146] : memref<2x64x16xf32, #tpu.memory_space<vmem>>, vector<1x64x16xf32>
    %298 = vector.shape_cast %297 : vector<1x64x16xf32> to vector<64x16xf32>
    %cst_147 = arith.constant dense<0.000000e+00> : vector<8x16xf32>
    %299 = tpu.matmul %296, %298, %cst_147 {dimension_numbers = #tpu.dot_dimension_numbers<[1], [0], [0], [1], [0, 0, 1, 1], [], []>} : vector<8x64xf32>, vector<64x16xf32>, vector<8x16xf32> -> vector<8x16xf32>
    %300 = arith.addf %271, %299 : vector<8x16xf32>
    %301 = arith.mulf %300, %300 : vector<8x16xf32>
    %cst_148 = arith.constant dense<0.000000e+00> : vector<8xf32>
    %302 = vector.multi_reduction <add>, %301, %cst_148 [1] : vector<8x16xf32> to vector<8xf32>
    %303 = vector.shape_cast %302 : vector<8xf32> to vector<8x1xf32>
    %cst_149 = arith.constant 6.250000e-02 : f32
    %304 = vector.broadcast %cst_149 : f32 to vector<8x1xf32>
    %305 = arith.mulf %303, %304 : vector<8x1xf32>
    %cst_150 = arith.constant 9.99999997E-7 : f32
    %306 = vector.broadcast %cst_150 : f32 to vector<8x1xf32>
    %307 = arith.addf %305, %306 : vector<8x1xf32>
    %308 = math.rsqrt %307 : vector<8x1xf32>
    %309 = vector.broadcast %308 : vector<8x1xf32> to vector<8x16xf32>
    %310 = arith.mulf %300, %309 : vector<8x16xf32>
    %311 = vector.broadcast %14 : vector<1x16xf32> to vector<8x16xf32>
    %312 = arith.mulf %310, %311 : vector<8x16xf32>
    %cst_151 = arith.constant dense<0.000000e+00> : vector<8x128xf32>
    %313 = tpu.matmul %312, %13, %cst_151 {dimension_numbers = #tpu.dot_dimension_numbers<[1], [0], [0], [1], [0, 0, 1, 1], [], []>} : vector<8x16xf32>, vector<16x128xf32>, vector<8x128xf32> -> vector<8x128xf32>
    %c2_152 = arith.constant 2 : index
    %c0_153 = arith.constant 0 : index
    %c0_154 = arith.constant 0 : index
    %314 = vector.load %arg8[%c2_152, %c0_153, %c0_154] : memref<8x8x128xf32, #tpu.memory_space<vmem>>, vector<1x8x128xf32>
    %315 = vector.shape_cast %314 : vector<1x8x128xf32> to vector<8x128xf32>
    %316 = vector.shape_cast %313 : vector<8x128xf32> to vector<1x8x128xf32>
    tpu.vector_store %arg8[%c2_152, %c0_153, %c0_154], %316 {strides = array<i32>} : memref<8x8x128xf32, #tpu.memory_space<vmem>>, vector<1x8x128xf32>,
    %cst_155 = arith.constant dense<0.000000e+00> : vector<8x128xf32>
    %317 = tpu.matmul %312, %15, %cst_155 {dimension_numbers = #tpu.dot_dimension_numbers<[1], [0], [0], [1], [0, 0, 1, 1], [], []>} : vector<8x16xf32>, vector<16x128xf32>, vector<8x128xf32> -> vector<8x128xf32>
    %318 = vector.broadcast %5 : vector<1x128xf32> to vector<8x128xf32>
    %319 = arith.addf %317, %318 : vector<8x128xf32>
    %cst_156 = arith.constant 0.000000e+00 : f32
    %320 = vector.broadcast %cst_156 : f32 to vector<8x128xf32>
    %321 = arith.subf %320, %319 : vector<8x128xf32>
    %322 = math.exp %321 : vector<8x128xf32>
    %cst_157 = arith.constant 1.000000e+00 : f32
    %323 = vector.broadcast %cst_157 : f32 to vector<8x128xf32>
    %324 = arith.addf %323, %322 : vector<8x128xf32>
    %325 = tpu.reciprocal %324 {approx = true} : vector<8x128xf32> -> vector<8x128xf32>
    %326 = arith.mulf %319, %325 : vector<8x128xf32>
    %327 = arith.mulf %326, %326 : vector<8x128xf32>
    %cst_158 = arith.constant dense<0.000000e+00> : vector<8xf32>
    %328 = vector.multi_reduction <add>, %327, %cst_158 [1] : vector<8x128xf32> to vector<8xf32>
    %329 = vector.shape_cast %328 : vector<8xf32> to vector<8x1xf32>
    %cst_159 = arith.constant 7.812500e-03 : f32
    %330 = vector.broadcast %cst_159 : f32 to vector<8x1xf32>
    %331 = arith.mulf %329, %330 : vector<8x1xf32>
    %cst_160 = arith.constant 9.99999997E-7 : f32
    %332 = vector.broadcast %cst_160 : f32 to vector<8x1xf32>
    %333 = arith.addf %331, %332 : vector<8x1xf32>
    %334 = math.rsqrt %333 : vector<8x1xf32>
    %335 = vector.broadcast %334 : vector<8x1xf32> to vector<8x128xf32>
    %336 = arith.mulf %326, %335 : vector<8x128xf32>
    %337 = vector.broadcast %6 : vector<1x128xf32> to vector<8x128xf32>
    %338 = arith.mulf %336, %337 : vector<8x128xf32>
    %c4_161 = arith.constant 4 : index
    %c0_162 = arith.constant 0 : index
    %c0_163 = arith.constant 0 : index
    %339 = vector.load %arg2[%c4_161, %c0_162, %c0_163] : memref<5x128x128xf32, #tpu.memory_space<vmem>>, vector<1x128x128xf32>
    %340 = vector.shape_cast %339 : vector<1x128x128xf32> to vector<128x128xf32>
    %cst_164 = arith.constant dense<0.000000e+00> : vector<8x128xf32>
    %341 = tpu.matmul %338, %340, %cst_164 {dimension_numbers = #tpu.dot_dimension_numbers<[1], [0], [0], [1], [0, 0, 1, 1], [], []>} : vector<8x128xf32>, vector<128x128xf32>, vector<8x128xf32> -> vector<8x128xf32>
    %342 = vector.broadcast %7 : vector<1x128xf32> to vector<8x128xf32>
    %343 = arith.addf %341, %342 : vector<8x128xf32>
    %c3_165 = arith.constant 3 : index
    %c0_166 = arith.constant 0 : index
    %c0_167 = arith.constant 0 : index
    %344 = vector.load %arg8[%c3_165, %c0_166, %c0_167] : memref<8x8x128xf32, #tpu.memory_space<vmem>>, vector<1x8x128xf32>
    %345 = vector.shape_cast %344 : vector<1x8x128xf32> to vector<8x128xf32>
    %346 = vector.shape_cast %343 : vector<8x128xf32> to vector<1x8x128xf32>
    tpu.vector_store %arg8[%c3_165, %c0_166, %c0_167], %346 {strides = array<i32>} : memref<8x8x128xf32, #tpu.memory_space<vmem>>, vector<1x8x128xf32>,
    return
  }
}

</mosaic_0001>

<llo_original>
// kernel: squeeze.9
$region0: #{squeeze.9}
  %s0 = inlined_call_operand.vmem [shape: f32[1,8,128], index: 0, kind: input, shape index: {}]
  %s1 = inlined_call_operand.vmem [shape: f32[2,4,8,16], index: 1, kind: output, shape index: {}]
  %v2 = vld [vmem:[%s0] sm:$0xff]
  %vm3 = vcmask 130048
  %4 = vst.msk [vmem:[%s1] ss:$8 sm:$0xf] %vm3, %v2
  %5 = vst.msk [vmem:[%s1] ss:$8 sm:$0xf0] %vm3, %v2
  %v6 = vld [vmem:[%s0] sm:$0xff]
  %7 = vrot.lane.b32.xlu0 %v6, 112
  %v8 = vpop.permute.xlu0 %7
  %vm9 = vcmask 130048
  %s10 = scalar_lea.vmem %s1, 1
  %11 = vst.msk [vmem:[%s10] ss:$8 sm:$0xf] %vm9, %v8
  %s12 = scalar_lea.vmem %s1, 1
  %13 = vst.msk [vmem:[%s12] ss:$8 sm:$0xf0] %vm9, %v8
  %v14 = vld [vmem:[%s0] sm:$0xff]
  %15 = vrot.lane.b32.xlu0 %v14, 96
  %v16 = vpop.permute.xlu0 %15
  %vm17 = vcmask 130048
  %s18 = scalar_lea.vmem %s1, 2
  %19 = vst.msk [vmem:[%s18] ss:$8 sm:$0xf] %vm17, %v16
  %s20 = scalar_lea.vmem %s1, 2
  %21 = vst.msk [vmem:[%s20] ss:$8 sm:$0xf0] %vm17, %v16
  %v22 = vld [vmem:[%s0] sm:$0xff]
  %23 = vrot.lane.b32.xlu0 %v22, 80
  %v24 = vpop.permute.xlu0 %23
  %vm25 = vcmask 130048
  %s26 = scalar_lea.vmem %s1, 3
  %27 = vst.msk [vmem:[%s26] ss:$8 sm:$0xf] %vm25, %v24
  %s28 = scalar_lea.vmem %s1, 3
  %29 = vst.msk [vmem:[%s28] ss:$8 sm:$0xf0] %vm25, %v24
  %v30 = vld [vmem:[%s0] sm:$0xff]
  %31 = vrot.lane.b32.xlu0 %v30, 64
  %v32 = vpop.permute.xlu0 %31
  %vm33 = vcmask 130048
  %s34 = scalar_lea.vmem %s1, 4
  %35 = vst.msk [vmem:[%s34] ss:$8 sm:$0xf] %vm33, %v32
  %s36 = scalar_lea.vmem %s1, 4
  %37 = vst.msk [vmem:[%s36] ss:$8 sm:$0xf0] %vm33, %v32
  %v38 = vld [vmem:[%s0] sm:$0xff]
  %39 = vrot.lane.b32.xlu0 %v38, 48
  %v40 = vpop.permute.xlu0 %39
  %vm41 = vcmask 130048
  %s42 = scalar_lea.vmem %s1, 5
  %43 = vst.msk [vmem:[%s42] ss:$8 sm:$0xf] %vm41, %v40
  %s44 = scalar_lea.vmem %s1, 5
  %45 = vst.msk [vmem:[%s44] ss:$8 sm:$0xf0] %vm41, %v40
  %v46 = vld [vmem:[%s0] sm:$0xff]
  %47 = vrot.lane.b32.xlu0 %v46, 32
  %v48 = vpop.permute.xlu0 %47
  %vm49 = vcmask 130048
  %s50 = scalar_lea.vmem %s1, 6
  %51 = vst.msk [vmem:[%s50] ss:$8 sm:$0xf] %vm49, %v48
  %s52 = scalar_lea.vmem %s1, 6
  %53 = vst.msk [vmem:[%s52] ss:$8 sm:$0xf0] %vm49, %v48
  %v54 = vld [vmem:[%s0] sm:$0xff]
  %55 = vrot.lane.b32.xlu0 %v54, 16
  %v56 = vpop.permute.xlu0 %55
  %vm57 = vcmask 130048
  %s58 = scalar_lea.vmem %s1, 7
  %59 = vst.msk [vmem:[%s58] ss:$8 sm:$0xf] %vm57, %v56
  %s60 = scalar_lea.vmem %s1, 7
  %61 = vst.msk [vmem:[%s60] ss:$8 sm:$0xf0] %vm57, %v56

// kernel: forward.1
$region0: #{forward.1}
  #allocation0 [shape = 'u32[]', space=smem, size = 0x4, offset = 0x4, fixed_abs, tag = 'smem constant byte address 0x4 - core index']
  #allocation1 [shape = 'u32[144,128]{1,0:T(1,128)}', space=vmem, size = 0x12000, scoped, tag = 'internal scratch']
  %s0 = inlined_call_operand.vmem [shape: f32[8,128], index: 0, kind: input, shape index: {}]
  %s1 = inlined_call_operand.vmem [shape: f32[8,16], index: 1, kind: input, shape index: {}]
  %s2 = inlined_call_operand.hbm [shape: f32[5,128,128], index: 2, kind: input, shape index: {}]
  %s3 = inlined_call_operand.vmem [shape: f32[8,128], index: 3, kind: input, shape index: {}]
  %s4 = inlined_call_operand.vmem [shape: f32[64,128], index: 4, kind: input, shape index: {}]
  %s5 = inlined_call_operand.vmem [shape: f32[2,16,64], index: 5, kind: input, shape index: {}]
  %s6 = inlined_call_operand.vmem [shape: f32[2,16,128], index: 6, kind: input, shape index: {}]
  %s7 = inlined_call_operand.vmem [shape: f32[2,64,16], index: 7, kind: input, shape index: {}]
  %s8 = inlined_call_operand.vmem [shape: f32[8,8,128], index: 8, kind: output, shape index: {}]
  %s9 = sld [smem:[#allocation0]]
  $region46: #{forward.1} parent=0
    _
  %s11 = ssub.s32 1, %s9
  %s12 = scalar_select 0, %s11, %s9
  $region1: #{forward.1} parent=0
    #allocation2 [shape = 'u8[327680]{0}', space=vmem, size = 0x50000, scoped, tag = 'input window, operand 2, single buffered']
    #allocation3 [shape = 's32[1]{0}', space=sflag, size = 0x4, scoped, tag = 'scoped memory for forward.1']
    %13 = vsyncpa [#allocation3], 0
    // Predicated region
    $region2: #{forward.1} parent=1 // pred_check
      _
    $region3: #{forward.1} parent=1 // pred_check_branch
      %15 = sbr.rel (0) target = $region5
    $region4: #{forward.1} parent=1 // pred_region
      _
    $region5: #{forward.1} parent=1 // pred_fallthru
      _
    // Predicated region
    $region6: #{forward.1} parent=1 // pred_check
      _
    $region7: #{forward.1} parent=1 // pred_check_branch
      %17 = sbr.rel (0) target = $region9
    $region8: #{forward.1} parent=1 // pred_region
      _
    $region9: #{forward.1} parent=1 // pred_fallthru
      _
    // Predicated region
    $region10: #{forward.1} parent=1 // pred_check
      _
    $region11: #{forward.1} parent=1 // pred_check_branch
      %19 = sbr.rel (0) target = $region13
    $region12: #{forward.1} parent=1 // pred_region
      %s21 = ssub.s32 10240, 10240
      %22 = vsyncadd [#allocation3], %s21
      %s23 = sshll.u32 [#allocation2], 4
      %s24 = int_to_ptr.vmem [resolvable:$true] %s23
      %29 = dma.hbm_to_vmem [thread:$0]  %s2, 10240, %s24, [#allocation3], 128, 128, 8
    $region13: #{forward.1} parent=1 // pred_fallthru
      _
    // Predicated region
    $region14: #{forward.1} parent=1 // pred_check
      _
    $region15: #{forward.1} parent=1 // pred_check_branch
      %31 = sbr.rel (0) target = $region17
    $region16: #{forward.1} parent=1 // pred_region
      _
    $region17: #{forward.1} parent=1 // pred_fallthru
      _
    // Predicated region
    $region18: #{forward.1} parent=1 // pred_check
      _
    $region19: #{forward.1} parent=1 // pred_check_branch
      %33 = sbr.rel (0) target = $region21
    $region20: #{forward.1} parent=1 // pred_region
      _
    $region21: #{forward.1} parent=1 // pred_fallthru
      _
    // Predicated region
    $region22: #{forward.1} parent=1 // pred_check
      _
    $region23: #{forward.1} parent=1 // pred_check_branch
      %35 = sbr.rel (0) target = $region25
    $region24: #{forward.1} parent=1 // pred_region
      _
    $region25: #{forward.1} parent=1 // pred_fallthru
      _
    // Predicated region
    $region26: #{forward.1} parent=1 // pred_check
      _
    $region27: #{forward.1} parent=1 // pred_check_branch
      %37 = sbr.rel (0) target = $region29
    $region28: #{forward.1} parent=1 // pred_region
      _
    $region29: #{forward.1} parent=1 // pred_fallthru
      _
    // Predicated region
    $region30: #{forward.1} parent=1 // pred_check
      _
    $region31: #{forward.1} parent=1 // pred_check_branch
      %39 = sbr.rel (0) target = $region33
    $region32: #{forward.1} parent=1 // pred_region
      _
    $region33: #{forward.1} parent=1 // pred_fallthru
      _
    // Predicated region
    $region34: #{forward.1} parent=1 // pred_check
      _
    $region35: #{forward.1} parent=1 // pred_check_branch
      %41 = sbr.rel (0) target = $region37
    $region36: #{forward.1} parent=1 // pred_region
      %42 = dma.done [#allocation3], 10240
    $region37: #{forward.1} parent=1 // pred_fallthru
      _
    %v43 = vld [vmem:[%s3] sm:$0x1]
    %v44 = vld [vmem:[%s3 + $0x1] sm:$0x1]
    %v45 = vld [vmem:[%s3 + $0x2] sm:$0x1]
    %v46 = vld [vmem:[%s3 + $0x3] sm:$0x1]
    %v47 = vld [vmem:[%s3 + $0x4] sm:$0x1]
    %v48 = vld [vmem:[%s3 + $0x5] sm:$0x1]
    %v49 = vld [vmem:[%s3 + $0x6] sm:$0x1]
    %v50 = vld [vmem:[%s3 + $0x7] sm:$0x1]
    %v51 = vld [vmem:[%s4 + $0x8] sm:$0xff]
    %v52 = vld [vmem:[%s4 + $0x10] sm:$0xff]
    %v53 = vld [vmem:[%s4 + $0x18] sm:$0xff]
    %v54 = vld [vmem:[%s4 + $0x20] sm:$0xff]
    %v55 = vld [vmem:[%s4 + $0x28] sm:$0xff]
    %v56 = vld [vmem:[%s4 + $0x4] sm:$0x1]
    %v57 = vld [vmem:[%s4 + $0x30] sm:$0xff]
    %v58 = vld [vmem:[%s4 + $0x38] sm:$0xff]
    %v59 = vld [vmem:[%s0] sm:$0xff]
    %v60 = vld [vmem:[#allocation2] sm:$0xff]
    %v61 = vld [vmem:[#allocation2 + $0x8] sm:$0xff]
    %v62 = vld [vmem:[#allocation2 + $0x10] sm:$0xff]
    %v63 = vld [vmem:[#allocation2 + $0x18] sm:$0xff]
    %v64 = vld [vmem:[#allocation2 + $0x20] sm:$0xff]
    %v65 = vld [vmem:[#allocation2 + $0x28] sm:$0xff]
    %v66 = vld [vmem:[#allocation2 + $0x30] sm:$0xff]
    %v67 = vld [vmem:[#allocation2 + $0x38] sm:$0xff]
    %v68 = vld [vmem:[#allocation2 + $0x40] sm:$0xff]
    %v69 = vld [vmem:[#allocation2 + $0x48] sm:$0xff]
    %v70 = vld [vmem:[#allocation2 + $0x50] sm:$0xff]
    %v71 = vld [vmem:[#allocation2 + $0x58] sm:$0xff]
    %v72 = vld [vmem:[#allocation2 + $0x60] sm:$0xff]
    %v73 = vld [vmem:[#allocation2 + $0x68] sm:$0xff]
    %v74 = vld [vmem:[#allocation2 + $0x70] sm:$0xff]
    %v75 = vld [vmem:[#allocation2 + $0x78] sm:$0xff]
    %v76 = vlaneseq
    %v77 = vshrl.u32 %v76, 7
    %v78 = vsub.s32 0, %v77
    %v79 = vrot.slane %v43, %v78
    %80 = vmatprep.subr.mxu0 0.0
    %81 = vmatpush1.msra.mxu0 %v60
    %82 = vmatprep.subr.mxu0 0.0
    %83 = vmatpush1.msra.mxu0 %v61
    %84 = vmatprep.subr.mxu0 0.0
    %85 = vmatpush1.msra.mxu0 %v62
    %86 = vmatprep.subr.mxu0 0.0
    %87 = vmatpush1.msra.mxu0 %v63
    %88 = vmatprep.subr.mxu0 0.0
    %89 = vmatpush1.msra.mxu0 %v64
    %90 = vmatprep.subr.mxu0 0.0
    %91 = vmatpush1.msra.mxu0 %v65
    %92 = vmatprep.subr.mxu0 0.0
    %93 = vmatpush1.msra.mxu0 %v66
    %94 = vmatprep.subr.mxu0 0.0
    %95 = vmatpush1.msra.mxu0 %v67
    %96 = vmatprep.subr.mxu0 0.0
    %97 = vmatpush1.msra.mxu0 %v68
    %98 = vmatprep.subr.mxu0 0.0
    %99 = vmatpush1.msra.mxu0 %v69
    %100 = vmatprep.subr.mxu0 0.0
    %101 = vmatpush1.msra.mxu0 %v70
    %102 = vmatprep.subr.mxu0 0.0
    %103 = vmatpush1.msra.mxu0 %v71
    %104 = vmatprep.subr.mxu0 0.0
    %105 = vmatpush1.msra.mxu0 %v72
    %106 = vmatprep.subr.mxu0 0.0
    %107 = vmatpush1.msra.mxu0 %v73
    %108 = vmatprep.subr.mxu0 0.0
    %109 = vmatpush1.msra.mxu0 %v74
    %110 = vmatprep.subr.mxu0 0.0
    %111 = vmatpush1.msra.mxu0 %v75
    %112 = vmatprep.subr.mxu0 0.0
    %113 = vmatpush1.msra.mxu0 0.0
    %114 = vmatprep.subr.mxu0 0.0
    %115 = vmatpush1.msra.mxu0 0.0
    %116 = vmatprep.subr.mxu0 0.0
    %117 = vmatpush1.msra.mxu0 0.0
    %118 = vmatprep.subr.mxu0 0.0
    %119 = vmatpush1.msra.mxu0 0.0
    %120 = vmatprep.subr.mxu0 0.0
    %121 = vmatpush1.msra.mxu0 0.0
    %122 = vmatprep.subr.mxu0 0.0
    %123 = vmatpush1.msra.mxu0 0.0
    %124 = vmatprep.subr.mxu0 0.0
    %125 = vmatpush1.msra.mxu0 0.0
    %126 = vmatprep.subr.mxu0 0.0
    %127 = vmatpush1.msra.mxu0 0.0
    %128 = vmatprep.subr.mxu0 0.0
    %129 = vmatpush1.msra.mxu0 0.0
    %130 = vmatprep.subr.mxu0 0.0
    %131 = vmatpush1.msra.mxu0 0.0
    %132 = vmatprep.subr.mxu0 0.0
    %133 = vmatpush1.msra.mxu0 0.0
    %134 = vmatprep.subr.mxu0 0.0
    %135 = vmatpush1.msra.mxu0 0.0
    %136 = vmatprep.subr.mxu0 0.0
    %137 = vmatpush1.msra.mxu0 0.0
    %138 = vmatprep.subr.mxu0 0.0
    %139 = vmatpush1.msra.mxu0 0.0
    %140 = vmatprep.subr.mxu0 0.0
    %141 = vmatpush1.msra.mxu0 0.0
    %142 = vmatprep.subr.mxu0 0.0
    %143 = vmatpush1.msra.mxu0 0.0
    %144 = vmatprep.mubr.f32.mxu0 0.0
    %145 = vmatmul.mubr.f32.gmra.mrb[0].mxu0 %v59
    %v146 = vpop.f32.mrb[0].mxu0
    %v147 = vadd.f32 %v79, %v146
    %v148 = vpop.f32.mrb[0].mxu0
    %149 = vdwg.mxu0
    %v150 = vsub.f32 0.0, %v147
    %v151 = vmul.f32 %v150, 1.442695
    %v152 = vpow.pop %v151
    %v153 = vadd.f32 %v152, 1.0
    %v154 = vrcp.pop %v153
    %v155 = vmul.f32 %v147, %v154
    %v156 = vmul.f32 %v155, %v155
    %s157 = scalar_lea.vmem [#allocation2], 128
    %v158 = vld [vmem:[%s157] sm:$0xff]
    %v159 = vld [vmem:[%s157 + $0x8] sm:$0xff]
    %v160 = vld [vmem:[%s157 + $0x10] sm:$0xff]
    %v161 = vld [vmem:[%s157 + $0x18] sm:$0xff]
    %v162 = vld [vmem:[%s157 + $0x20] sm:$0xff]
    %v163 = vld [vmem:[%s157 + $0x28] sm:$0xff]
    %v164 = vld [vmem:[%s157 + $0x30] sm:$0xff]
    %v165 = vld [vmem:[%s157 + $0x38] sm:$0xff]
    %v166 = vld [vmem:[%s157 + $0x40] sm:$0xff]
    %v167 = vld [vmem:[%s157 + $0x48] sm:$0xff]
    %v168 = vld [vmem:[%s157 + $0x50] sm:$0xff]
    %v169 = vld [vmem:[%s157 + $0x58] sm:$0xff]
    %v170 = vld [vmem:[%s157 + $0x60] sm:$0xff]
    %v171 = vld [vmem:[%s157 + $0x68] sm:$0xff]
    %v172 = vld [vmem:[%s157 + $0x70] sm:$0xff]
    %v173 = vld [vmem:[%s157 + $0x78] sm:$0xff]
    %174 = vmatprep.subr.mxu0 0.0
    %175 = vmatpush1.msra.mxu0 %v158
    %176 = vmatprep.subr.mxu0 0.0
    %177 = vmatpush1.msra.mxu0 %v159
    %178 = vmatprep.subr.mxu0 0.0
    %179 = vmatpush1.msra.mxu0 %v160
    %180 = vmatprep.subr.mxu0 0.0
    %181 = vmatpush1.msra.mxu0 %v161
    %182 = vmatprep.subr.mxu0 0.0
    %183 = vmatpush1.msra.mxu0 %v162
    %184 = vmatprep.subr.mxu0 0.0
    %185 = vmatpush1.msra.mxu0 %v163
    %186 = vmatprep.subr.mxu0 0.0
    %187 = vmatpush1.msra.mxu0 %v164
    %188 = vmatprep.subr.mxu0 0.0
    %189 = vmatpush1.msra.mxu0 %v165
    %190 = vmatprep.subr.mxu0 0.0
    %191 = vmatpush1.msra.mxu0 %v166
    %192 = vmatprep.subr.mxu0 0.0
    %193 = vmatpush1.msra.mxu0 %v167
    %194 = vmatprep.subr.mxu0 0.0
    %195 = vmatpush1.msra.mxu0 %v168
    %196 = vmatprep.subr.mxu0 0.0
    %197 = vmatpush1.msra.mxu0 %v169
    %198 = vmatprep.subr.mxu0 0.0
    %199 = vmatpush1.msra.mxu0 %v170
    %200 = vmatprep.subr.mxu0 0.0
    %201 = vmatpush1.msra.mxu0 %v171
    %202 = vmatprep.subr.mxu0 0.0
    %203 = vmatpush1.msra.mxu0 %v172
    %204 = vmatprep.subr.mxu0 0.0
    %205 = vmatpush1.msra.mxu0 %v173
    %206 = vmatprep.subr.mxu0 0.0
    %207 = vmatpush1.msra.mxu0 0.0
    %208 = vmatprep.subr.mxu0 0.0
    %209 = vmatpush1.msra.mxu0 0.0
    %210 = vmatprep.subr.mxu0 0.0
    %211 = vmatpush1.msra.mxu0 0.0
    %212 = vmatprep.subr.mxu0 0.0
    %213 = vmatpush1.msra.mxu0 0.0
    %214 = vmatprep.subr.mxu0 0.0
    %215 = vmatpush1.msra.mxu0 0.0
    %216 = vmatprep.subr.mxu0 0.0
    %217 = vmatpush1.msra.mxu0 0.0
    %218 = vmatprep.subr.mxu0 0.0
    %219 = vmatpush1.msra.mxu0 0.0
    %220 = vmatprep.subr.mxu0 0.0
    %221 = vmatpush1.msra.mxu0 0.0
    %222 = vmatprep.subr.mxu0 0.0
    %223 = vmatpush1.msra.mxu0 0.0
    %224 = vmatprep.subr.mxu0 0.0
    %225 = vmatpush1.msra.mxu0 0.0
    %226 = vmatprep.subr.mxu0 0.0
    %227 = vmatpush1.msra.mxu0 0.0
    %228 = vmatprep.subr.mxu0 0.0
    %229 = vmatpush1.msra.mxu0 0.0
    %230 = vmatprep.subr.mxu0 0.0
    %231 = vmatpush1.msra.mxu0 0.0
    %232 = vmatprep.subr.mxu0 0.0
    %233 = vmatpush1.msra.mxu0 0.0
    %234 = vmatprep.subr.mxu0 0.0
    %235 = vmatpush1.msra.mxu0 0.0
    %236 = vmatprep.subr.mxu0 0.0
    %237 = vmatpush1.msra.mxu0 0.0
    %238 = vmatprep.mubr.f32.mxu0 0.0
    %239 = vmatmul.mubr.f32.gmra.mrb[0].mxu0 %v156
    %v240 = vpop.f32.mrb[0].mxu0
    %v241 = vadd.f32 0.0, %v240
    %v242 = vpop.f32.mrb[0].mxu0
    %243 = vdwg.mxu0
    %v244 = vmul.f32 %v241, 0.03125
    %v245 = vadd.f32 %v244, 1e-06
    %v246 = vrsqrt.pop %v245
    %v247 = vmul.f32 %v155, %v246
    %v248 = vlaneseq
    %v249 = vshrl.u32 %v248, 7
    %v250 = vsub.s32 0, %v249
    %v251 = vrot.slane %v44, %v250
    %v252 = vmul.f32 %v247, %v251
    %s253 = scalar_lea.vmem [#allocation2], 256
    %v254 = vld [vmem:[%s253] sm:$0xff]
    %v255 = vld [vmem:[%s253 + $0x8] sm:$0xff]
    %v256 = vld [vmem:[%s253 + $0x10] sm:$0xff]
    %v257 = vld [vmem:[%s253 + $0x18] sm:$0xff]
    %v258 = vld [vmem:[%s253 + $0x20] sm:$0xff]
    %v259 = vld [vmem:[%s253 + $0x28] sm:$0xff]
    %v260 = vld [vmem:[%s253 + $0x30] sm:$0xff]
    %v261 = vld [vmem:[%s253 + $0x38] sm:$0xff]
    %v262 = vld [vmem:[%s253 + $0x40] sm:$0xff]
    %v263 = vld [vmem:[%s253 + $0x48] sm:$0xff]
    %v264 = vld [vmem:[%s253 + $0x50] sm:$0xff]
    %v265 = vld [vmem:[%s253 + $0x58] sm:$0xff]
    %v266 = vld [vmem:[%s253 + $0x60] sm:$0xff]
    %v267 = vld [vmem:[%s253 + $0x68] sm:$0xff]
    %v268 = vld [vmem:[%s253 + $0x70] sm:$0xff]
    %v269 = vld [vmem:[%s253 + $0x78] sm:$0xff]
    %v270 = vlaneseq
    %v271 = vshrl.u32 %v270, 7
    %v272 = vsub.s32 0, %v271
    %v273 = vrot.slane %v45, %v272
    %274 = vmatprep.subr.mxu0 0.0
    %275 = vmatpush1.msra.mxu0 %v254
    %276 = vmatprep.subr.mxu0 0.0
    %277 = vmatpush1.msra.mxu0 %v255
    %278 = vmatprep.subr.mxu0 0.0
    %279 = vmatpush1.msra.mxu0 %v256
    %280 = vmatprep.subr.mxu0 0.0
    %281 = vmatpush1.msra.mxu0 %v257
    %282 = vmatprep.subr.mxu0 0.0
    %283 = vmatpush1.msra.mxu0 %v258
    %284 = vmatprep.subr.mxu0 0.0
    %285 = vmatpush1.msra.mxu0 %v259
    %286 = vmatprep.subr.mxu0 0.0
    %287 = vmatpush1.msra.mxu0 %v260
    %288 = vmatprep.subr.mxu0 0.0
    %289 = vmatpush1.msra.mxu0 %v261
    %290 = vmatprep.subr.mxu0 0.0
    %291 = vmatpush1.msra.mxu0 %v262
    %292 = vmatprep.subr.mxu0 0.0
    %293 = vmatpush1.msra.mxu0 %v263
    %294 = vmatprep.subr.mxu0 0.0
    %295 = vmatpush1.msra.mxu0 %v264
    %296 = vmatprep.subr.mxu0 0.0
    %297 = vmatpush1.msra.mxu0 %v265
    %298 = vmatprep.subr.mxu0 0.0
    %299 = vmatpush1.msra.mxu0 %v266
    %300 = vmatprep.subr.mxu0 0.0
    %301 = vmatpush1.msra.mxu0 %v267
    %302 = vmatprep.subr.mxu0 0.0
    %303 = vmatpush1.msra.mxu0 %v268
    %304 = vmatprep.subr.mxu0 0.0
    %305 = vmatpush1.msra.mxu0 %v269
    %306 = vmatprep.subr.mxu0 0.0
    %307 = vmatpush1.msra.mxu0 0.0
    %308 = vmatprep.subr.mxu0 0.0
    %309 = vmatpush1.msra.mxu0 0.0
    %310 = vmatprep.subr.mxu0 0.0
    %311 = vmatpush1.msra.mxu0 0.0
    %312 = vmatprep.subr.mxu0 0.0
    %313 = vmatpush1.msra.mxu0 0.0
    %314 = vmatprep.subr.mxu0 0.0
    %315 = vmatpush1.msra.mxu0 0.0
    %316 = vmatprep.subr.mxu0 0.0
    %317 = vmatpush1.msra.mxu0 0.0
    %318 = vmatprep.subr.mxu0 0.0
    %319 = vmatpush1.msra.mxu0 0.0
    %320 = vmatprep.subr.mxu0 0.0
    %321 = vmatpush1.msra.mxu0 0.0
    %322 = vmatprep.subr.mxu0 0.0
    %323 = vmatpush1.msra.mxu0 0.0
    %324 = vmatprep.subr.mxu0 0.0
    %325 = vmatpush1.msra.mxu0 0.0
    %326 = vmatprep.subr.mxu0 0.0
    %327 = vmatpush1.msra.mxu0 0.0
    %328 = vmatprep.subr.mxu0 0.0
    %329 = vmatpush1.msra.mxu0 0.0
    %330 = vmatprep.subr.mxu0 0.0
    %331 = vmatpush1.msra.mxu0 0.0
    %332 = vmatprep.subr.mxu0 0.0
    %333 = vmatpush1.msra.mxu0 0.0
    %334 = vmatprep.subr.mxu0 0.0
    %335 = vmatpush1.msra.mxu0 0.0
    %336 = vmatprep.subr.mxu0 0.0
    %337 = vmatpush1.msra.mxu0 0.0
    %338 = vmatprep.mubr.f32.mxu0 0.0
    %339 = vmatmul.mubr.f32.gmra.mrb[0].mxu0 %v252
    %v340 = vpop.f32.mrb[0].mxu0
    %v341 = vadd.f32 %v273, %v340
    %v342 = vpop.f32.mrb[0].mxu0
    %343 = vdwg.mxu0
    %v344 = vsub.f32 0.0, %v341
    %v345 = vmul.f32 %v344, 1.442695
    %v346 = vpow.pop %v345
    %v347 = vadd.f32 %v346, 1.0
    %v348 = vrcp.pop %v347
    %v349 = vmul.f32 %v341, %v348
    %v350 = vmul.f32 %v349, %v349
    %351 = vadd.xlane.f32.xlu0 %v350
    %v352 = vpop.xlane.xlu0 %351
    %v353 = vmul.f32 %v352, 0.03125
    %v354 = vadd.f32 %v353, 1e-06
    %v355 = vrsqrt.pop %v354
    %v356 = vmul.f32 %v349, %v355
    %v357 = vlaneseq
    %v358 = vshrl.u32 %v357, 7
    %v359 = vsub.s32 0, %v358
    %v360 = vrot.slane %v46, %v359
    %v361 = vmul.f32 %v356, %v360
    %s362 = scalar_lea.vmem [#allocation2], 384
    %v363 = vld [vmem:[%s362] sm:$0xff]
    %v364 = vld [vmem:[%s362 + $0x8] sm:$0xff]
    %v365 = vld [vmem:[%s362 + $0x10] sm:$0xff]
    %v366 = vld [vmem:[%s362 + $0x18] sm:$0xff]
    %v367 = vld [vmem:[%s362 + $0x20] sm:$0xff]
    %v368 = vld [vmem:[%s362 + $0x28] sm:$0xff]
    %v369 = vld [vmem:[%s362 + $0x30] sm:$0xff]
    %v370 = vld [vmem:[%s362 + $0x38] sm:$0xff]
    %v371 = vld [vmem:[%s362 + $0x40] sm:$0xff]
    %v372 = vld [vmem:[%s362 + $0x48] sm:$0xff]
    %v373 = vld [vmem:[%s362 + $0x50] sm:$0xff]
    %v374 = vld [vmem:[%s362 + $0x58] sm:$0xff]
    %v375 = vld [vmem:[%s362 + $0x60] sm:$0xff]
    %v376 = vld [vmem:[%s362 + $0x68] sm:$0xff]
    %v377 = vld [vmem:[%s362 + $0x70] sm:$0xff]
    %v378 = vld [vmem:[%s362 + $0x78] sm:$0xff]
    %v379 = vlaneseq
    %v380 = vshrl.u32 %v379, 7
    %v381 = vsub.s32 0, %v380
    %v382 = vrot.slane %v47, %v381
    %383 = vmatprep.subr.mxu0 0.0
    %384 = vmatpush1.msra.mxu0 %v363
    %385 = vmatprep.subr.mxu0 0.0
    %386 = vmatpush1.msra.mxu0 %v364
    %387 = vmatprep.subr.mxu0 0.0
    %388 = vmatpush1.msra.mxu0 %v365
    %389 = vmatprep.subr.mxu0 0.0
    %390 = vmatpush1.msra.mxu0 %v366
    %391 = vmatprep.subr.mxu0 0.0
    %392 = vmatpush1.msra.mxu0 %v367
    %393 = vmatprep.subr.mxu0 0.0
    %394 = vmatpush1.msra.mxu0 %v368
    %395 = vmatprep.subr.mxu0 0.0
    %396 = vmatpush1.msra.mxu0 %v369
    %397 = vmatprep.subr.mxu0 0.0
    %398 = vmatpush1.msra.mxu0 %v370
    %399 = vmatprep.subr.mxu0 0.0
    %400 = vmatpush1.msra.mxu0 %v371
    %401 = vmatprep.subr.mxu0 0.0
    %402 = vmatpush1.msra.mxu0 %v372
    %403 = vmatprep.subr.mxu0 0.0
    %404 = vmatpush1.msra.mxu0 %v373
    %405 = vmatprep.subr.mxu0 0.0
    %406 = vmatpush1.msra.mxu0 %v374
    %407 = vmatprep.subr.mxu0 0.0
    %408 = vmatpush1.msra.mxu0 %v375
    %409 = vmatprep.subr.mxu0 0.0
    %410 = vmatpush1.msra.mxu0 %v376
    %411 = vmatprep.subr.mxu0 0.0
    %412 = vmatpush1.msra.mxu0 %v377
    %413 = vmatprep.subr.mxu0 0.0
    %414 = vmatpush1.msra.mxu0 %v378
    %415 = vmatprep.subr.mxu0 0.0
    %416 = vmatpush1.msra.mxu0 0.0
    %417 = vmatprep.subr.mxu0 0.0
    %418 = vmatpush1.msra.mxu0 0.0
    %419 = vmatprep.subr.mxu0 0.0
    %420 = vmatpush1.msra.mxu0 0.0
    %421 = vmatprep.subr.mxu0 0.0
    %422 = vmatpush1.msra.mxu0 0.0
    %423 = vmatprep.subr.mxu0 0.0
    %424 = vmatpush1.msra.mxu0 0.0
    %425 = vmatprep.subr.mxu0 0.0
    %426 = vmatpush1.msra.mxu0 0.0
    %427 = vmatprep.subr.mxu0 0.0
    %428 = vmatpush1.msra.mxu0 0.0
    %429 = vmatprep.subr.mxu0 0.0
    %430 = vmatpush1.msra.mxu0 0.0
    %431 = vmatprep.subr.mxu0 0.0
    %432 = vmatpush1.msra.mxu0 0.0
    %433 = vmatprep.subr.mxu0 0.0
    %434 = vmatpush1.msra.mxu0 0.0
    %435 = vmatprep.subr.mxu0 0.0
    %436 = vmatpush1.msra.mxu0 0.0
    %437 = vmatprep.subr.mxu0 0.0
    %438 = vmatpush1.msra.mxu0 0.0
    %439 = vmatprep.subr.mxu0 0.0
    %440 = vmatpush1.msra.mxu0 0.0
    %441 = vmatprep.subr.mxu0 0.0
    %442 = vmatpush1.msra.mxu0 0.0
    %443 = vmatprep.subr.mxu0 0.0
    %444 = vmatpush1.msra.mxu0 0.0
    %445 = vmatprep.subr.mxu0 0.0
    %446 = vmatpush1.msra.mxu0 0.0
    %447 = vmatprep.mubr.f32.mxu0 0.0
    %448 = vmatmul.mubr.f32.gmra.mrb[0].mxu0 %v361
    %v449 = vpop.f32.mrb[0].mxu0
    %v450 = vadd.f32 %v382, %v449
    %v451 = vpop.f32.mrb[0].mxu0
    %452 = vdwg.mxu0
    %453 = vst [vmem:[%s8] sm:$0xff] %v450
    %v454 = vld [vmem:[%s1] sm:$0xff]
    %v455 = vmul.f32 %v450, 0.5
    %v456 = vmul.f32 %v455, 1.442695
    %v457 = vpow.pop %v456
    %459 = vrot.lane.b32.xlu0 %v457, 64
    %v460 = vpop.permute.xlu0 %459
    %v462 = vmul.f32 %v454, %v460
    %v463 = vadd.f32 %v450, %v462
    %vm464 = vcmask 130048
    %v466 = vsel %vm464, %v463, 0
    %468 = vmatprep.subr.mxu0 0.0
    %469 = vmatpush1.msra.mxu0 %v54
    %470 = vmatprep.subr.mxu0 0.0
    %471 = vmatpush1.msra.mxu0 %v55
    %472 = vmatprep.subr.mxu0 0.0
    %473 = vmatpush1.msra.mxu0 0.0
    %474 = vmatprep.subr.mxu0 0.0
    %475 = vmatpush1.msra.mxu0 0.0
    %476 = vmatprep.subr.mxu0 0.0
    %477 = vmatpush1.msra.mxu0 0.0
    %478 = vmatprep.subr.mxu0 0.0
    %479 = vmatpush1.msra.mxu0 0.0
    %480 = vmatprep.subr.mxu0 0.0
    %481 = vmatpush1.msra.mxu0 0.0
    %482 = vmatprep.subr.mxu0 0.0
    %483 = vmatpush1.msra.mxu0 0.0
    %484 = vmatprep.subr.mxu0 0.0
    %485 = vmatpush1.msra.mxu0 0.0
    %486 = vmatprep.subr.mxu0 0.0
    %487 = vmatpush1.msra.mxu0 0.0
    %488 = vmatprep.subr.mxu0 0.0
    %489 = vmatpush1.msra.mxu0 0.0
    %490 = vmatprep.subr.mxu0 0.0
    %491 = vmatpush1.msra.mxu0 0.0
    %492 = vmatprep.subr.mxu0 0.0
    %493 = vmatpush1.msra.mxu0 0.0
    %494 = vmatprep.subr.mxu0 0.0
    %495 = vmatpush1.msra.mxu0 0.0
    %496 = vmatprep.subr.mxu0 0.0
    %497 = vmatpush1.msra.mxu0 0.0
    %498 = vmatprep.subr.mxu0 0.0
    %499 = vmatpush1.msra.mxu0 0.0
    %500 = vmatprep.subr.mxu0 0.0
    %501 = vmatpush1.msra.mxu0 0.0
    %502 = vmatprep.subr.mxu0 0.0
    %503 = vmatpush1.msra.mxu0 0.0
    %504 = vmatprep.subr.mxu0 0.0
    %505 = vmatpush1.msra.mxu0 0.0
    %506 = vmatprep.subr.mxu0 0.0
    %507 = vmatpush1.msra.mxu0 0.0
    %508 = vmatprep.subr.mxu0 0.0
    %509 = vmatpush1.msra.mxu0 0.0
    %510 = vmatprep.subr.mxu0 0.0
    %511 = vmatpush1.msra.mxu0 0.0
    %512 = vmatprep.subr.mxu0 0.0
    %513 = vmatpush1.msra.mxu0 0.0
    %514 = vmatprep.subr.mxu0 0.0
    %515 = vmatpush1.msra.mxu0 0.0
    %516 = vmatprep.subr.mxu0 0.0
    %517 = vmatpush1.msra.mxu0 0.0
    %518 = vmatprep.subr.mxu0 0.0
    %519 = vmatpush1.msra.mxu0 0.0
    %520 = vmatprep.subr.mxu0 0.0
    %521 = vmatpush1.msra.mxu0 0.0
    %522 = vmatprep.subr.mxu0 0.0
    %523 = vmatpush1.msra.mxu0 0.0
    %524 = vmatprep.subr.mxu0 0.0
    %525 = vmatpush1.msra.mxu0 0.0
    %526 = vmatprep.subr.mxu0 0.0
    %527 = vmatpush1.msra.mxu0 0.0
    %528 = vmatprep.subr.mxu0 0.0
    %529 = vmatpush1.msra.mxu0 0.0
    %530 = vmatprep.subr.mxu0 0.0
    %531 = vmatpush1.msra.mxu0 0.0
    %532 = vmatprep.mubr.f32.mxu0 0.0
    %533 = vmatmul.mubr.f32.gmra.mrb[0].mxu0 %v466
    %v534 = vpop.f32.mrb[0].mxu0
    %v535 = vadd.f32 0.0, %v534
    %v536 = vpop.f32.mrb[0].mxu0
    %537 = vdwg.mxu0
    %s538 = scalar_lea.vmem %s8, 8
    %539 = vst [vmem:[%s538] sm:$0xff] %v535
    %v540 = vld [vmem:[%s4] sm:$0x1]
    %v541 = vld [vmem:[%s4 + $0x2] sm:$0x1]
    %v542 = vld [vmem:[%s5] sm:$0xff]
    %v543 = vld [vmem:[%s5 + $0x8] sm:$0xff]
    %v544 = vmul.f32 %v463, %v463
    %v545 = vsel %vm464, %v544, 0.0
    %546 = vadd.xlane.f32.xlu0 %v545
    %v547 = vpop.xlane.xlu0 %546
    %v548 = vmul.f32 %v547, 0.0625
    %v549 = vadd.f32 %v548, 1e-06
    %v550 = vrsqrt.pop %v549
    %v551 = vmul.f32 %v463, %v550
    %v552 = vlaneseq
    %v553 = vshrl.u32 %v552, 7
    %v554 = vsub.s32 0, %v553
    %v555 = vrot.slane %v540, %v554
    %v556 = vmul.f32 %v551, %v555
    %v558 = vsel %vm464, %v556, 0
    %560 = vmatprep.subr.mxu0 0.0
    %561 = vmatpush1.msra.mxu0 %v542
    %562 = vmatprep.subr.mxu0 0.0
    %563 = vmatpush1.msra.mxu0 %v543
    %564 = vmatprep.subr.mxu0 0.0
    %565 = vmatpush1.msra.mxu0 0.0
    %566 = vmatprep.subr.mxu0 0.0
    %567 = vmatpush1.msra.mxu0 0.0
    %568 = vmatprep.subr.mxu0 0.0
    %569 = vmatpush1.msra.mxu0 0.0
    %570 = vmatprep.subr.mxu0 0.0
    %571 = vmatpush1.msra.mxu0 0.0
    %572 = vmatprep.subr.mxu0 0.0
    %573 = vmatpush1.msra.mxu0 0.0
    %574 = vmatprep.subr.mxu0 0.0
    %575 = vmatpush1.msra.mxu0 0.0
    %576 = vmatprep.subr.mxu0 0.0
    %577 = vmatpush1.msra.mxu0 0.0
    %578 = vmatprep.subr.mxu0 0.0
    %579 = vmatpush1.msra.mxu0 0.0
    %580 = vmatprep.subr.mxu0 0.0
    %581 = vmatpush1.msra.mxu0 0.0
    %582 = vmatprep.subr.mxu0 0.0
    %583 = vmatpush1.msra.mxu0 0.0
    %584 = vmatprep.subr.mxu0 0.0
    %585 = vmatpush1.msra.mxu0 0.0
    %586 = vmatprep.subr.mxu0 0.0
    %587 = vmatpush1.msra.mxu0 0.0
    %588 = vmatprep.subr.mxu0 0.0
    %589 = vmatpush1.msra.mxu0 0.0
    %590 = vmatprep.subr.mxu0 0.0
    %591 = vmatpush1.msra.mxu0 0.0
    %592 = vmatprep.subr.mxu0 0.0
    %593 = vmatpush1.msra.mxu0 0.0
    %594 = vmatprep.subr.mxu0 0.0
    %595 = vmatpush1.msra.mxu0 0.0
    %596 = vmatprep.subr.mxu0 0.0
    %597 = vmatpush1.msra.mxu0 0.0
    %598 = vmatprep.subr.mxu0 0.0
    %599 = vmatpush1.msra.mxu0 0.0
    %600 = vmatprep.subr.mxu0 0.0
    %601 = vmatpush1.msra.mxu0 0.0
    %602 = vmatprep.subr.mxu0 0.0
    %603 = vmatpush1.msra.mxu0 0.0
    %604 = vmatprep.subr.mxu0 0.0
    %605 = vmatpush1.msra.mxu0 0.0
    %606 = vmatprep.subr.mxu0 0.0
    %607 = vmatpush1.msra.mxu0 0.0
    %608 = vmatprep.subr.mxu0 0.0
    %609 = vmatpush1.msra.mxu0 0.0
    %610 = vmatprep.subr.mxu0 0.0
    %611 = vmatpush1.msra.mxu0 0.0
    %612 = vmatprep.subr.mxu0 0.0
    %613 = vmatpush1.msra.mxu0 0.0
    %614 = vmatprep.subr.mxu0 0.0
    %615 = vmatpush1.msra.mxu0 0.0
    %616 = vmatprep.subr.mxu0 0.0
    %617 = vmatpush1.msra.mxu0 0.0
    %618 = vmatprep.subr.mxu0 0.0
    %619 = vmatpush1.msra.mxu0 0.0
    %620 = vmatprep.subr.mxu0 0.0
    %621 = vmatpush1.msra.mxu0 0.0
    %622 = vmatprep.subr.mxu0 0.0
    %623 = vmatpush1.msra.mxu0 0.0
    %624 = vmatprep.mubr.f32.mxu0 0.0
    %625 = vmatmul.mubr.f32.gmra.mrb[0].mxu0 %v558
    %v626 = vpop.f32.mrb[0].mxu0
    %v627 = vadd.f32 0.0, %v626
    %v628 = vpop.f32.mrb[0].mxu0
    %629 = vdwg.mxu0
    %v630 = vmul.f32 %v627, %v51
    %v632 = vsel %vm464, %v627, 0
    %634 = vmatprep.subr.mxu0 0.0
    %635 = vmatpush1.msra.mxu0 %v52
    %636 = vmatprep.subr.mxu0 0.0
    %637 = vmatpush1.msra.mxu0 %v53
    %638 = vmatprep.subr.mxu0 0.0
    %639 = vmatpush1.msra.mxu0 0.0
    %640 = vmatprep.subr.mxu0 0.0
    %641 = vmatpush1.msra.mxu0 0.0
    %642 = vmatprep.subr.mxu0 0.0
    %643 = vmatpush1.msra.mxu0 0.0
    %644 = vmatprep.subr.mxu0 0.0
    %645 = vmatpush1.msra.mxu0 0.0
    %646 = vmatprep.subr.mxu0 0.0
    %647 = vmatpush1.msra.mxu0 0.0
    %648 = vmatprep.subr.mxu0 0.0
    %649 = vmatpush1.msra.mxu0 0.0
    %650 = vmatprep.subr.mxu0 0.0
    %651 = vmatpush1.msra.mxu0 0.0
    %652 = vmatprep.subr.mxu0 0.0
    %653 = vmatpush1.msra.mxu0 0.0
    %654 = vmatprep.subr.mxu0 0.0
    %655 = vmatpush1.msra.mxu0 0.0
    %656 = vmatprep.subr.mxu0 0.0
    %657 = vmatpush1.msra.mxu0 0.0
    %658 = vmatprep.subr.mxu0 0.0
    %659 = vmatpush1.msra.mxu0 0.0
    %660 = vmatprep.subr.mxu0 0.0
    %661 = vmatpush1.msra.mxu0 0.0
    %662 = vmatprep.subr.mxu0 0.0
    %663 = vmatpush1.msra.mxu0 0.0
    %664 = vmatprep.subr.mxu0 0.0
    %665 = vmatpush1.msra.mxu0 0.0
    %666 = vmatprep.subr.mxu0 0.0
    %667 = vmatpush1.msra.mxu0 0.0
    %668 = vmatprep.subr.mxu0 0.0
    %669 = vmatpush1.msra.mxu0 0.0
    %670 = vmatprep.subr.mxu0 0.0
    %671 = vmatpush1.msra.mxu0 0.0
    %672 = vmatprep.subr.mxu0 0.0
    %673 = vmatpush1.msra.mxu0 0.0
    %674 = vmatprep.subr.mxu0 0.0
    %675 = vmatpush1.msra.mxu0 0.0
    %676 = vmatprep.subr.mxu0 0.0
    %677 = vmatpush1.msra.mxu0 0.0
    %678 = vmatprep.subr.mxu0 0.0
    %679 = vmatpush1.msra.mxu0 0.0
    %680 = vmatprep.subr.mxu0 0.0
    %681 = vmatpush1.msra.mxu0 0.0
    %682 = vmatprep.subr.mxu0 0.0
    %683 = vmatpush1.msra.mxu0 0.0
    %684 = vmatprep.subr.mxu0 0.0
    %685 = vmatpush1.msra.mxu0 0.0
    %686 = vmatprep.subr.mxu0 0.0
    %687 = vmatpush1.msra.mxu0 0.0
    %688 = vmatprep.subr.mxu0 0.0
    %689 = vmatpush1.msra.mxu0 0.0
    %690 = vmatprep.subr.mxu0 0.0
    %691 = vmatpush1.msra.mxu0 0.0
    %692 = vmatprep.subr.mxu0 0.0
    %693 = vmatpush1.msra.mxu0 0.0
    %694 = vmatprep.subr.mxu0 0.0
    %695 = vmatpush1.msra.mxu0 0.0
    %696 = vmatprep.subr.mxu0 0.0
    %697 = vmatpush1.msra.mxu0 0.0
    %698 = vmatprep.mubr.f32.mxu0 0.0
    %699 = vmatmul.mubr.f32.gmra.mrb[0].mxu0 %v632
    %v700 = vpop.f32.mrb[0].mxu0
    %v701 = vadd.f32 0.0, %v700
    %v702 = vpop.f32.mrb[0].mxu0
    %703 = vdwg.mxu0
    %705 = vrot.lane.b32.xlu0 %v51, 112
    %v706 = vpop.permute.xlu0 %705
    %v708 = vmul.f32 %v701, %v706
    %v709 = vadd.f32 %v630, %v708
    %710 = vrot.lane.b32.xlu0 %v51, 16
    %v711 = vpop.permute.xlu0 %710
    %v713 = vmul.f32 %v627, %v711
    %714 = vrot.lane.b32.xlu0 %v627, 112
    %v715 = vpop.permute.xlu0 %714
    %v716 = vsel %vm464, %v715, 0
    %718 = vmatprep.subr.mxu0 0.0
    %719 = vmatpush1.msra.mxu0 %v52
    %720 = vmatprep.subr.mxu0 0.0
    %721 = vmatpush1.msra.mxu0 %v53
    %722 = vmatprep.subr.mxu0 0.0
    %723 = vmatpush1.msra.mxu0 0.0
    %724 = vmatprep.subr.mxu0 0.0
    %725 = vmatpush1.msra.mxu0 0.0
    %726 = vmatprep.subr.mxu0 0.0
    %727 = vmatpush1.msra.mxu0 0.0
    %728 = vmatprep.subr.mxu0 0.0
    %729 = vmatpush1.msra.mxu0 0.0
    %730 = vmatprep.subr.mxu0 0.0
    %731 = vmatpush1.msra.mxu0 0.0
    %732 = vmatprep.subr.mxu0 0.0
    %733 = vmatpush1.msra.mxu0 0.0
    %734 = vmatprep.subr.mxu0 0.0
    %735 = vmatpush1.msra.mxu0 0.0
    %736 = vmatprep.subr.mxu0 0.0
    %737 = vmatpush1.msra.mxu0 0.0
    %738 = vmatprep.subr.mxu0 0.0
    %739 = vmatpush1.msra.mxu0 0.0
    %740 = vmatprep.subr.mxu0 0.0
    %741 = vmatpush1.msra.mxu0 0.0
    %742 = vmatprep.subr.mxu0 0.0
    %743 = vmatpush1.msra.mxu0 0.0
    %744 = vmatprep.subr.mxu0 0.0
    %745 = vmatpush1.msra.mxu0 0.0
    %746 = vmatprep.subr.mxu0 0.0
    %747 = vmatpush1.msra.mxu0 0.0
    %748 = vmatprep.subr.mxu0 0.0
    %749 = vmatpush1.msra.mxu0 0.0
    %750 = vmatprep.subr.mxu0 0.0
    %751 = vmatpush1.msra.mxu0 0.0
    %752 = vmatprep.subr.mxu0 0.0
    %753 = vmatpush1.msra.mxu0 0.0
    %754 = vmatprep.subr.mxu0 0.0
    %755 = vmatpush1.msra.mxu0 0.0
    %756 = vmatprep.subr.mxu0 0.0
    %757 = vmatpush1.msra.mxu0 0.0
    %758 = vmatprep.subr.mxu0 0.0
    %759 = vmatpush1.msra.mxu0 0.0
    %760 = vmatprep.subr.mxu0 0.0
    %761 = vmatpush1.msra.mxu0 0.0
    %762 = vmatprep.subr.mxu0 0.0
    %763 = vmatpush1.msra.mxu0 0.0
    %764 = vmatprep.subr.mxu0 0.0
    %765 = vmatpush1.msra.mxu0 0.0
    %766 = vmatprep.subr.mxu0 0.0
    %767 = vmatpush1.msra.mxu0 0.0
    %768 = vmatprep.subr.mxu0 0.0
    %769 = vmatpush1.msra.mxu0 0.0
    %770 = vmatprep.subr.mxu0 0.0
    %771 = vmatpush1.msra.mxu0 0.0
    %772 = vmatprep.subr.mxu0 0.0
    %773 = vmatpush1.msra.mxu0 0.0
    %774 = vmatprep.subr.mxu0 0.0
    %775 = vmatpush1.msra.mxu0 0.0
    %776 = vmatprep.subr.mxu0 0.0
    %777 = vmatpush1.msra.mxu0 0.0
    %778 = vmatprep.subr.mxu0 0.0
    %779 = vmatpush1.msra.mxu0 0.0
    %780 = vmatprep.subr.mxu0 0.0
    %781 = vmatpush1.msra.mxu0 0.0
    %782 = vmatprep.mubr.f32.mxu0 0.0
    %783 = vmatmul.mubr.f32.gmra.mrb[0].mxu0 %v716
    %v784 = vpop.f32.mrb[0].mxu0
    %v785 = vadd.f32 0.0, %v784
    %v786 = vpop.f32.mrb[0].mxu0
    %787 = vdwg.mxu0
    %v788 = vmul.f32 %v785, %v706
    %790 = vrot.lane.b32.xlu0 %v788, 16
    %v791 = vpop.permute.xlu0 %790
    %v793 = vadd.f32 %v713, %v791
    %795 = vrot.lane.b32.xlu0 %v793, 112
    %v796 = vpop.permute.xlu0 %795
    %vm797 = vcmask 64512
    %v799 = vsel %vm797, %v709, 0
    %v801 = vsel %vm797, %v796, 0
    %803 = vmatprep.subr.mxu0 0.0
    %804 = vmatpush1.xpose.msra.mxu0 %v801
    %805 = vmatprep.subr.mxu0 0.0
    %806 = vmatpush1.xpose.msra.mxu0 0.0
    %807 = vmatprep.subr.mxu0 0.0
    %808 = vmatpush1.xpose.msra.mxu0 0.0
    %809 = vmatprep.subr.mxu0 0.0
    %810 = vmatpush1.xpose.msra.mxu0 0.0
    %811 = vmatprep.subr.mxu0 0.0
    %812 = vmatpush1.xpose.msra.mxu0 0.0
    %813 = vmatprep.subr.mxu0 0.0
    %814 = vmatpush1.xpose.msra.mxu0 0.0
    %815 = vmatprep.subr.mxu0 0.0
    %816 = vmatpush1.xpose.msra.mxu0 0.0
    %817 = vmatprep.subr.mxu0 0.0
    %818 = vmatpush1.xpose.msra.mxu0 0.0
    %819 = vmatprep.subr.mxu0 0.0
    %820 = vmatpush1.xpose.msra.mxu0 0.0
    %821 = vmatprep.subr.mxu0 0.0
    %822 = vmatpush1.xpose.msra.mxu0 0.0
    %823 = vmatprep.subr.mxu0 0.0
    %824 = vmatpush1.xpose.msra.mxu0 0.0
    %825 = vmatprep.subr.mxu0 0.0
    %826 = vmatpush1.xpose.msra.mxu0 0.0
    %827 = vmatprep.subr.mxu0 0.0
    %828 = vmatpush1.xpose.msra.mxu0 0.0
    %829 = vmatprep.subr.mxu0 0.0
    %830 = vmatpush1.xpose.msra.mxu0 0.0
    %831 = vmatprep.subr.mxu0 0.0
    %832 = vmatpush1.xpose.msra.mxu0 0.0
    %833 = vmatprep.subr.mxu0 0.0
    %834 = vmatpush1.xpose.msra.mxu0 0.0
    %835 = vmatprep.subr.mxu0 0.0
    %836 = vmatpush1.xpose.msra.mxu0 0.0
    %837 = vmatprep.subr.mxu0 0.0
    %838 = vmatpush1.xpose.msra.mxu0 0.0
    %839 = vmatprep.subr.mxu0 0.0
    %840 = vmatpush1.xpose.msra.mxu0 0.0
    %841 = vmatprep.subr.mxu0 0.0
    %842 = vmatpush1.xpose.msra.mxu0 0.0
    %843 = vmatprep.subr.mxu0 0.0
    %844 = vmatpush1.xpose.msra.mxu0 0.0
    %845 = vmatprep.subr.mxu0 0.0
    %846 = vmatpush1.xpose.msra.mxu0 0.0
    %847 = vmatprep.subr.mxu0 0.0
    %848 = vmatpush1.xpose.msra.mxu0 0.0
    %849 = vmatprep.subr.mxu0 0.0
    %850 = vmatpush1.xpose.msra.mxu0 0.0
    %851 = vmatprep.subr.mxu0 0.0
    %852 = vmatpush1.xpose.msra.mxu0 0.0
    %853 = vmatprep.subr.mxu0 0.0
    %854 = vmatpush1.xpose.msra.mxu0 0.0
    %855 = vmatprep.subr.mxu0 0.0
    %856 = vmatpush1.xpose.msra.mxu0 0.0
    %857 = vmatprep.subr.mxu0 0.0
    %858 = vmatpush1.xpose.msra.mxu0 0.0
    %859 = vmatprep.subr.mxu0 0.0
    %860 = vmatpush1.xpose.msra.mxu0 0.0
    %861 = vmatprep.subr.mxu0 0.0
    %862 = vmatpush1.xpose.msra.mxu0 0.0
    %863 = vmatprep.subr.mxu0 0.0
    %864 = vmatpush1.xpose.msra.mxu0 0.0
    %865 = vmatprep.subr.mxu0 0.0
    %866 = vmatpush1.xpose.msra.mxu0 0.0
    %867 = vmatprep.mubr.f32.mxu0 0.0
    %868 = vmatmul.mubr.f32.gmra.mrb[0].mxu0 %v799
    %v869 = vpop.f32.mrb[0].mxu0
    %v870 = vadd.f32 0.0, %v869
    %v871 = vpop.f32.mrb[0].mxu0
    %872 = vdwg.mxu0
    %v873 = vmul.f32 %v870, 0.35355338
    %874 = vrot.lane.b32.xlu0 %v51, 96
    %v875 = vpop.permute.xlu0 %874
    %v877 = vadd.f32 %v873, %v875
    %v878 = vsel %vm797, %v877, -inf
    %879 = vmax.xlane.f32.xlu0 %v878
    %v880 = vpop.xlane.xlu0 %879
    %v881 = vsub.f32 %v877, %v880
    %v882 = vmul.f32 %v881, 1.442695
    %v883 = vpow.pop %v882
    %v884 = vsel %vm797, %v883, 0.0
    %885 = vadd.xlane.f32.xlu0 %v884
    %v886 = vpop.xlane.xlu0 %885
    %v887 = vrcp.pop %v886
    %v888 = vmul.f32 %v883, %v887
    %v890 = vsel %vm797, %v888, 0
    %892 = vmatprep.subr.mxu0 0.0
    %893 = vmatpush1.msra.mxu0 %v54
    %894 = vmatprep.subr.mxu0 0.0
    %895 = vmatpush1.msra.mxu0 0.0
    %896 = vmatprep.subr.mxu0 0.0
    %897 = vmatpush1.msra.mxu0 0.0
    %898 = vmatprep.subr.mxu0 0.0
    %899 = vmatpush1.msra.mxu0 0.0
    %900 = vmatprep.subr.mxu0 0.0
    %901 = vmatpush1.msra.mxu0 0.0
    %902 = vmatprep.subr.mxu0 0.0
    %903 = vmatpush1.msra.mxu0 0.0
    %904 = vmatprep.subr.mxu0 0.0
    %905 = vmatpush1.msra.mxu0 0.0
    %906 = vmatprep.subr.mxu0 0.0
    %907 = vmatpush1.msra.mxu0 0.0
    %908 = vmatprep.subr.mxu0 0.0
    %909 = vmatpush1.msra.mxu0 0.0
    %910 = vmatprep.subr.mxu0 0.0
    %911 = vmatpush1.msra.mxu0 0.0
    %912 = vmatprep.subr.mxu0 0.0
    %913 = vmatpush1.msra.mxu0 0.0
    %914 = vmatprep.subr.mxu0 0.0
    %915 = vmatpush1.msra.mxu0 0.0
    %916 = vmatprep.subr.mxu0 0.0
    %917 = vmatpush1.msra.mxu0 0.0
    %918 = vmatprep.subr.mxu0 0.0
    %919 = vmatpush1.msra.mxu0 0.0
    %920 = vmatprep.subr.mxu0 0.0
    %921 = vmatpush1.msra.mxu0 0.0
    %922 = vmatprep.subr.mxu0 0.0
    %923 = vmatpush1.msra.mxu0 0.0
    %924 = vmatprep.subr.mxu0 0.0
    %925 = vmatpush1.msra.mxu0 0.0
    %926 = vmatprep.subr.mxu0 0.0
    %927 = vmatpush1.msra.mxu0 0.0
    %928 = vmatprep.subr.mxu0 0.0
    %929 = vmatpush1.msra.mxu0 0.0
    %930 = vmatprep.subr.mxu0 0.0
    %931 = vmatpush1.msra.mxu0 0.0
    %932 = vmatprep.subr.mxu0 0.0
    %933 = vmatpush1.msra.mxu0 0.0
    %934 = vmatprep.subr.mxu0 0.0
    %935 = vmatpush1.msra.mxu0 0.0
    %936 = vmatprep.subr.mxu0 0.0
    %937 = vmatpush1.msra.mxu0 0.0
    %938 = vmatprep.subr.mxu0 0.0
    %939 = vmatpush1.msra.mxu0 0.0
    %940 = vmatprep.subr.mxu0 0.0
    %941 = vmatpush1.msra.mxu0 0.0
    %942 = vmatprep.subr.mxu0 0.0
    %943 = vmatpush1.msra.mxu0 0.0
    %944 = vmatprep.subr.mxu0 0.0
    %945 = vmatpush1.msra.mxu0 0.0
    %946 = vmatprep.subr.mxu0 0.0
    %947 = vmatpush1.msra.mxu0 0.0
    %948 = vmatprep.subr.mxu0 0.0
    %949 = vmatpush1.msra.mxu0 0.0
    %950 = vmatprep.subr.mxu0 0.0
    %951 = vmatpush1.msra.mxu0 0.0
    %952 = vmatprep.subr.mxu0 0.0
    %953 = vmatpush1.msra.mxu0 0.0
    %954 = vmatprep.subr.mxu0 0.0
    %955 = vmatpush1.msra.mxu0 0.0
    %956 = vmatprep.mubr.f32.mxu0 0.0
    %957 = vmatmul.mubr.f32.gmra.mrb[0].mxu0 %v890
    %v958 = vpop.f32.mrb[0].mxu0
    %v959 = vadd.f32 0.0, %v958
    %v960 = vpop.f32.mrb[0].mxu0
    %961 = vdwg.mxu0
    %s962 = scalar_lea.vmem %s8, 32
    %963 = vst [vmem:[%s962] sm:$0xff] %v959
    %964 = vrot.lane.b32.xlu0 %v627, 96
    %v965 = vpop.permute.xlu0 %964
    %967 = vmatprep.subr.mxu0 0.0
    %968 = vmatpush1.msra.mxu0 %v965
    %969 = vmatprep.subr.mxu0 0.0
    %970 = vmatpush1.msra.mxu0 0.0
    %971 = vmatprep.subr.mxu0 0.0
    %972 = vmatpush1.msra.mxu0 0.0
    %973 = vmatprep.subr.mxu0 0.0
    %974 = vmatpush1.msra.mxu0 0.0
    %975 = vmatprep.subr.mxu0 0.0
    %976 = vmatpush1.msra.mxu0 0.0
    %977 = vmatprep.subr.mxu0 0.0
    %978 = vmatpush1.msra.mxu0 0.0
    %979 = vmatprep.subr.mxu0 0.0
    %980 = vmatpush1.msra.mxu0 0.0
    %981 = vmatprep.subr.mxu0 0.0
    %982 = vmatpush1.msra.mxu0 0.0
    %983 = vmatprep.subr.mxu0 0.0
    %984 = vmatpush1.msra.mxu0 0.0
    %985 = vmatprep.subr.mxu0 0.0
    %986 = vmatpush1.msra.mxu0 0.0
    %987 = vmatprep.subr.mxu0 0.0
    %988 = vmatpush1.msra.mxu0 0.0
    %989 = vmatprep.subr.mxu0 0.0
    %990 = vmatpush1.msra.mxu0 0.0
    %991 = vmatprep.subr.mxu0 0.0
    %992 = vmatpush1.msra.mxu0 0.0
    %993 = vmatprep.subr.mxu0 0.0
    %994 = vmatpush1.msra.mxu0 0.0
    %995 = vmatprep.subr.mxu0 0.0
    %996 = vmatpush1.msra.mxu0 0.0
    %997 = vmatprep.subr.mxu0 0.0
    %998 = vmatpush1.msra.mxu0 0.0
    %999 = vmatprep.subr.mxu0 0.0
    %1000 = vmatpush1.msra.mxu0 0.0
    %1001 = vmatprep.subr.mxu0 0.0
    %1002 = vmatpush1.msra.mxu0 0.0
    %1003 = vmatprep.subr.mxu0 0.0
    %1004 = vmatpush1.msra.mxu0 0.0
    %1005 = vmatprep.subr.mxu0 0.0
    %1006 = vmatpush1.msra.mxu0 0.0
    %1007 = vmatprep.subr.mxu0 0.0
    %1008 = vmatpush1.msra.mxu0 0.0
    %1009 = vmatprep.subr.mxu0 0.0
    %1010 = vmatpush1.msra.mxu0 0.0
    %1011 = vmatprep.subr.mxu0 0.0
    %1012 = vmatpush1.msra.mxu0 0.0
    %1013 = vmatprep.subr.mxu0 0.0
    %1014 = vmatpush1.msra.mxu0 0.0
    %1015 = vmatprep.subr.mxu0 0.0
    %1016 = vmatpush1.msra.mxu0 0.0
    %1017 = vmatprep.subr.mxu0 0.0
    %1018 = vmatpush1.msra.mxu0 0.0
    %1019 = vmatprep.subr.mxu0 0.0
    %1020 = vmatpush1.msra.mxu0 0.0
    %1021 = vmatprep.subr.mxu0 0.0
    %1022 = vmatpush1.msra.mxu0 0.0
    %1023 = vmatprep.subr.mxu0 0.0
    %1024 = vmatpush1.msra.mxu0 0.0
    %1025 = vmatprep.subr.mxu0 0.0
    %1026 = vmatpush1.msra.mxu0 0.0
    %1027 = vmatprep.subr.mxu0 0.0
    %1028 = vmatpush1.msra.mxu0 0.0
    %1029 = vmatprep.subr.mxu0 0.0
    %1030 = vmatpush1.msra.mxu0 0.0
    %1031 = vmatprep.mubr.f32.mxu0 0.0
    %1032 = vmatmul.mubr.f32.gmra.mrb[0].mxu0 %v890
    %v1033 = vpop.f32.mrb[0].mxu0
    %v1034 = vadd.f32 0.0, %v1033
    %v1035 = vpop.f32.mrb[0].mxu0
    %1036 = vdwg.mxu0
    %1037 = vrot.lane.b32.xlu0 %v709, 120
    %v1038 = vpop.permute.xlu0 %1037
    %1039 = vrot.lane.b32.xlu0 %v793, 104
    %v1040 = vpop.permute.xlu0 %1039
    %v1041 = vsel %vm797, %v1038, 0
    %v1043 = vsel %vm797, %v1040, 0
    %1045 = vmatprep.subr.mxu0 0.0
    %1046 = vmatpush1.xpose.msra.mxu0 %v1043
    %1047 = vmatprep.subr.mxu0 0.0
    %1048 = vmatpush1.xpose.msra.mxu0 0.0
    %1049 = vmatprep.subr.mxu0 0.0
    %1050 = vmatpush1.xpose.msra.mxu0 0.0
    %1051 = vmatprep.subr.mxu0 0.0
    %1052 = vmatpush1.xpose.msra.mxu0 0.0
    %1053 = vmatprep.subr.mxu0 0.0
    %1054 = vmatpush1.xpose.msra.mxu0 0.0
    %1055 = vmatprep.subr.mxu0 0.0
    %1056 = vmatpush1.xpose.msra.mxu0 0.0
    %1057 = vmatprep.subr.mxu0 0.0
    %1058 = vmatpush1.xpose.msra.mxu0 0.0
    %1059 = vmatprep.subr.mxu0 0.0
    %1060 = vmatpush1.xpose.msra.mxu0 0.0
    %1061 = vmatprep.subr.mxu0 0.0
    %1062 = vmatpush1.xpose.msra.mxu0 0.0
    %1063 = vmatprep.subr.mxu0 0.0
    %1064 = vmatpush1.xpose.msra.mxu0 0.0
    %1065 = vmatprep.subr.mxu0 0.0
    %1066 = vmatpush1.xpose.msra.mxu0 0.0
    %1067 = vmatprep.subr.mxu0 0.0
    %1068 = vmatpush1.xpose.msra.mxu0 0.0
    %1069 = vmatprep.subr.mxu0 0.0
    %1070 = vmatpush1.xpose.msra.mxu0 0.0
    %1071 = vmatprep.subr.mxu0 0.0
    %1072 = vmatpush1.xpose.msra.mxu0 0.0
    %1073 = vmatprep.subr.mxu0 0.0
    %1074 = vmatpush1.xpose.msra.mxu0 0.0
    %1075 = vmatprep.subr.mxu0 0.0
    %1076 = vmatpush1.xpose.msra.mxu0 0.0
    %1077 = vmatprep.subr.mxu0 0.0
    %1078 = vmatpush1.xpose.msra.mxu0 0.0
    %1079 = vmatprep.subr.mxu0 0.0
    %1080 = vmatpush1.xpose.msra.mxu0 0.0
    %1081 = vmatprep.subr.mxu0 0.0
    %1082 = vmatpush1.xpose.msra.mxu0 0.0
    %1083 = vmatprep.subr.mxu0 0.0
    %1084 = vmatpush1.xpose.msra.mxu0 0.0
    %1085 = vmatprep.subr.mxu0 0.0
    %1086 = vmatpush1.xpose.msra.mxu0 0.0
    %1087 = vmatprep.subr.mxu0 0.0
    %1088 = vmatpush1.xpose.msra.mxu0 0.0
    %1089 = vmatprep.subr.mxu0 0.0
    %1090 = vmatpush1.xpose.msra.mxu0 0.0
    %1091 = vmatprep.subr.mxu0 0.0
    %1092 = vmatpush1.xpose.msra.mxu0 0.0
    %1093 = vmatprep.subr.mxu0 0.0
    %1094 = vmatpush1.xpose.msra.mxu0 0.0
    %1095 = vmatprep.subr.mxu0 0.0
    %1096 = vmatpush1.xpose.msra.mxu0 0.0
    %1097 = vmatprep.subr.mxu0 0.0
    %1098 = vmatpush1.xpose.msra.mxu0 0.0
    %1099 = vmatprep.subr.mxu0 0.0
    %1100 = vmatpush1.xpose.msra.mxu0 0.0
    %1101 = vmatprep.subr.mxu0 0.0
    %1102 = vmatpush1.xpose.msra.mxu0 0.0
    %1103 = vmatprep.subr.mxu0 0.0
    %1104 = vmatpush1.xpose.msra.mxu0 0.0
    %1105 = vmatprep.subr.mxu0 0.0
    %1106 = vmatpush1.xpose.msra.mxu0 0.0
    %1107 = vmatprep.subr.mxu0 0.0
    %1108 = vmatpush1.xpose.msra.mxu0 0.0
    %1109 = vmatprep.mubr.f32.mxu0 0.0
    %1110 = vmatmul.mubr.f32.gmra.mrb[0].mxu0 %v1041
    %v1111 = vpop.f32.mrb[0].mxu0
    %v1112 = vadd.f32 0.0, %v1111
    %v1113 = vpop.f32.mrb[0].mxu0
    %1114 = vdwg.mxu0
    %v1115 = vmul.f32 %v1112, 0.35355338
    %v1116 = vadd.f32 %v1115, %v875
    %v1117 = vsel %vm797, %v1116, -inf
    %1118 = vmax.xlane.f32.xlu0 %v1117
    %v1119 = vpop.xlane.xlu0 %1118
    %v1120 = vsub.f32 %v1116, %v1119
    %v1121 = vmul.f32 %v1120, 1.442695
    %v1122 = vpow.pop %v1121
    %v1123 = vsel %vm797, %v1122, 0.0
    %1124 = vadd.xlane.f32.xlu0 %v1123
    %v1125 = vpop.xlane.xlu0 %1124
    %v1126 = vrcp.pop %v1125
    %v1127 = vmul.f32 %v1122, %v1126
    %v1129 = vsel %vm797, %v1127, 0
    %1131 = vmatprep.subr.mxu0 0.0
    %1132 = vmatpush1.msra.mxu0 %v54
    %1133 = vmatprep.subr.mxu0 0.0
    %1134 = vmatpush1.msra.mxu0 0.0
    %1135 = vmatprep.subr.mxu0 0.0
    %1136 = vmatpush1.msra.mxu0 0.0
    %1137 = vmatprep.subr.mxu0 0.0
    %1138 = vmatpush1.msra.mxu0 0.0
    %1139 = vmatprep.subr.mxu0 0.0
    %1140 = vmatpush1.msra.mxu0 0.0
    %1141 = vmatprep.subr.mxu0 0.0
    %1142 = vmatpush1.msra.mxu0 0.0
    %1143 = vmatprep.subr.mxu0 0.0
    %1144 = vmatpush1.msra.mxu0 0.0
    %1145 = vmatprep.subr.mxu0 0.0
    %1146 = vmatpush1.msra.mxu0 0.0
    %1147 = vmatprep.subr.mxu0 0.0
    %1148 = vmatpush1.msra.mxu0 0.0
    %1149 = vmatprep.subr.mxu0 0.0
    %1150 = vmatpush1.msra.mxu0 0.0
    %1151 = vmatprep.subr.mxu0 0.0
    %1152 = vmatpush1.msra.mxu0 0.0
    %1153 = vmatprep.subr.mxu0 0.0
    %1154 = vmatpush1.msra.mxu0 0.0
    %1155 = vmatprep.subr.mxu0 0.0
    %1156 = vmatpush1.msra.mxu0 0.0
    %1157 = vmatprep.subr.mxu0 0.0
    %1158 = vmatpush1.msra.mxu0 0.0
    %1159 = vmatprep.subr.mxu0 0.0
    %1160 = vmatpush1.msra.mxu0 0.0
    %1161 = vmatprep.subr.mxu0 0.0
    %1162 = vmatpush1.msra.mxu0 0.0
    %1163 = vmatprep.subr.mxu0 0.0
    %1164 = vmatpush1.msra.mxu0 0.0
    %1165 = vmatprep.subr.mxu0 0.0
    %1166 = vmatpush1.msra.mxu0 0.0
    %1167 = vmatprep.subr.mxu0 0.0
    %1168 = vmatpush1.msra.mxu0 0.0
    %1169 = vmatprep.subr.mxu0 0.0
    %1170 = vmatpush1.msra.mxu0 0.0
    %1171 = vmatprep.subr.mxu0 0.0
    %1172 = vmatpush1.msra.mxu0 0.0
    %1173 = vmatprep.subr.mxu0 0.0
    %1174 = vmatpush1.msra.mxu0 0.0
    %1175 = vmatprep.subr.mxu0 0.0
    %1176 = vmatpush1.msra.mxu0 0.0
    %1177 = vmatprep.subr.mxu0 0.0
    %1178 = vmatpush1.msra.mxu0 0.0
    %1179 = vmatprep.subr.mxu0 0.0
    %1180 = vmatpush1.msra.mxu0 0.0
    %1181 = vmatprep.subr.mxu0 0.0
    %1182 = vmatpush1.msra.mxu0 0.0
    %1183 = vmatprep.subr.mxu0 0.0
    %1184 = vmatpush1.msra.mxu0 0.0
    %1185 = vmatprep.subr.mxu0 0.0
    %1186 = vmatpush1.msra.mxu0 0.0
    %1187 = vmatprep.subr.mxu0 0.0
    %1188 = vmatpush1.msra.mxu0 0.0
    %1189 = vmatprep.subr.mxu0 0.0
    %1190 = vmatpush1.msra.mxu0 0.0
    %1191 = vmatprep.subr.mxu0 0.0
    %1192 = vmatpush1.msra.mxu0 0.0
    %1193 = vmatprep.subr.mxu0 0.0
    %1194 = vmatpush1.msra.mxu0 0.0
    %1195 = vmatprep.mubr.f32.mxu0 0.0
    %1196 = vmatmul.mubr.f32.gmra.mrb[0].mxu0 %v1129
    %v1197 = vpop.f32.mrb[0].mxu0
    %v1198 = vadd.f32 0.0, %v1197
    %v1199 = vpop.f32.mrb[0].mxu0
    %1200 = vdwg.mxu0
    %s1201 = scalar_lea.vmem %s8, 40
    %1202 = vst [vmem:[%s1201] sm:$0xff] %v1198
    %1203 = vrot.lane.b32.xlu0 %v627, 88
    %v1204 = vpop.permute.xlu0 %1203
    %1206 = vmatprep.subr.mxu0 0.0
    %1207 = vmatpush1.msra.mxu0 %v1204
    %1208 = vmatprep.subr.mxu0 0.0
    %1209 = vmatpush1.msra.mxu0 0.0
    %1210 = vmatprep.subr.mxu0 0.0
    %1211 = vmatpush1.msra.mxu0 0.0
    %1212 = vmatprep.subr.mxu0 0.0
    %1213 = vmatpush1.msra.mxu0 0.0
    %1214 = vmatprep.subr.mxu0 0.0
    %1215 = vmatpush1.msra.mxu0 0.0
    %1216 = vmatprep.subr.mxu0 0.0
    %1217 = vmatpush1.msra.mxu0 0.0
    %1218 = vmatprep.subr.mxu0 0.0
    %1219 = vmatpush1.msra.mxu0 0.0
    %1220 = vmatprep.subr.mxu0 0.0
    %1221 = vmatpush1.msra.mxu0 0.0
    %1222 = vmatprep.subr.mxu0 0.0
    %1223 = vmatpush1.msra.mxu0 0.0
    %1224 = vmatprep.subr.mxu0 0.0
    %1225 = vmatpush1.msra.mxu0 0.0
    %1226 = vmatprep.subr.mxu0 0.0
    %1227 = vmatpush1.msra.mxu0 0.0
    %1228 = vmatprep.subr.mxu0 0.0
    %1229 = vmatpush1.msra.mxu0 0.0
    %1230 = vmatprep.subr.mxu0 0.0
    %1231 = vmatpush1.msra.mxu0 0.0
    %1232 = vmatprep.subr.mxu0 0.0
    %1233 = vmatpush1.msra.mxu0 0.0
    %1234 = vmatprep.subr.mxu0 0.0
    %1235 = vmatpush1.msra.mxu0 0.0
    %1236 = vmatprep.subr.mxu0 0.0
    %1237 = vmatpush1.msra.mxu0 0.0
    %1238 = vmatprep.subr.mxu0 0.0
    %1239 = vmatpush1.msra.mxu0 0.0
    %1240 = vmatprep.subr.mxu0 0.0
    %1241 = vmatpush1.msra.mxu0 0.0
    %1242 = vmatprep.subr.mxu0 0.0
    %1243 = vmatpush1.msra.mxu0 0.0
    %1244 = vmatprep.subr.mxu0 0.0
    %1245 = vmatpush1.msra.mxu0 0.0
    %1246 = vmatprep.subr.mxu0 0.0
    %1247 = vmatpush1.msra.mxu0 0.0
    %1248 = vmatprep.subr.mxu0 0.0
    %1249 = vmatpush1.msra.mxu0 0.0
    %1250 = vmatprep.subr.mxu0 0.0
    %1251 = vmatpush1.msra.mxu0 0.0
    %1252 = vmatprep.subr.mxu0 0.0
    %1253 = vmatpush1.msra.mxu0 0.0
    %1254 = vmatprep.subr.mxu0 0.0
    %1255 = vmatpush1.msra.mxu0 0.0
    %1256 = vmatprep.subr.mxu0 0.0
    %1257 = vmatpush1.msra.mxu0 0.0
    %1258 = vmatprep.subr.mxu0 0.0
    %1259 = vmatpush1.msra.mxu0 0.0
    %1260 = vmatprep.subr.mxu0 0.0
    %1261 = vmatpush1.msra.mxu0 0.0
    %1262 = vmatprep.subr.mxu0 0.0
    %1263 = vmatpush1.msra.mxu0 0.0
    %1264 = vmatprep.subr.mxu0 0.0
    %1265 = vmatpush1.msra.mxu0 0.0
    %1266 = vmatprep.subr.mxu0 0.0
    %1267 = vmatpush1.msra.mxu0 0.0
    %1268 = vmatprep.subr.mxu0 0.0
    %1269 = vmatpush1.msra.mxu0 0.0
    %1270 = vmatprep.mubr.f32.mxu0 0.0
    %1271 = vmatmul.mubr.f32.gmra.mrb[0].mxu0 %v1129
    %v1272 = vpop.f32.mrb[0].mxu0
    %v1273 = vadd.f32 0.0, %v1272
    %v1274 = vpop.f32.mrb[0].mxu0
    %1275 = vdwg.mxu0
    %1277 = vrot.lane.b32.xlu0 %v543, 80
    %v1278 = vpop.permute.xlu0 %1277
    %v1281 = vsel %vm797, %v1273, 0
    %1283 = vmatprep.subr.mxu0 0.0
    %1284 = vmatpush1.msra.mxu0 %v1278
    %1285 = vmatprep.subr.mxu0 0.0
    %1286 = vmatpush1.msra.mxu0 0.0
    %1287 = vmatprep.subr.mxu0 0.0
    %1288 = vmatpush1.msra.mxu0 0.0
    %1289 = vmatprep.subr.mxu0 0.0
    %1290 = vmatpush1.msra.mxu0 0.0
    %1291 = vmatprep.subr.mxu0 0.0
    %1292 = vmatpush1.msra.mxu0 0.0
    %1293 = vmatprep.subr.mxu0 0.0
    %1294 = vmatpush1.msra.mxu0 0.0
    %1295 = vmatprep.subr.mxu0 0.0
    %1296 = vmatpush1.msra.mxu0 0.0
    %1297 = vmatprep.subr.mxu0 0.0
    %1298 = vmatpush1.msra.mxu0 0.0
    %1299 = vmatprep.subr.mxu0 0.0
    %1300 = vmatpush1.msra.mxu0 0.0
    %1301 = vmatprep.subr.mxu0 0.0
    %1302 = vmatpush1.msra.mxu0 0.0
    %1303 = vmatprep.subr.mxu0 0.0
    %1304 = vmatpush1.msra.mxu0 0.0
    %1305 = vmatprep.subr.mxu0 0.0
    %1306 = vmatpush1.msra.mxu0 0.0
    %1307 = vmatprep.subr.mxu0 0.0
    %1308 = vmatpush1.msra.mxu0 0.0
    %1309 = vmatprep.subr.mxu0 0.0
    %1310 = vmatpush1.msra.mxu0 0.0
    %1311 = vmatprep.subr.mxu0 0.0
    %1312 = vmatpush1.msra.mxu0 0.0
    %1313 = vmatprep.subr.mxu0 0.0
    %1314 = vmatpush1.msra.mxu0 0.0
    %1315 = vmatprep.subr.mxu0 0.0
    %1316 = vmatpush1.msra.mxu0 0.0
    %1317 = vmatprep.subr.mxu0 0.0
    %1318 = vmatpush1.msra.mxu0 0.0
    %1319 = vmatprep.subr.mxu0 0.0
    %1320 = vmatpush1.msra.mxu0 0.0
    %1321 = vmatprep.subr.mxu0 0.0
    %1322 = vmatpush1.msra.mxu0 0.0
    %1323 = vmatprep.subr.mxu0 0.0
    %1324 = vmatpush1.msra.mxu0 0.0
    %1325 = vmatprep.subr.mxu0 0.0
    %1326 = vmatpush1.msra.mxu0 0.0
    %1327 = vmatprep.subr.mxu0 0.0
    %1328 = vmatpush1.msra.mxu0 0.0
    %1329 = vmatprep.subr.mxu0 0.0
    %1330 = vmatpush1.msra.mxu0 0.0
    %1331 = vmatprep.subr.mxu0 0.0
    %1332 = vmatpush1.msra.mxu0 0.0
    %1333 = vmatprep.subr.mxu0 0.0
    %1334 = vmatpush1.msra.mxu0 0.0
    %1335 = vmatprep.subr.mxu0 0.0
    %1336 = vmatpush1.msra.mxu0 0.0
    %1337 = vmatprep.subr.mxu0 0.0
    %1338 = vmatpush1.msra.mxu0 0.0
    %1339 = vmatprep.subr.mxu0 0.0
    %1340 = vmatpush1.msra.mxu0 0.0
    %1341 = vmatprep.subr.mxu0 0.0
    %1342 = vmatpush1.msra.mxu0 0.0
    %1343 = vmatprep.subr.mxu0 0.0
    %1344 = vmatpush1.msra.mxu0 0.0
    %1345 = vmatprep.subr.mxu0 0.0
    %1346 = vmatpush1.msra.mxu0 0.0
    %1347 = vmatprep.mubr.f32.mxu0 0.0
    %1348 = vmatmul.mubr.f32.gmra.mrb[0].mxu0 %v1281
    %v1349 = vpop.f32.mrb[0].mxu0
    %v1350 = vadd.f32 0.0, %v1349
    %v1351 = vpop.f32.mrb[0].mxu0
    %1352 = vdwg.mxu0
    %1354 = vrot.lane.b32.xlu0 %v542, 80
    %v1355 = vpop.permute.xlu0 %1354
    %v1358 = vsel %vm797, %v1034, 0
    %1360 = vmatprep.subr.mxu0 0.0
    %1361 = vmatpush1.msra.mxu0 %v1355
    %1362 = vmatprep.subr.mxu0 0.0
    %1363 = vmatpush1.msra.mxu0 0.0
    %1364 = vmatprep.subr.mxu0 0.0
    %1365 = vmatpush1.msra.mxu0 0.0
    %1366 = vmatprep.subr.mxu0 0.0
    %1367 = vmatpush1.msra.mxu0 0.0
    %1368 = vmatprep.subr.mxu0 0.0
    %1369 = vmatpush1.msra.mxu0 0.0
    %1370 = vmatprep.subr.mxu0 0.0
    %1371 = vmatpush1.msra.mxu0 0.0
    %1372 = vmatprep.subr.mxu0 0.0
    %1373 = vmatpush1.msra.mxu0 0.0
    %1374 = vmatprep.subr.mxu0 0.0
    %1375 = vmatpush1.msra.mxu0 0.0
    %1376 = vmatprep.subr.mxu0 0.0
    %1377 = vmatpush1.msra.mxu0 0.0
    %1378 = vmatprep.subr.mxu0 0.0
    %1379 = vmatpush1.msra.mxu0 0.0
    %1380 = vmatprep.subr.mxu0 0.0
    %1381 = vmatpush1.msra.mxu0 0.0
    %1382 = vmatprep.subr.mxu0 0.0
    %1383 = vmatpush1.msra.mxu0 0.0
    %1384 = vmatprep.subr.mxu0 0.0
    %1385 = vmatpush1.msra.mxu0 0.0
    %1386 = vmatprep.subr.mxu0 0.0
    %1387 = vmatpush1.msra.mxu0 0.0
    %1388 = vmatprep.subr.mxu0 0.0
    %1389 = vmatpush1.msra.mxu0 0.0
    %1390 = vmatprep.subr.mxu0 0.0
    %1391 = vmatpush1.msra.mxu0 0.0
    %1392 = vmatprep.subr.mxu0 0.0
    %1393 = vmatpush1.msra.mxu0 0.0
    %1394 = vmatprep.subr.mxu0 0.0
    %1395 = vmatpush1.msra.mxu0 0.0
    %1396 = vmatprep.subr.mxu0 0.0
    %1397 = vmatpush1.msra.mxu0 0.0
    %1398 = vmatprep.subr.mxu0 0.0
    %1399 = vmatpush1.msra.mxu0 0.0
    %1400 = vmatprep.subr.mxu0 0.0
    %1401 = vmatpush1.msra.mxu0 0.0
    %1402 = vmatprep.subr.mxu0 0.0
    %1403 = vmatpush1.msra.mxu0 0.0
    %1404 = vmatprep.subr.mxu0 0.0
    %1405 = vmatpush1.msra.mxu0 0.0
    %1406 = vmatprep.subr.mxu0 0.0
    %1407 = vmatpush1.msra.mxu0 0.0
    %1408 = vmatprep.subr.mxu0 0.0
    %1409 = vmatpush1.msra.mxu0 0.0
    %1410 = vmatprep.subr.mxu0 0.0
    %1411 = vmatpush1.msra.mxu0 0.0
    %1412 = vmatprep.subr.mxu0 0.0
    %1413 = vmatpush1.msra.mxu0 0.0
    %1414 = vmatprep.subr.mxu0 0.0
    %1415 = vmatpush1.msra.mxu0 0.0
    %1416 = vmatprep.subr.mxu0 0.0
    %1417 = vmatpush1.msra.mxu0 0.0
    %1418 = vmatprep.subr.mxu0 0.0
    %1419 = vmatpush1.msra.mxu0 0.0
    %1420 = vmatprep.subr.mxu0 0.0
    %1421 = vmatpush1.msra.mxu0 0.0
    %1422 = vmatprep.subr.mxu0 0.0
    %1423 = vmatpush1.msra.mxu0 0.0
    %1424 = vmatprep.mubr.f32.mxu0 0.0
    %1425 = vmatmul.mubr.f32.gmra.mrb[0].mxu0 %v1358
    %v1426 = vpop.f32.mrb[0].mxu0
    %v1427 = vadd.f32 %v1350, %v1426
    %v1428 = vpop.f32.mrb[0].mxu0
    %1429 = vdwg.mxu0
    %v1430 = vadd.f32 %v463, %v1427
    %v1431 = vmul.f32 %v1430, %v1430
    %v1432 = vsel %vm464, %v1431, 0.0
    %1433 = vadd.xlane.f32.xlu0 %v1432
    %v1434 = vpop.xlane.xlu0 %1433
    %v1435 = vmul.f32 %v1434, 0.0625
    %v1436 = vadd.f32 %v1435, 1e-06
    %v1437 = vrsqrt.pop %v1436
    %v1438 = vmul.f32 %v1430, %v1437
    %v1439 = vlaneseq
    %v1440 = vshrl.u32 %v1439, 7
    %v1441 = vsub.s32 0, %v1440
    %v1442 = vrot.slane %v541, %v1441
    %v1443 = vmul.f32 %v1438, %v1442
    %v1444 = vld [vmem:[%s6] sm:$0xff]
    %v1445 = vld [vmem:[%s6 + $0x8] sm:$0xff]
    %v1447 = vsel %vm464, %v1443, 0
    %1449 = vmatprep.subr.mxu0 0.0
    %1450 = vmatpush1.msra.mxu0 %v1444
    %1451 = vmatprep.subr.mxu0 0.0
    %1452 = vmatpush1.msra.mxu0 %v1445
    %1453 = vmatprep.subr.mxu0 0.0
    %1454 = vmatpush1.msra.mxu0 0.0
    %1455 = vmatprep.subr.mxu0 0.0
    %1456 = vmatpush1.msra.mxu0 0.0
    %1457 = vmatprep.subr.mxu0 0.0
    %1458 = vmatpush1.msra.mxu0 0.0
    %1459 = vmatprep.subr.mxu0 0.0
    %1460 = vmatpush1.msra.mxu0 0.0
    %1461 = vmatprep.subr.mxu0 0.0
    %1462 = vmatpush1.msra.mxu0 0.0
    %1463 = vmatprep.subr.mxu0 0.0
    %1464 = vmatpush1.msra.mxu0 0.0
    %1465 = vmatprep.subr.mxu0 0.0
    %1466 = vmatpush1.msra.mxu0 0.0
    %1467 = vmatprep.subr.mxu0 0.0
    %1468 = vmatpush1.msra.mxu0 0.0
    %1469 = vmatprep.subr.mxu0 0.0
    %1470 = vmatpush1.msra.mxu0 0.0
    %1471 = vmatprep.subr.mxu0 0.0
    %1472 = vmatpush1.msra.mxu0 0.0
    %1473 = vmatprep.subr.mxu0 0.0
    %1474 = vmatpush1.msra.mxu0 0.0
    %1475 = vmatprep.subr.mxu0 0.0
    %1476 = vmatpush1.msra.mxu0 0.0
    %1477 = vmatprep.subr.mxu0 0.0
    %1478 = vmatpush1.msra.mxu0 0.0
    %1479 = vmatprep.subr.mxu0 0.0
    %1480 = vmatpush1.msra.mxu0 0.0
    %1481 = vmatprep.subr.mxu0 0.0
    %1482 = vmatpush1.msra.mxu0 0.0
    %1483 = vmatprep.subr.mxu0 0.0
    %1484 = vmatpush1.msra.mxu0 0.0
    %1485 = vmatprep.subr.mxu0 0.0
    %1486 = vmatpush1.msra.mxu0 0.0
    %1487 = vmatprep.subr.mxu0 0.0
    %1488 = vmatpush1.msra.mxu0 0.0
    %1489 = vmatprep.subr.mxu0 0.0
    %1490 = vmatpush1.msra.mxu0 0.0
    %1491 = vmatprep.subr.mxu0 0.0
    %1492 = vmatpush1.msra.mxu0 0.0
    %1493 = vmatprep.subr.mxu0 0.0
    %1494 = vmatpush1.msra.mxu0 0.0
    %1495 = vmatprep.subr.mxu0 0.0
    %1496 = vmatpush1.msra.mxu0 0.0
    %1497 = vmatprep.subr.mxu0 0.0
    %1498 = vmatpush1.msra.mxu0 0.0
    %1499 = vmatprep.subr.mxu0 0.0
    %1500 = vmatpush1.msra.mxu0 0.0
    %1501 = vmatprep.subr.mxu0 0.0
    %1502 = vmatpush1.msra.mxu0 0.0
    %1503 = vmatprep.subr.mxu0 0.0
    %1504 = vmatpush1.msra.mxu0 0.0
    %1505 = vmatprep.subr.mxu0 0.0
    %1506 = vmatpush1.msra.mxu0 0.0
    %1507 = vmatprep.subr.mxu0 0.0
    %1508 = vmatpush1.msra.mxu0 0.0
    %1509 = vmatprep.subr.mxu0 0.0
    %1510 = vmatpush1.msra.mxu0 0.0
    %1511 = vmatprep.subr.mxu0 0.0
    %1512 = vmatpush1.msra.mxu0 0.0
    %1513 = vmatprep.mubr.f32.mxu0 0.0
    %1514 = vmatmul.mubr.f32.gmra.mrb[0].mxu0 %v1447
    %v1515 = vpop.f32.mrb[0].mxu0
    %v1516 = vadd.f32 0.0, %v1515
    %v1517 = vpop.f32.mrb[0].mxu0
    %1518 = vdwg.mxu0
    %v1519 = vsub.f32 0.0, %v1516
    %v1520 = vmul.f32 %v1519, 1.442695
    %v1521 = vpow.pop %v1520
    %v1522 = vadd.f32 %v1521, 1.0
    %v1523 = vrcp.pop %v1522
    %v1524 = vmul.f32 %v1516, %v1523
    %1526 = vrot.lane.b32.xlu0 %v1516, 64
    %v1527 = vpop.permute.xlu0 %1526
    %v1529 = vmul.f32 %v1524, %v1527
    %v1530 = vld [vmem:[%s7] sm:$0xff]
    %v1531 = vld [vmem:[%s7 + $0x8] sm:$0xff]
    %v1532 = vld [vmem:[%s7 + $0x10] sm:$0xff]
    %v1533 = vld [vmem:[%s7 + $0x18] sm:$0xff]
    %v1534 = vld [vmem:[%s7 + $0x20] sm:$0xff]
    %v1535 = vld [vmem:[%s7 + $0x28] sm:$0xff]
    %v1536 = vld [vmem:[%s7 + $0x30] sm:$0xff]
    %v1537 = vld [vmem:[%s7 + $0x38] sm:$0xff]
    %vm1538 = vcmask 523264
    %v1540 = vsel %vm1538, %v1529, 0
    %1542 = vmatprep.subr.mxu0 0.0
    %1543 = vmatpush1.msra.mxu0 %v1530
    %1544 = vmatprep.subr.mxu0 0.0
    %1545 = vmatpush1.msra.mxu0 %v1531
    %1546 = vmatprep.subr.mxu0 0.0
    %1547 = vmatpush1.msra.mxu0 %v1532
    %1548 = vmatprep.subr.mxu0 0.0
    %1549 = vmatpush1.msra.mxu0 %v1533
    %1550 = vmatprep.subr.mxu0 0.0
    %1551 = vmatpush1.msra.mxu0 %v1534
    %1552 = vmatprep.subr.mxu0 0.0
    %1553 = vmatpush1.msra.mxu0 %v1535
    %1554 = vmatprep.subr.mxu0 0.0
    %1555 = vmatpush1.msra.mxu0 %v1536
    %1556 = vmatprep.subr.mxu0 0.0
    %1557 = vmatpush1.msra.mxu0 %v1537
    %1558 = vmatprep.subr.mxu0 0.0
    %1559 = vmatpush1.msra.mxu0 0.0
    %1560 = vmatprep.subr.mxu0 0.0
    %1561 = vmatpush1.msra.mxu0 0.0
    %1562 = vmatprep.subr.mxu0 0.0
    %1563 = vmatpush1.msra.mxu0 0.0
    %1564 = vmatprep.subr.mxu0 0.0
    %1565 = vmatpush1.msra.mxu0 0.0
    %1566 = vmatprep.subr.mxu0 0.0
    %1567 = vmatpush1.msra.mxu0 0.0
    %1568 = vmatprep.subr.mxu0 0.0
    %1569 = vmatpush1.msra.mxu0 0.0
    %1570 = vmatprep.subr.mxu0 0.0
    %1571 = vmatpush1.msra.mxu0 0.0
    %1572 = vmatprep.subr.mxu0 0.0
    %1573 = vmatpush1.msra.mxu0 0.0
    %1574 = vmatprep.subr.mxu0 0.0
    %1575 = vmatpush1.msra.mxu0 0.0
    %1576 = vmatprep.subr.mxu0 0.0
    %1577 = vmatpush1.msra.mxu0 0.0
    %1578 = vmatprep.subr.mxu0 0.0
    %1579 = vmatpush1.msra.mxu0 0.0
    %1580 = vmatprep.subr.mxu0 0.0
    %1581 = vmatpush1.msra.mxu0 0.0
    %1582 = vmatprep.subr.mxu0 0.0
    %1583 = vmatpush1.msra.mxu0 0.0
    %1584 = vmatprep.subr.mxu0 0.0
    %1585 = vmatpush1.msra.mxu0 0.0
    %1586 = vmatprep.subr.mxu0 0.0
    %1587 = vmatpush1.msra.mxu0 0.0
    %1588 = vmatprep.subr.mxu0 0.0
    %1589 = vmatpush1.msra.mxu0 0.0
    %1590 = vmatprep.subr.mxu0 0.0
    %1591 = vmatpush1.msra.mxu0 0.0
    %1592 = vmatprep.subr.mxu0 0.0
    %1593 = vmatpush1.msra.mxu0 0.0
    %1594 = vmatprep.subr.mxu0 0.0
    %1595 = vmatpush1.msra.mxu0 0.0
    %1596 = vmatprep.subr.mxu0 0.0
    %1597 = vmatpush1.msra.mxu0 0.0
    %1598 = vmatprep.subr.mxu0 0.0
    %1599 = vmatpush1.msra.mxu0 0.0
    %1600 = vmatprep.subr.mxu0 0.0
    %1601 = vmatpush1.msra.mxu0 0.0
    %1602 = vmatprep.subr.mxu0 0.0
    %1603 = vmatpush1.msra.mxu0 0.0
    %1604 = vmatprep.subr.mxu0 0.0
    %1605 = vmatpush1.msra.mxu0 0.0
    %1606 = vmatprep.mubr.f32.mxu0 0.0
    %1607 = vmatmul.mubr.f32.gmra.mrb[0].mxu0 %v1540
    %v1608 = vpop.f32.mrb[0].mxu0
    %v1609 = vadd.f32 0.0, %v1608
    %v1610 = vpop.f32.mrb[0].mxu0
    %1611 = vdwg.mxu0
    %v1612 = vadd.f32 %v1430, %v1609
    %v1613 = vld [vmem:[%s4 + $0x1] sm:$0x1]
    %v1614 = vld [vmem:[%s4 + $0x3] sm:$0x1]
    %s1615 = scalar_lea.vmem %s5, 16
    %v1616 = vld [vmem:[%s1615] sm:$0xff]
    %v1617 = vld [vmem:[%s1615 + $0x8] sm:$0xff]
    %v1618 = vmul.f32 %v1612, %v1612
    %v1619 = vsel %vm464, %v1618, 0.0
    %1620 = vadd.xlane.f32.xlu0 %v1619
    %v1621 = vpop.xlane.xlu0 %1620
    %v1622 = vmul.f32 %v1621, 0.0625
    %v1623 = vadd.f32 %v1622, 1e-06
    %v1624 = vrsqrt.pop %v1623
    %v1625 = vmul.f32 %v1612, %v1624
    %v1626 = vlaneseq
    %v1627 = vshrl.u32 %v1626, 7
    %v1628 = vsub.s32 0, %v1627
    %v1629 = vrot.slane %v1613, %v1628
    %v1630 = vmul.f32 %v1625, %v1629
    %v1632 = vsel %vm464, %v1630, 0
    %1634 = vmatprep.subr.mxu0 0.0
    %1635 = vmatpush1.msra.mxu0 %v1616
    %1636 = vmatprep.subr.mxu0 0.0
    %1637 = vmatpush1.msra.mxu0 %v1617
    %1638 = vmatprep.subr.mxu0 0.0
    %1639 = vmatpush1.msra.mxu0 0.0
    %1640 = vmatprep.subr.mxu0 0.0
    %1641 = vmatpush1.msra.mxu0 0.0
    %1642 = vmatprep.subr.mxu0 0.0
    %1643 = vmatpush1.msra.mxu0 0.0
    %1644 = vmatprep.subr.mxu0 0.0
    %1645 = vmatpush1.msra.mxu0 0.0
    %1646 = vmatprep.subr.mxu0 0.0
    %1647 = vmatpush1.msra.mxu0 0.0
    %1648 = vmatprep.subr.mxu0 0.0
    %1649 = vmatpush1.msra.mxu0 0.0
    %1650 = vmatprep.subr.mxu0 0.0
    %1651 = vmatpush1.msra.mxu0 0.0
    %1652 = vmatprep.subr.mxu0 0.0
    %1653 = vmatpush1.msra.mxu0 0.0
    %1654 = vmatprep.subr.mxu0 0.0
    %1655 = vmatpush1.msra.mxu0 0.0
    %1656 = vmatprep.subr.mxu0 0.0
    %1657 = vmatpush1.msra.mxu0 0.0
    %1658 = vmatprep.subr.mxu0 0.0
    %1659 = vmatpush1.msra.mxu0 0.0
    %1660 = vmatprep.subr.mxu0 0.0
    %1661 = vmatpush1.msra.mxu0 0.0
    %1662 = vmatprep.subr.mxu0 0.0
    %1663 = vmatpush1.msra.mxu0 0.0
    %1664 = vmatprep.subr.mxu0 0.0
    %1665 = vmatpush1.msra.mxu0 0.0
    %1666 = vmatprep.subr.mxu0 0.0
    %1667 = vmatpush1.msra.mxu0 0.0
    %1668 = vmatprep.subr.mxu0 0.0
    %1669 = vmatpush1.msra.mxu0 0.0
    %1670 = vmatprep.subr.mxu0 0.0
    %1671 = vmatpush1.msra.mxu0 0.0
    %1672 = vmatprep.subr.mxu0 0.0
    %1673 = vmatpush1.msra.mxu0 0.0
    %1674 = vmatprep.subr.mxu0 0.0
    %1675 = vmatpush1.msra.mxu0 0.0
    %1676 = vmatprep.subr.mxu0 0.0
    %1677 = vmatpush1.msra.mxu0 0.0
    %1678 = vmatprep.subr.mxu0 0.0
    %1679 = vmatpush1.msra.mxu0 0.0
    %1680 = vmatprep.subr.mxu0 0.0
    %1681 = vmatpush1.msra.mxu0 0.0
    %1682 = vmatprep.subr.mxu0 0.0
    %1683 = vmatpush1.msra.mxu0 0.0
    %1684 = vmatprep.subr.mxu0 0.0
    %1685 = vmatpush1.msra.mxu0 0.0
    %1686 = vmatprep.subr.mxu0 0.0
    %1687 = vmatpush1.msra.mxu0 0.0
    %1688 = vmatprep.subr.mxu0 0.0
    %1689 = vmatpush1.msra.mxu0 0.0
    %1690 = vmatprep.subr.mxu0 0.0
    %1691 = vmatpush1.msra.mxu0 0.0
    %1692 = vmatprep.subr.mxu0 0.0
    %1693 = vmatpush1.msra.mxu0 0.0
    %1694 = vmatprep.subr.mxu0 0.0
    %1695 = vmatpush1.msra.mxu0 0.0
    %1696 = vmatprep.subr.mxu0 0.0
    %1697 = vmatpush1.msra.mxu0 0.0
    %1698 = vmatprep.mubr.f32.mxu0 0.0
    %1699 = vmatmul.mubr.f32.gmra.mrb[0].mxu0 %v1632
    %v1700 = vpop.f32.mrb[0].mxu0
    %v1701 = vadd.f32 0.0, %v1700
    %v1702 = vpop.f32.mrb[0].mxu0
    %1703 = vdwg.mxu0
    %v1704 = vmul.f32 %v1701, %v51
    %v1706 = vsel %vm464, %v1701, 0
    %1708 = vmatprep.subr.mxu0 0.0
    %1709 = vmatpush1.msra.mxu0 %v52
    %1710 = vmatprep.subr.mxu0 0.0
    %1711 = vmatpush1.msra.mxu0 %v53
    %1712 = vmatprep.subr.mxu0 0.0
    %1713 = vmatpush1.msra.mxu0 0.0
    %1714 = vmatprep.subr.mxu0 0.0
    %1715 = vmatpush1.msra.mxu0 0.0
    %1716 = vmatprep.subr.mxu0 0.0
    %1717 = vmatpush1.msra.mxu0 0.0
    %1718 = vmatprep.subr.mxu0 0.0
    %1719 = vmatpush1.msra.mxu0 0.0
    %1720 = vmatprep.subr.mxu0 0.0
    %1721 = vmatpush1.msra.mxu0 0.0
    %1722 = vmatprep.subr.mxu0 0.0
    %1723 = vmatpush1.msra.mxu0 0.0
    %1724 = vmatprep.subr.mxu0 0.0
    %1725 = vmatpush1.msra.mxu0 0.0
    %1726 = vmatprep.subr.mxu0 0.0
    %1727 = vmatpush1.msra.mxu0 0.0
    %1728 = vmatprep.subr.mxu0 0.0
    %1729 = vmatpush1.msra.mxu0 0.0
    %1730 = vmatprep.subr.mxu0 0.0
    %1731 = vmatpush1.msra.mxu0 0.0
    %1732 = vmatprep.subr.mxu0 0.0
    %1733 = vmatpush1.msra.mxu0 0.0
    %1734 = vmatprep.subr.mxu0 0.0
    %1735 = vmatpush1.msra.mxu0 0.0
    %1736 = vmatprep.subr.mxu0 0.0
    %1737 = vmatpush1.msra.mxu0 0.0
    %1738 = vmatprep.subr.mxu0 0.0
    %1739 = vmatpush1.msra.mxu0 0.0
    %1740 = vmatprep.subr.mxu0 0.0
    %1741 = vmatpush1.msra.mxu0 0.0
    %1742 = vmatprep.subr.mxu0 0.0
    %1743 = vmatpush1.msra.mxu0 0.0
    %1744 = vmatprep.subr.mxu0 0.0
    %1745 = vmatpush1.msra.mxu0 0.0
    %1746 = vmatprep.subr.mxu0 0.0
    %1747 = vmatpush1.msra.mxu0 0.0
    %1748 = vmatprep.subr.mxu0 0.0
    %1749 = vmatpush1.msra.mxu0 0.0
    %1750 = vmatprep.subr.mxu0 0.0
    %1751 = vmatpush1.msra.mxu0 0.0
    %1752 = vmatprep.subr.mxu0 0.0
    %1753 = vmatpush1.msra.mxu0 0.0
    %1754 = vmatprep.subr.mxu0 0.0
    %1755 = vmatpush1.msra.mxu0 0.0
    %1756 = vmatprep.subr.mxu0 0.0
    %1757 = vmatpush1.msra.mxu0 0.0
    %1758 = vmatprep.subr.mxu0 0.0
    %1759 = vmatpush1.msra.mxu0 0.0
    %1760 = vmatprep.subr.mxu0 0.0
    %1761 = vmatpush1.msra.mxu0 0.0
    %1762 = vmatprep.subr.mxu0 0.0
    %1763 = vmatpush1.msra.mxu0 0.0
    %1764 = vmatprep.subr.mxu0 0.0
    %1765 = vmatpush1.msra.mxu0 0.0
    %1766 = vmatprep.subr.mxu0 0.0
    %1767 = vmatpush1.msra.mxu0 0.0
    %1768 = vmatprep.subr.mxu0 0.0
    %1769 = vmatpush1.msra.mxu0 0.0
    %1770 = vmatprep.subr.mxu0 0.0
    %1771 = vmatpush1.msra.mxu0 0.0
    %1772 = vmatprep.mubr.f32.mxu0 0.0
    %1773 = vmatmul.mubr.f32.gmra.mrb[0].mxu0 %v1706
    %v1774 = vpop.f32.mrb[0].mxu0
    %v1775 = vadd.f32 0.0, %v1774
    %v1776 = vpop.f32.mrb[0].mxu0
    %1777 = vdwg.mxu0
    %v1778 = vmul.f32 %v1775, %v706
    %v1779 = vadd.f32 %v1704, %v1778
    %v1780 = vmul.f32 %v1701, %v711
    %1781 = vrot.lane.b32.xlu0 %v1701, 112
    %v1782 = vpop.permute.xlu0 %1781
    %v1783 = vsel %vm464, %v1782, 0
    %1785 = vmatprep.subr.mxu0 0.0
    %1786 = vmatpush1.msra.mxu0 %v52
    %1787 = vmatprep.subr.mxu0 0.0
    %1788 = vmatpush1.msra.mxu0 %v53
    %1789 = vmatprep.subr.mxu0 0.0
    %1790 = vmatpush1.msra.mxu0 0.0
    %1791 = vmatprep.subr.mxu0 0.0
    %1792 = vmatpush1.msra.mxu0 0.0
    %1793 = vmatprep.subr.mxu0 0.0
    %1794 = vmatpush1.msra.mxu0 0.0
    %1795 = vmatprep.subr.mxu0 0.0
    %1796 = vmatpush1.msra.mxu0 0.0
    %1797 = vmatprep.subr.mxu0 0.0
    %1798 = vmatpush1.msra.mxu0 0.0
    %1799 = vmatprep.subr.mxu0 0.0
    %1800 = vmatpush1.msra.mxu0 0.0
    %1801 = vmatprep.subr.mxu0 0.0
    %1802 = vmatpush1.msra.mxu0 0.0
    %1803 = vmatprep.subr.mxu0 0.0
    %1804 = vmatpush1.msra.mxu0 0.0
    %1805 = vmatprep.subr.mxu0 0.0
    %1806 = vmatpush1.msra.mxu0 0.0
    %1807 = vmatprep.subr.mxu0 0.0
    %1808 = vmatpush1.msra.mxu0 0.0
    %1809 = vmatprep.subr.mxu0 0.0
    %1810 = vmatpush1.msra.mxu0 0.0
    %1811 = vmatprep.subr.mxu0 0.0
    %1812 = vmatpush1.msra.mxu0 0.0
    %1813 = vmatprep.subr.mxu0 0.0
    %1814 = vmatpush1.msra.mxu0 0.0
    %1815 = vmatprep.subr.mxu0 0.0
    %1816 = vmatpush1.msra.mxu0 0.0
    %1817 = vmatprep.subr.mxu0 0.0
    %1818 = vmatpush1.msra.mxu0 0.0
    %1819 = vmatprep.subr.mxu0 0.0
    %1820 = vmatpush1.msra.mxu0 0.0
    %1821 = vmatprep.subr.mxu0 0.0
    %1822 = vmatpush1.msra.mxu0 0.0
    %1823 = vmatprep.subr.mxu0 0.0
    %1824 = vmatpush1.msra.mxu0 0.0
    %1825 = vmatprep.subr.mxu0 0.0
    %1826 = vmatpush1.msra.mxu0 0.0
    %1827 = vmatprep.subr.mxu0 0.0
    %1828 = vmatpush1.msra.mxu0 0.0
    %1829 = vmatprep.subr.mxu0 0.0
    %1830 = vmatpush1.msra.mxu0 0.0
    %1831 = vmatprep.subr.mxu0 0.0
    %1832 = vmatpush1.msra.mxu0 0.0
    %1833 = vmatprep.subr.mxu0 0.0
    %1834 = vmatpush1.msra.mxu0 0.0
    %1835 = vmatprep.subr.mxu0 0.0
    %1836 = vmatpush1.msra.mxu0 0.0
    %1837 = vmatprep.subr.mxu0 0.0
    %1838 = vmatpush1.msra.mxu0 0.0
    %1839 = vmatprep.subr.mxu0 0.0
    %1840 = vmatpush1.msra.mxu0 0.0
    %1841 = vmatprep.subr.mxu0 0.0
    %1842 = vmatpush1.msra.mxu0 0.0
    %1843 = vmatprep.subr.mxu0 0.0
    %1844 = vmatpush1.msra.mxu0 0.0
    %1845 = vmatprep.subr.mxu0 0.0
    %1846 = vmatpush1.msra.mxu0 0.0
    %1847 = vmatprep.subr.mxu0 0.0
    %1848 = vmatpush1.msra.mxu0 0.0
    %1849 = vmatprep.mubr.f32.mxu0 0.0
    %1850 = vmatmul.mubr.f32.gmra.mrb[0].mxu0 %v1783
    %v1851 = vpop.f32.mrb[0].mxu0
    %v1852 = vadd.f32 0.0, %v1851
    %v1853 = vpop.f32.mrb[0].mxu0
    %1854 = vdwg.mxu0
    %v1855 = vmul.f32 %v1852, %v706
    %1857 = vrot.lane.b32.xlu0 %v1855, 16
    %v1858 = vpop.permute.xlu0 %1857
    %v1860 = vadd.f32 %v1780, %v1858
    %1862 = vrot.lane.b32.xlu0 %v1860, 112
    %v1863 = vpop.permute.xlu0 %1862
    %v1865 = vsel %vm797, %v1779, 0
    %v1867 = vsel %vm797, %v1863, 0
    %1869 = vmatprep.subr.mxu0 0.0
    %1870 = vmatpush1.xpose.msra.mxu0 %v1867
    %1871 = vmatprep.subr.mxu0 0.0
    %1872 = vmatpush1.xpose.msra.mxu0 0.0
    %1873 = vmatprep.subr.mxu0 0.0
    %1874 = vmatpush1.xpose.msra.mxu0 0.0
    %1875 = vmatprep.subr.mxu0 0.0
    %1876 = vmatpush1.xpose.msra.mxu0 0.0
    %1877 = vmatprep.subr.mxu0 0.0
    %1878 = vmatpush1.xpose.msra.mxu0 0.0
    %1879 = vmatprep.subr.mxu0 0.0
    %1880 = vmatpush1.xpose.msra.mxu0 0.0
    %1881 = vmatprep.subr.mxu0 0.0
    %1882 = vmatpush1.xpose.msra.mxu0 0.0
    %1883 = vmatprep.subr.mxu0 0.0
    %1884 = vmatpush1.xpose.msra.mxu0 0.0
    %1885 = vmatprep.subr.mxu0 0.0
    %1886 = vmatpush1.xpose.msra.mxu0 0.0
    %1887 = vmatprep.subr.mxu0 0.0
    %1888 = vmatpush1.xpose.msra.mxu0 0.0
    %1889 = vmatprep.subr.mxu0 0.0
    %1890 = vmatpush1.xpose.msra.mxu0 0.0
    %1891 = vmatprep.subr.mxu0 0.0
    %1892 = vmatpush1.xpose.msra.mxu0 0.0
    %1893 = vmatprep.subr.mxu0 0.0
    %1894 = vmatpush1.xpose.msra.mxu0 0.0
    %1895 = vmatprep.subr.mxu0 0.0
    %1896 = vmatpush1.xpose.msra.mxu0 0.0
    %1897 = vmatprep.subr.mxu0 0.0
    %1898 = vmatpush1.xpose.msra.mxu0 0.0
    %1899 = vmatprep.subr.mxu0 0.0
    %1900 = vmatpush1.xpose.msra.mxu0 0.0
    %1901 = vmatprep.subr.mxu0 0.0
    %1902 = vmatpush1.xpose.msra.mxu0 0.0
    %1903 = vmatprep.subr.mxu0 0.0
    %1904 = vmatpush1.xpose.msra.mxu0 0.0
    %1905 = vmatprep.subr.mxu0 0.0
    %1906 = vmatpush1.xpose.msra.mxu0 0.0
    %1907 = vmatprep.subr.mxu0 0.0
    %1908 = vmatpush1.xpose.msra.mxu0 0.0
    %1909 = vmatprep.subr.mxu0 0.0
    %1910 = vmatpush1.xpose.msra.mxu0 0.0
    %1911 = vmatprep.subr.mxu0 0.0
    %1912 = vmatpush1.xpose.msra.mxu0 0.0
    %1913 = vmatprep.subr.mxu0 0.0
    %1914 = vmatpush1.xpose.msra.mxu0 0.0
    %1915 = vmatprep.subr.mxu0 0.0
    %1916 = vmatpush1.xpose.msra.mxu0 0.0
    %1917 = vmatprep.subr.mxu0 0.0
    %1918 = vmatpush1.xpose.msra.mxu0 0.0
    %1919 = vmatprep.subr.mxu0 0.0
    %1920 = vmatpush1.xpose.msra.mxu0 0.0
    %1921 = vmatprep.subr.mxu0 0.0
    %1922 = vmatpush1.xpose.msra.mxu0 0.0
    %1923 = vmatprep.subr.mxu0 0.0
    %1924 = vmatpush1.xpose.msra.mxu0 0.0
    %1925 = vmatprep.subr.mxu0 0.0
    %1926 = vmatpush1.xpose.msra.mxu0 0.0
    %1927 = vmatprep.subr.mxu0 0.0
    %1928 = vmatpush1.xpose.msra.mxu0 0.0
    %1929 = vmatprep.subr.mxu0 0.0
    %1930 = vmatpush1.xpose.msra.mxu0 0.0
    %1931 = vmatprep.subr.mxu0 0.0
    %1932 = vmatpush1.xpose.msra.mxu0 0.0
    %1933 = vmatprep.mubr.f32.mxu0 0.0
    %1934 = vmatmul.mubr.f32.gmra.mrb[0].mxu0 %v1865
    %v1935 = vpop.f32.mrb[0].mxu0
    %v1936 = vadd.f32 0.0, %v1935
    %v1937 = vpop.f32.mrb[0].mxu0
    %1938 = vdwg.mxu0
    %v1939 = vmul.f32 %v1936, 0.35355338
    %v1940 = vadd.f32 %v1939, %v875
    %v1941 = vsel %vm797, %v1940, -inf
    %1942 = vmax.xlane.f32.xlu0 %v1941
    %v1943 = vpop.xlane.xlu0 %1942
    %v1944 = vsub.f32 %v1940, %v1943
    %v1945 = vmul.f32 %v1944, 1.442695
    %v1946 = vpow.pop %v1945
    %v1947 = vsel %vm797, %v1946, 0.0
    %1948 = vadd.xlane.f32.xlu0 %v1947
    %v1949 = vpop.xlane.xlu0 %1948
    %v1950 = vrcp.pop %v1949
    %v1951 = vmul.f32 %v1946, %v1950
    %v1953 = vsel %vm797, %v1951, 0
    %1955 = vmatprep.subr.mxu0 0.0
    %1956 = vmatpush1.msra.mxu0 %v54
    %1957 = vmatprep.subr.mxu0 0.0
    %1958 = vmatpush1.msra.mxu0 0.0
    %1959 = vmatprep.subr.mxu0 0.0
    %1960 = vmatpush1.msra.mxu0 0.0
    %1961 = vmatprep.subr.mxu0 0.0
    %1962 = vmatpush1.msra.mxu0 0.0
    %1963 = vmatprep.subr.mxu0 0.0
    %1964 = vmatpush1.msra.mxu0 0.0
    %1965 = vmatprep.subr.mxu0 0.0
    %1966 = vmatpush1.msra.mxu0 0.0
    %1967 = vmatprep.subr.mxu0 0.0
    %1968 = vmatpush1.msra.mxu0 0.0
    %1969 = vmatprep.subr.mxu0 0.0
    %1970 = vmatpush1.msra.mxu0 0.0
    %1971 = vmatprep.subr.mxu0 0.0
    %1972 = vmatpush1.msra.mxu0 0.0
    %1973 = vmatprep.subr.mxu0 0.0
    %1974 = vmatpush1.msra.mxu0 0.0
    %1975 = vmatprep.subr.mxu0 0.0
    %1976 = vmatpush1.msra.mxu0 0.0
    %1977 = vmatprep.subr.mxu0 0.0
    %1978 = vmatpush1.msra.mxu0 0.0
    %1979 = vmatprep.subr.mxu0 0.0
    %1980 = vmatpush1.msra.mxu0 0.0
    %1981 = vmatprep.subr.mxu0 0.0
    %1982 = vmatpush1.msra.mxu0 0.0
    %1983 = vmatprep.subr.mxu0 0.0
    %1984 = vmatpush1.msra.mxu0 0.0
    %1985 = vmatprep.subr.mxu0 0.0
    %1986 = vmatpush1.msra.mxu0 0.0
    %1987 = vmatprep.subr.mxu0 0.0
    %1988 = vmatpush1.msra.mxu0 0.0
    %1989 = vmatprep.subr.mxu0 0.0
    %1990 = vmatpush1.msra.mxu0 0.0
    %1991 = vmatprep.subr.mxu0 0.0
    %1992 = vmatpush1.msra.mxu0 0.0
    %1993 = vmatprep.subr.mxu0 0.0
    %1994 = vmatpush1.msra.mxu0 0.0
    %1995 = vmatprep.subr.mxu0 0.0
    %1996 = vmatpush1.msra.mxu0 0.0
    %1997 = vmatprep.subr.mxu0 0.0
    %1998 = vmatpush1.msra.mxu0 0.0
    %1999 = vmatprep.subr.mxu0 0.0
    %2000 = vmatpush1.msra.mxu0 0.0
    %2001 = vmatprep.subr.mxu0 0.0
    %2002 = vmatpush1.msra.mxu0 0.0
    %2003 = vmatprep.subr.mxu0 0.0
    %2004 = vmatpush1.msra.mxu0 0.0
    %2005 = vmatprep.subr.mxu0 0.0
    %2006 = vmatpush1.msra.mxu0 0.0
    %2007 = vmatprep.subr.mxu0 0.0
    %2008 = vmatpush1.msra.mxu0 0.0
    %2009 = vmatprep.subr.mxu0 0.0
    %2010 = vmatpush1.msra.mxu0 0.0
    %2011 = vmatprep.subr.mxu0 0.0
    %2012 = vmatpush1.msra.mxu0 0.0
    %2013 = vmatprep.subr.mxu0 0.0
    %2014 = vmatpush1.msra.mxu0 0.0
    %2015 = vmatprep.subr.mxu0 0.0
    %2016 = vmatpush1.msra.mxu0 0.0
    %2017 = vmatprep.subr.mxu0 0.0
    %2018 = vmatpush1.msra.mxu0 0.0
    %2019 = vmatprep.mubr.f32.mxu0 0.0
    %2020 = vmatmul.mubr.f32.gmra.mrb[0].mxu0 %v1953
    %v2021 = vpop.f32.mrb[0].mxu0
    %v2022 = vadd.f32 0.0, %v2021
    %v2023 = vpop.f32.mrb[0].mxu0
    %2024 = vdwg.mxu0
    %s2025 = scalar_lea.vmem %s8, 48
    %2026 = vst [vmem:[%s2025] sm:$0xff] %v2022
    %2027 = vrot.lane.b32.xlu0 %v1701, 96
    %v2028 = vpop.permute.xlu0 %2027
    %2030 = vmatprep.subr.mxu0 0.0
    %2031 = vmatpush1.msra.mxu0 %v2028
    %2032 = vmatprep.subr.mxu0 0.0
    %2033 = vmatpush1.msra.mxu0 0.0
    %2034 = vmatprep.subr.mxu0 0.0
    %2035 = vmatpush1.msra.mxu0 0.0
    %2036 = vmatprep.subr.mxu0 0.0
    %2037 = vmatpush1.msra.mxu0 0.0
    %2038 = vmatprep.subr.mxu0 0.0
    %2039 = vmatpush1.msra.mxu0 0.0
    %2040 = vmatprep.subr.mxu0 0.0
    %2041 = vmatpush1.msra.mxu0 0.0
    %2042 = vmatprep.subr.mxu0 0.0
    %2043 = vmatpush1.msra.mxu0 0.0
    %2044 = vmatprep.subr.mxu0 0.0
    %2045 = vmatpush1.msra.mxu0 0.0
    %2046 = vmatprep.subr.mxu0 0.0
    %2047 = vmatpush1.msra.mxu0 0.0
    %2048 = vmatprep.subr.mxu0 0.0
    %2049 = vmatpush1.msra.mxu0 0.0
    %2050 = vmatprep.subr.mxu0 0.0
    %2051 = vmatpush1.msra.mxu0 0.0
    %2052 = vmatprep.subr.mxu0 0.0
    %2053 = vmatpush1.msra.mxu0 0.0
    %2054 = vmatprep.subr.mxu0 0.0
    %2055 = vmatpush1.msra.mxu0 0.0
    %2056 = vmatprep.subr.mxu0 0.0
    %2057 = vmatpush1.msra.mxu0 0.0
    %2058 = vmatprep.subr.mxu0 0.0
    %2059 = vmatpush1.msra.mxu0 0.0
    %2060 = vmatprep.subr.mxu0 0.0
    %2061 = vmatpush1.msra.mxu0 0.0
    %2062 = vmatprep.subr.mxu0 0.0
    %2063 = vmatpush1.msra.mxu0 0.0
    %2064 = vmatprep.subr.mxu0 0.0
    %2065 = vmatpush1.msra.mxu0 0.0
    %2066 = vmatprep.subr.mxu0 0.0
    %2067 = vmatpush1.msra.mxu0 0.0
    %2068 = vmatprep.subr.mxu0 0.0
    %2069 = vmatpush1.msra.mxu0 0.0
    %2070 = vmatprep.subr.mxu0 0.0
    %2071 = vmatpush1.msra.mxu0 0.0
    %2072 = vmatprep.subr.mxu0 0.0
    %2073 = vmatpush1.msra.mxu0 0.0
    %2074 = vmatprep.subr.mxu0 0.0
    %2075 = vmatpush1.msra.mxu0 0.0
    %2076 = vmatprep.subr.mxu0 0.0
    %2077 = vmatpush1.msra.mxu0 0.0
    %2078 = vmatprep.subr.mxu0 0.0
    %2079 = vmatpush1.msra.mxu0 0.0
    %2080 = vmatprep.subr.mxu0 0.0
    %2081 = vmatpush1.msra.mxu0 0.0
    %2082 = vmatprep.subr.mxu0 0.0
    %2083 = vmatpush1.msra.mxu0 0.0
    %2084 = vmatprep.subr.mxu0 0.0
    %2085 = vmatpush1.msra.mxu0 0.0
    %2086 = vmatprep.subr.mxu0 0.0
    %2087 = vmatpush1.msra.mxu0 0.0
    %2088 = vmatprep.subr.mxu0 0.0
    %2089 = vmatpush1.msra.mxu0 0.0
    %2090 = vmatprep.subr.mxu0 0.0
    %2091 = vmatpush1.msra.mxu0 0.0
    %2092 = vmatprep.subr.mxu0 0.0
    %2093 = vmatpush1.msra.mxu0 0.0
    %2094 = vmatprep.mubr.f32.mxu0 0.0
    %2095 = vmatmul.mubr.f32.gmra.mrb[0].mxu0 %v1953
    %v2096 = vpop.f32.mrb[0].mxu0
    %v2097 = vadd.f32 0.0, %v2096
    %v2098 = vpop.f32.mrb[0].mxu0
    %2099 = vdwg.mxu0
    %2100 = vrot.lane.b32.xlu0 %v1779, 120
    %v2101 = vpop.permute.xlu0 %2100
    %2102 = vrot.lane.b32.xlu0 %v1860, 104
    %v2103 = vpop.permute.xlu0 %2102
    %v2104 = vsel %vm797, %v2101, 0
    %v2106 = vsel %vm797, %v2103, 0
    %2108 = vmatprep.subr.mxu0 0.0
    %2109 = vmatpush1.xpose.msra.mxu0 %v2106
    %2110 = vmatprep.subr.mxu0 0.0
    %2111 = vmatpush1.xpose.msra.mxu0 0.0
    %2112 = vmatprep.subr.mxu0 0.0
    %2113 = vmatpush1.xpose.msra.mxu0 0.0
    %2114 = vmatprep.subr.mxu0 0.0
    %2115 = vmatpush1.xpose.msra.mxu0 0.0
    %2116 = vmatprep.subr.mxu0 0.0
    %2117 = vmatpush1.xpose.msra.mxu0 0.0
    %2118 = vmatprep.subr.mxu0 0.0
    %2119 = vmatpush1.xpose.msra.mxu0 0.0
    %2120 = vmatprep.subr.mxu0 0.0
    %2121 = vmatpush1.xpose.msra.mxu0 0.0
    %2122 = vmatprep.subr.mxu0 0.0
    %2123 = vmatpush1.xpose.msra.mxu0 0.0
    %2124 = vmatprep.subr.mxu0 0.0
    %2125 = vmatpush1.xpose.msra.mxu0 0.0
    %2126 = vmatprep.subr.mxu0 0.0
    %2127 = vmatpush1.xpose.msra.mxu0 0.0
    %2128 = vmatprep.subr.mxu0 0.0
    %2129 = vmatpush1.xpose.msra.mxu0 0.0
    %2130 = vmatprep.subr.mxu0 0.0
    %2131 = vmatpush1.xpose.msra.mxu0 0.0
    %2132 = vmatprep.subr.mxu0 0.0
    %2133 = vmatpush1.xpose.msra.mxu0 0.0
    %2134 = vmatprep.subr.mxu0 0.0
    %2135 = vmatpush1.xpose.msra.mxu0 0.0
    %2136 = vmatprep.subr.mxu0 0.0
    %2137 = vmatpush1.xpose.msra.mxu0 0.0
    %2138 = vmatprep.subr.mxu0 0.0
    %2139 = vmatpush1.xpose.msra.mxu0 0.0
    %2140 = vmatprep.subr.mxu0 0.0
    %2141 = vmatpush1.xpose.msra.mxu0 0.0
    %2142 = vmatprep.subr.mxu0 0.0
    %2143 = vmatpush1.xpose.msra.mxu0 0.0
    %2144 = vmatprep.subr.mxu0 0.0
    %2145 = vmatpush1.xpose.msra.mxu0 0.0
    %2146 = vmatprep.subr.mxu0 0.0
    %2147 = vmatpush1.xpose.msra.mxu0 0.0
    %2148 = vmatprep.subr.mxu0 0.0
    %2149 = vmatpush1.xpose.msra.mxu0 0.0
    %2150 = vmatprep.subr.mxu0 0.0
    %2151 = vmatpush1.xpose.msra.mxu0 0.0
    %2152 = vmatprep.subr.mxu0 0.0
    %2153 = vmatpush1.xpose.msra.mxu0 0.0
    %2154 = vmatprep.subr.mxu0 0.0
    %2155 = vmatpush1.xpose.msra.mxu0 0.0
    %2156 = vmatprep.subr.mxu0 0.0
    %2157 = vmatpush1.xpose.msra.mxu0 0.0
    %2158 = vmatprep.subr.mxu0 0.0
    %2159 = vmatpush1.xpose.msra.mxu0 0.0
    %2160 = vmatprep.subr.mxu0 0.0
    %2161 = vmatpush1.xpose.msra.mxu0 0.0
    %2162 = vmatprep.subr.mxu0 0.0
    %2163 = vmatpush1.xpose.msra.mxu0 0.0
    %2164 = vmatprep.subr.mxu0 0.0
    %2165 = vmatpush1.xpose.msra.mxu0 0.0
    %2166 = vmatprep.subr.mxu0 0.0
    %2167 = vmatpush1.xpose.msra.mxu0 0.0
    %2168 = vmatprep.subr.mxu0 0.0
    %2169 = vmatpush1.xpose.msra.mxu0 0.0
    %2170 = vmatprep.subr.mxu0 0.0
    %2171 = vmatpush1.xpose.msra.mxu0 0.0
    %2172 = vmatprep.mubr.f32.mxu0 0.0
    %2173 = vmatmul.mubr.f32.gmra.mrb[0].mxu0 %v2104
    %v2174 = vpop.f32.mrb[0].mxu0
    %v2175 = vadd.f32 0.0, %v2174
    %v2176 = vpop.f32.mrb[0].mxu0
    %2177 = vdwg.mxu0
    %v2178 = vmul.f32 %v2175, 0.35355338
    %v2179 = vadd.f32 %v2178, %v875
    %v2180 = vsel %vm797, %v2179, -inf
    %2181 = vmax.xlane.f32.xlu0 %v2180
    %v2182 = vpop.xlane.xlu0 %2181
    %v2183 = vsub.f32 %v2179, %v2182
    %v2184 = vmul.f32 %v2183, 1.442695
    %v2185 = vpow.pop %v2184
    %v2186 = vsel %vm797, %v2185, 0.0
    %2187 = vadd.xlane.f32.xlu0 %v2186
    %v2188 = vpop.xlane.xlu0 %2187
    %v2189 = vrcp.pop %v2188
    %v2190 = vmul.f32 %v2185, %v2189
    %v2192 = vsel %vm797, %v2190, 0
    %2194 = vmatprep.subr.mxu0 0.0
    %2195 = vmatpush1.msra.mxu0 %v54
    %2196 = vmatprep.subr.mxu0 0.0
    %2197 = vmatpush1.msra.mxu0 0.0
    %2198 = vmatprep.subr.mxu0 0.0
    %2199 = vmatpush1.msra.mxu0 0.0
    %2200 = vmatprep.subr.mxu0 0.0
    %2201 = vmatpush1.msra.mxu0 0.0
    %2202 = vmatprep.subr.mxu0 0.0
    %2203 = vmatpush1.msra.mxu0 0.0
    %2204 = vmatprep.subr.mxu0 0.0
    %2205 = vmatpush1.msra.mxu0 0.0
    %2206 = vmatprep.subr.mxu0 0.0
    %2207 = vmatpush1.msra.mxu0 0.0
    %2208 = vmatprep.subr.mxu0 0.0
    %2209 = vmatpush1.msra.mxu0 0.0
    %2210 = vmatprep.subr.mxu0 0.0
    %2211 = vmatpush1.msra.mxu0 0.0
    %2212 = vmatprep.subr.mxu0 0.0
    %2213 = vmatpush1.msra.mxu0 0.0
    %2214 = vmatprep.subr.mxu0 0.0
    %2215 = vmatpush1.msra.mxu0 0.0
    %2216 = vmatprep.subr.mxu0 0.0
    %2217 = vmatpush1.msra.mxu0 0.0
    %2218 = vmatprep.subr.mxu0 0.0
    %2219 = vmatpush1.msra.mxu0 0.0
    %2220 = vmatprep.subr.mxu0 0.0
    %2221 = vmatpush1.msra.mxu0 0.0
    %2222 = vmatprep.subr.mxu0 0.0
    %2223 = vmatpush1.msra.mxu0 0.0
    %2224 = vmatprep.subr.mxu0 0.0
    %2225 = vmatpush1.msra.mxu0 0.0
    %2226 = vmatprep.subr.mxu0 0.0
    %2227 = vmatpush1.msra.mxu0 0.0
    %2228 = vmatprep.subr.mxu0 0.0
    %2229 = vmatpush1.msra.mxu0 0.0
    %2230 = vmatprep.subr.mxu0 0.0
    %2231 = vmatpush1.msra.mxu0 0.0
    %2232 = vmatprep.subr.mxu0 0.0
    %2233 = vmatpush1.msra.mxu0 0.0
    %2234 = vmatprep.subr.mxu0 0.0
    %2235 = vmatpush1.msra.mxu0 0.0
    %2236 = vmatprep.subr.mxu0 0.0
    %2237 = vmatpush1.msra.mxu0 0.0
    %2238 = vmatprep.subr.mxu0 0.0
    %2239 = vmatpush1.msra.mxu0 0.0
    %2240 = vmatprep.subr.mxu0 0.0
    %2241 = vmatpush1.msra.mxu0 0.0
    %2242 = vmatprep.subr.mxu0 0.0
    %2243 = vmatpush1.msra.mxu0 0.0
    %2244 = vmatprep.subr.mxu0 0.0
    %2245 = vmatpush1.msra.mxu0 0.0
    %2246 = vmatprep.subr.mxu0 0.0
    %2247 = vmatpush1.msra.mxu0 0.0
    %2248 = vmatprep.subr.mxu0 0.0
    %2249 = vmatpush1.msra.mxu0 0.0
    %2250 = vmatprep.subr.mxu0 0.0
    %2251 = vmatpush1.msra.mxu0 0.0
    %2252 = vmatprep.subr.mxu0 0.0
    %2253 = vmatpush1.msra.mxu0 0.0
    %2254 = vmatprep.subr.mxu0 0.0
    %2255 = vmatpush1.msra.mxu0 0.0
    %2256 = vmatprep.subr.mxu0 0.0
    %2257 = vmatpush1.msra.mxu0 0.0
    %2258 = vmatprep.mubr.f32.mxu0 0.0
    %2259 = vmatmul.mubr.f32.gmra.mrb[0].mxu0 %v2192
    %v2260 = vpop.f32.mrb[0].mxu0
    %v2261 = vadd.f32 0.0, %v2260
    %v2262 = vpop.f32.mrb[0].mxu0
    %2263 = vdwg.mxu0
    %s2264 = scalar_lea.vmem %s8, 56
    %2265 = vst [vmem:[%s2264] sm:$0xff] %v2261
    %2266 = vrot.lane.b32.xlu0 %v1701, 88
    %v2267 = vpop.permute.xlu0 %2266
    %2269 = vmatprep.subr.mxu0 0.0
    %2270 = vmatpush1.msra.mxu0 %v2267
    %2271 = vmatprep.subr.mxu0 0.0
    %2272 = vmatpush1.msra.mxu0 0.0
    %2273 = vmatprep.subr.mxu0 0.0
    %2274 = vmatpush1.msra.mxu0 0.0
    %2275 = vmatprep.subr.mxu0 0.0
    %2276 = vmatpush1.msra.mxu0 0.0
    %2277 = vmatprep.subr.mxu0 0.0
    %2278 = vmatpush1.msra.mxu0 0.0
    %2279 = vmatprep.subr.mxu0 0.0
    %2280 = vmatpush1.msra.mxu0 0.0
    %2281 = vmatprep.subr.mxu0 0.0
    %2282 = vmatpush1.msra.mxu0 0.0
    %2283 = vmatprep.subr.mxu0 0.0
    %2284 = vmatpush1.msra.mxu0 0.0
    %2285 = vmatprep.subr.mxu0 0.0
    %2286 = vmatpush1.msra.mxu0 0.0
    %2287 = vmatprep.subr.mxu0 0.0
    %2288 = vmatpush1.msra.mxu0 0.0
    %2289 = vmatprep.subr.mxu0 0.0
    %2290 = vmatpush1.msra.mxu0 0.0
    %2291 = vmatprep.subr.mxu0 0.0
    %2292 = vmatpush1.msra.mxu0 0.0
    %2293 = vmatprep.subr.mxu0 0.0
    %2294 = vmatpush1.msra.mxu0 0.0
    %2295 = vmatprep.subr.mxu0 0.0
    %2296 = vmatpush1.msra.mxu0 0.0
    %2297 = vmatprep.subr.mxu0 0.0
    %2298 = vmatpush1.msra.mxu0 0.0
    %2299 = vmatprep.subr.mxu0 0.0
    %2300 = vmatpush1.msra.mxu0 0.0
    %2301 = vmatprep.subr.mxu0 0.0
    %2302 = vmatpush1.msra.mxu0 0.0
    %2303 = vmatprep.subr.mxu0 0.0
    %2304 = vmatpush1.msra.mxu0 0.0
    %2305 = vmatprep.subr.mxu0 0.0
    %2306 = vmatpush1.msra.mxu0 0.0
    %2307 = vmatprep.subr.mxu0 0.0
    %2308 = vmatpush1.msra.mxu0 0.0
    %2309 = vmatprep.subr.mxu0 0.0
    %2310 = vmatpush1.msra.mxu0 0.0
    %2311 = vmatprep.subr.mxu0 0.0
    %2312 = vmatpush1.msra.mxu0 0.0
    %2313 = vmatprep.subr.mxu0 0.0
    %2314 = vmatpush1.msra.mxu0 0.0
    %2315 = vmatprep.subr.mxu0 0.0
    %2316 = vmatpush1.msra.mxu0 0.0
    %2317 = vmatprep.subr.mxu0 0.0
    %2318 = vmatpush1.msra.mxu0 0.0
    %2319 = vmatprep.subr.mxu0 0.0
    %2320 = vmatpush1.msra.mxu0 0.0
    %2321 = vmatprep.subr.mxu0 0.0
    %2322 = vmatpush1.msra.mxu0 0.0
    %2323 = vmatprep.subr.mxu0 0.0
    %2324 = vmatpush1.msra.mxu0 0.0
    %2325 = vmatprep.subr.mxu0 0.0
    %2326 = vmatpush1.msra.mxu0 0.0
    %2327 = vmatprep.subr.mxu0 0.0
    %2328 = vmatpush1.msra.mxu0 0.0
    %2329 = vmatprep.subr.mxu0 0.0
    %2330 = vmatpush1.msra.mxu0 0.0
    %2331 = vmatprep.subr.mxu0 0.0
    %2332 = vmatpush1.msra.mxu0 0.0
    %2333 = vmatprep.mubr.f32.mxu0 0.0
    %2334 = vmatmul.mubr.f32.gmra.mrb[0].mxu0 %v2192
    %v2335 = vpop.f32.mrb[0].mxu0
    %v2336 = vadd.f32 0.0, %v2335
    %v2337 = vpop.f32.mrb[0].mxu0
    %2338 = vdwg.mxu0
    %2340 = vrot.lane.b32.xlu0 %v1617, 80
    %v2341 = vpop.permute.xlu0 %2340
    %v2344 = vsel %vm797, %v2336, 0
    %2346 = vmatprep.subr.mxu0 0.0
    %2347 = vmatpush1.msra.mxu0 %v2341
    %2348 = vmatprep.subr.mxu0 0.0
    %2349 = vmatpush1.msra.mxu0 0.0
    %2350 = vmatprep.subr.mxu0 0.0
    %2351 = vmatpush1.msra.mxu0 0.0
    %2352 = vmatprep.subr.mxu0 0.0
    %2353 = vmatpush1.msra.mxu0 0.0
    %2354 = vmatprep.subr.mxu0 0.0
    %2355 = vmatpush1.msra.mxu0 0.0
    %2356 = vmatprep.subr.mxu0 0.0
    %2357 = vmatpush1.msra.mxu0 0.0
    %2358 = vmatprep.subr.mxu0 0.0
    %2359 = vmatpush1.msra.mxu0 0.0
    %2360 = vmatprep.subr.mxu0 0.0
    %2361 = vmatpush1.msra.mxu0 0.0
    %2362 = vmatprep.subr.mxu0 0.0
    %2363 = vmatpush1.msra.mxu0 0.0
    %2364 = vmatprep.subr.mxu0 0.0
    %2365 = vmatpush1.msra.mxu0 0.0
    %2366 = vmatprep.subr.mxu0 0.0
    %2367 = vmatpush1.msra.mxu0 0.0
    %2368 = vmatprep.subr.mxu0 0.0
    %2369 = vmatpush1.msra.mxu0 0.0
    %2370 = vmatprep.subr.mxu0 0.0
    %2371 = vmatpush1.msra.mxu0 0.0
    %2372 = vmatprep.subr.mxu0 0.0
    %2373 = vmatpush1.msra.mxu0 0.0
    %2374 = vmatprep.subr.mxu0 0.0
    %2375 = vmatpush1.msra.mxu0 0.0
    %2376 = vmatprep.subr.mxu0 0.0
    %2377 = vmatpush1.msra.mxu0 0.0
    %2378 = vmatprep.subr.mxu0 0.0
    %2379 = vmatpush1.msra.mxu0 0.0
    %2380 = vmatprep.subr.mxu0 0.0
    %2381 = vmatpush1.msra.mxu0 0.0
    %2382 = vmatprep.subr.mxu0 0.0
    %2383 = vmatpush1.msra.mxu0 0.0
    %2384 = vmatprep.subr.mxu0 0.0
    %2385 = vmatpush1.msra.mxu0 0.0
    %2386 = vmatprep.subr.mxu0 0.0
    %2387 = vmatpush1.msra.mxu0 0.0
    %2388 = vmatprep.subr.mxu0 0.0
    %2389 = vmatpush1.msra.mxu0 0.0
    %2390 = vmatprep.subr.mxu0 0.0
    %2391 = vmatpush1.msra.mxu0 0.0
    %2392 = vmatprep.subr.mxu0 0.0
    %2393 = vmatpush1.msra.mxu0 0.0
    %2394 = vmatprep.subr.mxu0 0.0
    %2395 = vmatpush1.msra.mxu0 0.0
    %2396 = vmatprep.subr.mxu0 0.0
    %2397 = vmatpush1.msra.mxu0 0.0
    %2398 = vmatprep.subr.mxu0 0.0
    %2399 = vmatpush1.msra.mxu0 0.0
    %2400 = vmatprep.subr.mxu0 0.0
    %2401 = vmatpush1.msra.mxu0 0.0
    %2402 = vmatprep.subr.mxu0 0.0
    %2403 = vmatpush1.msra.mxu0 0.0
    %2404 = vmatprep.subr.mxu0 0.0
    %2405 = vmatpush1.msra.mxu0 0.0
    %2406 = vmatprep.subr.mxu0 0.0
    %2407 = vmatpush1.msra.mxu0 0.0
    %2408 = vmatprep.subr.mxu0 0.0
    %2409 = vmatpush1.msra.mxu0 0.0
    %2410 = vmatprep.mubr.f32.mxu0 0.0
    %2411 = vmatmul.mubr.f32.gmra.mrb[0].mxu0 %v2344
    %v2412 = vpop.f32.mrb[0].mxu0
    %v2413 = vadd.f32 0.0, %v2412
    %v2414 = vpop.f32.mrb[0].mxu0
    %2415 = vdwg.mxu0
    %2417 = vrot.lane.b32.xlu0 %v1616, 80
    %v2418 = vpop.permute.xlu0 %2417
    %v2421 = vsel %vm797, %v2097, 0
    %2423 = vmatprep.subr.mxu0 0.0
    %2424 = vmatpush1.msra.mxu0 %v2418
    %2425 = vmatprep.subr.mxu0 0.0
    %2426 = vmatpush1.msra.mxu0 0.0
    %2427 = vmatprep.subr.mxu0 0.0
    %2428 = vmatpush1.msra.mxu0 0.0
    %2429 = vmatprep.subr.mxu0 0.0
    %2430 = vmatpush1.msra.mxu0 0.0
    %2431 = vmatprep.subr.mxu0 0.0
    %2432 = vmatpush1.msra.mxu0 0.0
    %2433 = vmatprep.subr.mxu0 0.0
    %2434 = vmatpush1.msra.mxu0 0.0
    %2435 = vmatprep.subr.mxu0 0.0
    %2436 = vmatpush1.msra.mxu0 0.0
    %2437 = vmatprep.subr.mxu0 0.0
    %2438 = vmatpush1.msra.mxu0 0.0
    %2439 = vmatprep.subr.mxu0 0.0
    %2440 = vmatpush1.msra.mxu0 0.0
    %2441 = vmatprep.subr.mxu0 0.0
    %2442 = vmatpush1.msra.mxu0 0.0
    %2443 = vmatprep.subr.mxu0 0.0
    %2444 = vmatpush1.msra.mxu0 0.0
    %2445 = vmatprep.subr.mxu0 0.0
    %2446 = vmatpush1.msra.mxu0 0.0
    %2447 = vmatprep.subr.mxu0 0.0
    %2448 = vmatpush1.msra.mxu0 0.0
    %2449 = vmatprep.subr.mxu0 0.0
    %2450 = vmatpush1.msra.mxu0 0.0
    %2451 = vmatprep.subr.mxu0 0.0
    %2452 = vmatpush1.msra.mxu0 0.0
    %2453 = vmatprep.subr.mxu0 0.0
    %2454 = vmatpush1.msra.mxu0 0.0
    %2455 = vmatprep.subr.mxu0 0.0
    %2456 = vmatpush1.msra.mxu0 0.0
    %2457 = vmatprep.subr.mxu0 0.0
    %2458 = vmatpush1.msra.mxu0 0.0
    %2459 = vmatprep.subr.mxu0 0.0
    %2460 = vmatpush1.msra.mxu0 0.0
    %2461 = vmatprep.subr.mxu0 0.0
    %2462 = vmatpush1.msra.mxu0 0.0
    %2463 = vmatprep.subr.mxu0 0.0
    %2464 = vmatpush1.msra.mxu0 0.0
    %2465 = vmatprep.subr.mxu0 0.0
    %2466 = vmatpush1.msra.mxu0 0.0
    %2467 = vmatprep.subr.mxu0 0.0
    %2468 = vmatpush1.msra.mxu0 0.0
    %2469 = vmatprep.subr.mxu0 0.0
    %2470 = vmatpush1.msra.mxu0 0.0
    %2471 = vmatprep.subr.mxu0 0.0
    %2472 = vmatpush1.msra.mxu0 0.0
    %2473 = vmatprep.subr.mxu0 0.0
    %2474 = vmatpush1.msra.mxu0 0.0
    %2475 = vmatprep.subr.mxu0 0.0
    %2476 = vmatpush1.msra.mxu0 0.0
    %2477 = vmatprep.subr.mxu0 0.0
    %2478 = vmatpush1.msra.mxu0 0.0
    %2479 = vmatprep.subr.mxu0 0.0
    %2480 = vmatpush1.msra.mxu0 0.0
    %2481 = vmatprep.subr.mxu0 0.0
    %2482 = vmatpush1.msra.mxu0 0.0
    %2483 = vmatprep.subr.mxu0 0.0
    %2484 = vmatpush1.msra.mxu0 0.0
    %2485 = vmatprep.subr.mxu0 0.0
    %2486 = vmatpush1.msra.mxu0 0.0
    %2487 = vmatprep.mubr.f32.mxu0 0.0
    %2488 = vmatmul.mubr.f32.gmra.mrb[0].mxu0 %v2421
    %v2489 = vpop.f32.mrb[0].mxu0
    %v2490 = vadd.f32 %v2413, %v2489
    %v2491 = vpop.f32.mrb[0].mxu0
    %2492 = vdwg.mxu0
    %v2493 = vadd.f32 %v1612, %v2490
    %v2494 = vmul.f32 %v2493, %v2493
    %v2495 = vsel %vm464, %v2494, 0.0
    %2496 = vadd.xlane.f32.xlu0 %v2495
    %v2497 = vpop.xlane.xlu0 %2496
    %v2498 = vmul.f32 %v2497, 0.0625
    %v2499 = vadd.f32 %v2498, 1e-06
    %v2500 = vrsqrt.pop %v2499
    %v2501 = vmul.f32 %v2493, %v2500
    %v2502 = vlaneseq
    %v2503 = vshrl.u32 %v2502, 7
    %v2504 = vsub.s32 0, %v2503
    %v2505 = vrot.slane %v1614, %v2504
    %v2506 = vmul.f32 %v2501, %v2505
    %s2507 = scalar_lea.vmem %s6, 16
    %v2508 = vld [vmem:[%s2507] sm:$0xff]
    %v2509 = vld [vmem:[%s2507 + $0x8] sm:$0xff]
    %v2511 = vsel %vm464, %v2506, 0
    %2513 = vmatprep.subr.mxu0 0.0
    %2514 = vmatpush1.msra.mxu0 %v2508
    %2515 = vmatprep.subr.mxu0 0.0
    %2516 = vmatpush1.msra.mxu0 %v2509
    %2517 = vmatprep.subr.mxu0 0.0
    %2518 = vmatpush1.msra.mxu0 0.0
    %2519 = vmatprep.subr.mxu0 0.0
    %2520 = vmatpush1.msra.mxu0 0.0
    %2521 = vmatprep.subr.mxu0 0.0
    %2522 = vmatpush1.msra.mxu0 0.0
    %2523 = vmatprep.subr.mxu0 0.0
    %2524 = vmatpush1.msra.mxu0 0.0
    %2525 = vmatprep.subr.mxu0 0.0
    %2526 = vmatpush1.msra.mxu0 0.0
    %2527 = vmatprep.subr.mxu0 0.0
    %2528 = vmatpush1.msra.mxu0 0.0
    %2529 = vmatprep.subr.mxu0 0.0
    %2530 = vmatpush1.msra.mxu0 0.0
    %2531 = vmatprep.subr.mxu0 0.0
    %2532 = vmatpush1.msra.mxu0 0.0
    %2533 = vmatprep.subr.mxu0 0.0
    %2534 = vmatpush1.msra.mxu0 0.0
    %2535 = vmatprep.subr.mxu0 0.0
    %2536 = vmatpush1.msra.mxu0 0.0
    %2537 = vmatprep.subr.mxu0 0.0
    %2538 = vmatpush1.msra.mxu0 0.0
    %2539 = vmatprep.subr.mxu0 0.0
    %2540 = vmatpush1.msra.mxu0 0.0
    %2541 = vmatprep.subr.mxu0 0.0
    %2542 = vmatpush1.msra.mxu0 0.0
    %2543 = vmatprep.subr.mxu0 0.0
    %2544 = vmatpush1.msra.mxu0 0.0
    %2545 = vmatprep.subr.mxu0 0.0
    %2546 = vmatpush1.msra.mxu0 0.0
    %2547 = vmatprep.subr.mxu0 0.0
    %2548 = vmatpush1.msra.mxu0 0.0
    %2549 = vmatprep.subr.mxu0 0.0
    %2550 = vmatpush1.msra.mxu0 0.0
    %2551 = vmatprep.subr.mxu0 0.0
    %2552 = vmatpush1.msra.mxu0 0.0
    %2553 = vmatprep.subr.mxu0 0.0
    %2554 = vmatpush1.msra.mxu0 0.0
    %2555 = vmatprep.subr.mxu0 0.0
    %2556 = vmatpush1.msra.mxu0 0.0
    %2557 = vmatprep.subr.mxu0 0.0
    %2558 = vmatpush1.msra.mxu0 0.0
    %2559 = vmatprep.subr.mxu0 0.0
    %2560 = vmatpush1.msra.mxu0 0.0
    %2561 = vmatprep.subr.mxu0 0.0
    %2562 = vmatpush1.msra.mxu0 0.0
    %2563 = vmatprep.subr.mxu0 0.0
    %2564 = vmatpush1.msra.mxu0 0.0
    %2565 = vmatprep.subr.mxu0 0.0
    %2566 = vmatpush1.msra.mxu0 0.0
    %2567 = vmatprep.subr.mxu0 0.0
    %2568 = vmatpush1.msra.mxu0 0.0
    %2569 = vmatprep.subr.mxu0 0.0
    %2570 = vmatpush1.msra.mxu0 0.0
    %2571 = vmatprep.subr.mxu0 0.0
    %2572 = vmatpush1.msra.mxu0 0.0
    %2573 = vmatprep.subr.mxu0 0.0
    %2574 = vmatpush1.msra.mxu0 0.0
    %2575 = vmatprep.subr.mxu0 0.0
    %2576 = vmatpush1.msra.mxu0 0.0
    %2577 = vmatprep.mubr.f32.mxu0 0.0
    %2578 = vmatmul.mubr.f32.gmra.mrb[0].mxu0 %v2511
    %v2579 = vpop.f32.mrb[0].mxu0
    %v2580 = vadd.f32 0.0, %v2579
    %v2581 = vpop.f32.mrb[0].mxu0
    %2582 = vdwg.mxu0
    %v2583 = vsub.f32 0.0, %v2580
    %v2584 = vmul.f32 %v2583, 1.442695
    %v2585 = vpow.pop %v2584
    %v2586 = vadd.f32 %v2585, 1.0
    %v2587 = vrcp.pop %v2586
    %v2588 = vmul.f32 %v2580, %v2587
    %2590 = vrot.lane.b32.xlu0 %v2580, 64
    %v2591 = vpop.permute.xlu0 %2590
    %v2593 = vmul.f32 %v2588, %v2591
    %s2594 = scalar_lea.vmem %s7, 64
    %v2595 = vld [vmem:[%s2594] sm:$0xff]
    %v2596 = vld [vmem:[%s2594 + $0x8] sm:$0xff]
    %v2597 = vld [vmem:[%s2594 + $0x10] sm:$0xff]
    %v2598 = vld [vmem:[%s2594 + $0x18] sm:$0xff]
    %v2599 = vld [vmem:[%s2594 + $0x20] sm:$0xff]
    %v2600 = vld [vmem:[%s2594 + $0x28] sm:$0xff]
    %v2601 = vld [vmem:[%s2594 + $0x30] sm:$0xff]
    %v2602 = vld [vmem:[%s2594 + $0x38] sm:$0xff]
    %v2604 = vsel %vm1538, %v2593, 0
    %2606 = vmatprep.subr.mxu0 0.0
    %2607 = vmatpush1.msra.mxu0 %v2595
    %2608 = vmatprep.subr.mxu0 0.0
    %2609 = vmatpush1.msra.mxu0 %v2596
    %2610 = vmatprep.subr.mxu0 0.0
    %2611 = vmatpush1.msra.mxu0 %v2597
    %2612 = vmatprep.subr.mxu0 0.0
    %2613 = vmatpush1.msra.mxu0 %v2598
    %2614 = vmatprep.subr.mxu0 0.0
    %2615 = vmatpush1.msra.mxu0 %v2599
    %2616 = vmatprep.subr.mxu0 0.0
    %2617 = vmatpush1.msra.mxu0 %v2600
    %2618 = vmatprep.subr.mxu0 0.0
    %2619 = vmatpush1.msra.mxu0 %v2601
    %2620 = vmatprep.subr.mxu0 0.0
    %2621 = vmatpush1.msra.mxu0 %v2602
    %2622 = vmatprep.subr.mxu0 0.0
    %2623 = vmatpush1.msra.mxu0 0.0
    %2624 = vmatprep.subr.mxu0 0.0
    %2625 = vmatpush1.msra.mxu0 0.0
    %2626 = vmatprep.subr.mxu0 0.0
    %2627 = vmatpush1.msra.mxu0 0.0
    %2628 = vmatprep.subr.mxu0 0.0
    %2629 = vmatpush1.msra.mxu0 0.0
    %2630 = vmatprep.subr.mxu0 0.0
    %2631 = vmatpush1.msra.mxu0 0.0
    %2632 = vmatprep.subr.mxu0 0.0
    %2633 = vmatpush1.msra.mxu0 0.0
    %2634 = vmatprep.subr.mxu0 0.0
    %2635 = vmatpush1.msra.mxu0 0.0
    %2636 = vmatprep.subr.mxu0 0.0
    %2637 = vmatpush1.msra.mxu0 0.0
    %2638 = vmatprep.subr.mxu0 0.0
    %2639 = vmatpush1.msra.mxu0 0.0
    %2640 = vmatprep.subr.mxu0 0.0
    %2641 = vmatpush1.msra.mxu0 0.0
    %2642 = vmatprep.subr.mxu0 0.0
    %2643 = vmatpush1.msra.mxu0 0.0
    %2644 = vmatprep.subr.mxu0 0.0
    %2645 = vmatpush1.msra.mxu0 0.0
    %2646 = vmatprep.subr.mxu0 0.0
    %2647 = vmatpush1.msra.mxu0 0.0
    %2648 = vmatprep.subr.mxu0 0.0
    %2649 = vmatpush1.msra.mxu0 0.0
    %2650 = vmatprep.subr.mxu0 0.0
    %2651 = vmatpush1.msra.mxu0 0.0
    %2652 = vmatprep.subr.mxu0 0.0
    %2653 = vmatpush1.msra.mxu0 0.0
    %2654 = vmatprep.subr.mxu0 0.0
    %2655 = vmatpush1.msra.mxu0 0.0
    %2656 = vmatprep.subr.mxu0 0.0
    %2657 = vmatpush1.msra.mxu0 0.0
    %2658 = vmatprep.subr.mxu0 0.0
    %2659 = vmatpush1.msra.mxu0 0.0
    %2660 = vmatprep.subr.mxu0 0.0
    %2661 = vmatpush1.msra.mxu0 0.0
    %2662 = vmatprep.subr.mxu0 0.0
    %2663 = vmatpush1.msra.mxu0 0.0
    %2664 = vmatprep.subr.mxu0 0.0
    %2665 = vmatpush1.msra.mxu0 0.0
    %2666 = vmatprep.subr.mxu0 0.0
    %2667 = vmatpush1.msra.mxu0 0.0
    %2668 = vmatprep.subr.mxu0 0.0
    %2669 = vmatpush1.msra.mxu0 0.0
    %2670 = vmatprep.mubr.f32.mxu0 0.0
    %2671 = vmatmul.mubr.f32.gmra.mrb[0].mxu0 %v2604
    %v2672 = vpop.f32.mrb[0].mxu0
    %v2673 = vadd.f32 0.0, %v2672
    %v2674 = vpop.f32.mrb[0].mxu0
    %2675 = vdwg.mxu0
    %v2676 = vadd.f32 %v2493, %v2673
    %v2677 = vmul.f32 %v2676, %v2676
    %v2678 = vsel %vm464, %v2677, 0.0
    %2679 = vadd.xlane.f32.xlu0 %v2678
    %v2680 = vpop.xlane.xlu0 %2679
    %v2681 = vmul.f32 %v2680, 0.0625
    %v2682 = vadd.f32 %v2681, 1e-06
    %v2683 = vrsqrt.pop %v2682
    %v2684 = vmul.f32 %v2676, %v2683
    %v2685 = vlaneseq
    %v2686 = vshrl.u32 %v2685, 7
    %v2687 = vsub.s32 0, %v2686
    %v2688 = vrot.slane %v56, %v2687
    %v2689 = vmul.f32 %v2684, %v2688
    %v2691 = vsel %vm464, %v2689, 0
    %2693 = vmatprep.subr.mxu0 0.0
    %2694 = vmatpush1.msra.mxu0 %v54
    %2695 = vmatprep.subr.mxu0 0.0
    %2696 = vmatpush1.msra.mxu0 %v55
    %2697 = vmatprep.subr.mxu0 0.0
    %2698 = vmatpush1.msra.mxu0 0.0
    %2699 = vmatprep.subr.mxu0 0.0
    %2700 = vmatpush1.msra.mxu0 0.0
    %2701 = vmatprep.subr.mxu0 0.0
    %2702 = vmatpush1.msra.mxu0 0.0
    %2703 = vmatprep.subr.mxu0 0.0
    %2704 = vmatpush1.msra.mxu0 0.0
    %2705 = vmatprep.subr.mxu0 0.0
    %2706 = vmatpush1.msra.mxu0 0.0
    %2707 = vmatprep.subr.mxu0 0.0
    %2708 = vmatpush1.msra.mxu0 0.0
    %2709 = vmatprep.subr.mxu0 0.0
    %2710 = vmatpush1.msra.mxu0 0.0
    %2711 = vmatprep.subr.mxu0 0.0
    %2712 = vmatpush1.msra.mxu0 0.0
    %2713 = vmatprep.subr.mxu0 0.0
    %2714 = vmatpush1.msra.mxu0 0.0
    %2715 = vmatprep.subr.mxu0 0.0
    %2716 = vmatpush1.msra.mxu0 0.0
    %2717 = vmatprep.subr.mxu0 0.0
    %2718 = vmatpush1.msra.mxu0 0.0
    %2719 = vmatprep.subr.mxu0 0.0
    %2720 = vmatpush1.msra.mxu0 0.0
    %2721 = vmatprep.subr.mxu0 0.0
    %2722 = vmatpush1.msra.mxu0 0.0
    %2723 = vmatprep.subr.mxu0 0.0
    %2724 = vmatpush1.msra.mxu0 0.0
    %2725 = vmatprep.subr.mxu0 0.0
    %2726 = vmatpush1.msra.mxu0 0.0
    %2727 = vmatprep.subr.mxu0 0.0
    %2728 = vmatpush1.msra.mxu0 0.0
    %2729 = vmatprep.subr.mxu0 0.0
    %2730 = vmatpush1.msra.mxu0 0.0
    %2731 = vmatprep.subr.mxu0 0.0
    %2732 = vmatpush1.msra.mxu0 0.0
    %2733 = vmatprep.subr.mxu0 0.0
    %2734 = vmatpush1.msra.mxu0 0.0
    %2735 = vmatprep.subr.mxu0 0.0
    %2736 = vmatpush1.msra.mxu0 0.0
    %2737 = vmatprep.subr.mxu0 0.0
    %2738 = vmatpush1.msra.mxu0 0.0
    %2739 = vmatprep.subr.mxu0 0.0
    %2740 = vmatpush1.msra.mxu0 0.0
    %2741 = vmatprep.subr.mxu0 0.0
    %2742 = vmatpush1.msra.mxu0 0.0
    %2743 = vmatprep.subr.mxu0 0.0
    %2744 = vmatpush1.msra.mxu0 0.0
    %2745 = vmatprep.subr.mxu0 0.0
    %2746 = vmatpush1.msra.mxu0 0.0
    %2747 = vmatprep.subr.mxu0 0.0
    %2748 = vmatpush1.msra.mxu0 0.0
    %2749 = vmatprep.subr.mxu0 0.0
    %2750 = vmatpush1.msra.mxu0 0.0
    %2751 = vmatprep.subr.mxu0 0.0
    %2752 = vmatpush1.msra.mxu0 0.0
    %2753 = vmatprep.subr.mxu0 0.0
    %2754 = vmatpush1.msra.mxu0 0.0
    %2755 = vmatprep.subr.mxu0 0.0
    %2756 = vmatpush1.msra.mxu0 0.0
    %2757 = vmatprep.mubr.f32.mxu0 0.0
    %2758 = vmatmul.mubr.f32.gmra.mrb[0].mxu0 %v2691
    %v2759 = vpop.f32.mrb[0].mxu0
    %v2760 = vadd.f32 0.0, %v2759
    %v2761 = vpop.f32.mrb[0].mxu0
    %2762 = vdwg.mxu0
    %s2763 = scalar_lea.vmem %s8, 16
    %2764 = vst [vmem:[%s2763] sm:$0xff] %v2760
    %v2765 = vlaneseq
    %v2766 = vshrl.u32 %v2765, 7
    %v2767 = vsub.s32 0, %v2766
    %v2768 = vrot.slane %v48, %v2767
    %2769 = vmatprep.subr.mxu0 0.0
    %2770 = vmatpush1.msra.mxu0 %v57
    %2771 = vmatprep.subr.mxu0 0.0
    %2772 = vmatpush1.msra.mxu0 %v58
    %2773 = vmatprep.subr.mxu0 0.0
    %2774 = vmatpush1.msra.mxu0 0.0
    %2775 = vmatprep.subr.mxu0 0.0
    %2776 = vmatpush1.msra.mxu0 0.0
    %2777 = vmatprep.subr.mxu0 0.0
    %2778 = vmatpush1.msra.mxu0 0.0
    %2779 = vmatprep.subr.mxu0 0.0
    %2780 = vmatpush1.msra.mxu0 0.0
    %2781 = vmatprep.subr.mxu0 0.0
    %2782 = vmatpush1.msra.mxu0 0.0
    %2783 = vmatprep.subr.mxu0 0.0
    %2784 = vmatpush1.msra.mxu0 0.0
    %2785 = vmatprep.subr.mxu0 0.0
    %2786 = vmatpush1.msra.mxu0 0.0
    %2787 = vmatprep.subr.mxu0 0.0
    %2788 = vmatpush1.msra.mxu0 0.0
    %2789 = vmatprep.subr.mxu0 0.0
    %2790 = vmatpush1.msra.mxu0 0.0
    %2791 = vmatprep.subr.mxu0 0.0
    %2792 = vmatpush1.msra.mxu0 0.0
    %2793 = vmatprep.subr.mxu0 0.0
    %2794 = vmatpush1.msra.mxu0 0.0
    %2795 = vmatprep.subr.mxu0 0.0
    %2796 = vmatpush1.msra.mxu0 0.0
    %2797 = vmatprep.subr.mxu0 0.0
    %2798 = vmatpush1.msra.mxu0 0.0
    %2799 = vmatprep.subr.mxu0 0.0
    %2800 = vmatpush1.msra.mxu0 0.0
    %2801 = vmatprep.subr.mxu0 0.0
    %2802 = vmatpush1.msra.mxu0 0.0
    %2803 = vmatprep.subr.mxu0 0.0
    %2804 = vmatpush1.msra.mxu0 0.0
    %2805 = vmatprep.subr.mxu0 0.0
    %2806 = vmatpush1.msra.mxu0 0.0
    %2807 = vmatprep.subr.mxu0 0.0
    %2808 = vmatpush1.msra.mxu0 0.0
    %2809 = vmatprep.subr.mxu0 0.0
    %2810 = vmatpush1.msra.mxu0 0.0
    %2811 = vmatprep.subr.mxu0 0.0
    %2812 = vmatpush1.msra.mxu0 0.0
    %2813 = vmatprep.subr.mxu0 0.0
    %2814 = vmatpush1.msra.mxu0 0.0
    %2815 = vmatprep.subr.mxu0 0.0
    %2816 = vmatpush1.msra.mxu0 0.0
    %2817 = vmatprep.subr.mxu0 0.0
    %2818 = vmatpush1.msra.mxu0 0.0
    %2819 = vmatprep.subr.mxu0 0.0
    %2820 = vmatpush1.msra.mxu0 0.0
    %2821 = vmatprep.subr.mxu0 0.0
    %2822 = vmatpush1.msra.mxu0 0.0
    %2823 = vmatprep.subr.mxu0 0.0
    %2824 = vmatpush1.msra.mxu0 0.0
    %2825 = vmatprep.subr.mxu0 0.0
    %2826 = vmatpush1.msra.mxu0 0.0
    %2827 = vmatprep.subr.mxu0 0.0
    %2828 = vmatpush1.msra.mxu0 0.0
    %2829 = vmatprep.subr.mxu0 0.0
    %2830 = vmatpush1.msra.mxu0 0.0
    %2831 = vmatprep.subr.mxu0 0.0
    %2832 = vmatpush1.msra.mxu0 0.0
    %2833 = vmatprep.mubr.f32.mxu0 0.0
    %2834 = vmatmul.mubr.f32.gmra.mrb[0].mxu0 %v2691
    %v2835 = vpop.f32.mrb[0].mxu0
    %v2836 = vadd.f32 %v2768, %v2835
    %v2837 = vpop.f32.mrb[0].mxu0
    %2838 = vdwg.mxu0
    %v2839 = vsub.f32 0.0, %v2836
    %v2840 = vmul.f32 %v2839, 1.442695
    %v2841 = vpow.pop %v2840
    %v2842 = vadd.f32 %v2841, 1.0
    %v2843 = vrcp.pop %v2842
    %v2844 = vmul.f32 %v2836, %v2843
    %v2845 = vmul.f32 %v2844, %v2844
    %2846 = vadd.xlane.f32.xlu0 %v2845
    %v2847 = vpop.xlane.xlu0 %2846
    %v2848 = vmul.f32 %v2847, 0.0078125
    %v2849 = vadd.f32 %v2848, 1e-06
    %v2850 = vrsqrt.pop %v2849
    %v2851 = vmul.f32 %v2844, %v2850
    %v2852 = vlaneseq
    %v2853 = vshrl.u32 %v2852, 7
    %v2854 = vsub.s32 0, %v2853
    %v2855 = vrot.slane %v49, %v2854
    %v2856 = vmul.f32 %v2851, %v2855
    %s2857 = scalar_lea.vmem [#allocation2], 512
    %v2858 = vld [vmem:[%s2857] sm:$0xff]
    %v2859 = vld [vmem:[%s2857 + $0x8] sm:$0xff]
    %v2860 = vld [vmem:[%s2857 + $0x10] sm:$0xff]
    %v2861 = vld [vmem:[%s2857 + $0x18] sm:$0xff]
    %v2862 = vld [vmem:[%s2857 + $0x20] sm:$0xff]
    %v2863 = vld [vmem:[%s2857 + $0x28] sm:$0xff]
    %v2864 = vld [vmem:[%s2857 + $0x30] sm:$0xff]
    %v2865 = vld [vmem:[%s2857 + $0x38] sm:$0xff]
    %v2866 = vld [vmem:[%s2857 + $0x40] sm:$0xff]
    %v2867 = vld [vmem:[%s2857 + $0x48] sm:$0xff]
    %v2868 = vld [vmem:[%s2857 + $0x50] sm:$0xff]
    %v2869 = vld [vmem:[%s2857 + $0x58] sm:$0xff]
    %v2870 = vld [vmem:[%s2857 + $0x60] sm:$0xff]
    %v2871 = vld [vmem:[%s2857 + $0x68] sm:$0xff]
    %v2872 = vld [vmem:[%s2857 + $0x70] sm:$0xff]
    %v2873 = vld [vmem:[%s2857 + $0x78] sm:$0xff]
    %v2874 = vlaneseq
    %v2875 = vshrl.u32 %v2874, 7
    %v2876 = vsub.s32 0, %v2875
    %v2877 = vrot.slane %v50, %v2876
    %2878 = vmatprep.subr.mxu0 0.0
    %2879 = vmatpush1.msra.mxu0 %v2858
    %2880 = vmatprep.subr.mxu0 0.0
    %2881 = vmatpush1.msra.mxu0 %v2859
    %2882 = vmatprep.subr.mxu0 0.0
    %2883 = vmatpush1.msra.mxu0 %v2860
    %2884 = vmatprep.subr.mxu0 0.0
    %2885 = vmatpush1.msra.mxu0 %v2861
    %2886 = vmatprep.subr.mxu0 0.0
    %2887 = vmatpush1.msra.mxu0 %v2862
    %2888 = vmatprep.subr.mxu0 0.0
    %2889 = vmatpush1.msra.mxu0 %v2863
    %2890 = vmatprep.subr.mxu0 0.0
    %2891 = vmatpush1.msra.mxu0 %v2864
    %2892 = vmatprep.subr.mxu0 0.0
    %2893 = vmatpush1.msra.mxu0 %v2865
    %2894 = vmatprep.subr.mxu0 0.0
    %2895 = vmatpush1.msra.mxu0 %v2866
    %2896 = vmatprep.subr.mxu0 0.0
    %2897 = vmatpush1.msra.mxu0 %v2867
    %2898 = vmatprep.subr.mxu0 0.0
    %2899 = vmatpush1.msra.mxu0 %v2868
    %2900 = vmatprep.subr.mxu0 0.0
    %2901 = vmatpush1.msra.mxu0 %v2869
    %2902 = vmatprep.subr.mxu0 0.0
    %2903 = vmatpush1.msra.mxu0 %v2870
    %2904 = vmatprep.subr.mxu0 0.0
    %2905 = vmatpush1.msra.mxu0 %v2871
    %2906 = vmatprep.subr.mxu0 0.0
    %2907 = vmatpush1.msra.mxu0 %v2872
    %2908 = vmatprep.subr.mxu0 0.0
    %2909 = vmatpush1.msra.mxu0 %v2873
    %2910 = vmatprep.subr.mxu0 0.0
    %2911 = vmatpush1.msra.mxu0 0.0
    %2912 = vmatprep.subr.mxu0 0.0
    %2913 = vmatpush1.msra.mxu0 0.0
    %2914 = vmatprep.subr.mxu0 0.0
    %2915 = vmatpush1.msra.mxu0 0.0
    %2916 = vmatprep.subr.mxu0 0.0
    %2917 = vmatpush1.msra.mxu0 0.0
    %2918 = vmatprep.subr.mxu0 0.0
    %2919 = vmatpush1.msra.mxu0 0.0
    %2920 = vmatprep.subr.mxu0 0.0
    %2921 = vmatpush1.msra.mxu0 0.0
    %2922 = vmatprep.subr.mxu0 0.0
    %2923 = vmatpush1.msra.mxu0 0.0
    %2924 = vmatprep.subr.mxu0 0.0
    %2925 = vmatpush1.msra.mxu0 0.0
    %2926 = vmatprep.subr.mxu0 0.0
    %2927 = vmatpush1.msra.mxu0 0.0
    %2928 = vmatprep.subr.mxu0 0.0
    %2929 = vmatpush1.msra.mxu0 0.0
    %2930 = vmatprep.subr.mxu0 0.0
    %2931 = vmatpush1.msra.mxu0 0.0
    %2932 = vmatprep.subr.mxu0 0.0
    %2933 = vmatpush1.msra.mxu0 0.0
    %2934 = vmatprep.subr.mxu0 0.0
    %2935 = vmatpush1.msra.mxu0 0.0
    %2936 = vmatprep.subr.mxu0 0.0
    %2937 = vmatpush1.msra.mxu0 0.0
    %2938 = vmatprep.subr.mxu0 0.0
    %2939 = vmatpush1.msra.mxu0 0.0
    %2940 = vmatprep.subr.mxu0 0.0
    %2941 = vmatpush1.msra.mxu0 0.0
    %2942 = vmatprep.mubr.f32.mxu0 0.0
    %2943 = vmatmul.mubr.f32.gmra.mrb[0].mxu0 %v2856
    %v2944 = vpop.f32.mrb[0].mxu0
    %v2945 = vadd.f32 %v2877, %v2944
    %v2946 = vpop.f32.mrb[0].mxu0
    %2947 = vdwg.mxu0
    %s2948 = scalar_lea.vmem %s8, 24
    %2949 = vst [vmem:[%s2948] sm:$0xff] %v2945
    // Predicated region
    $region38: #{forward.1} parent=1 // pred_check
      _
    $region39: #{forward.1} parent=1 // pred_check_branch
      %2951 = sbr.rel (0) target = $region41
    $region40: #{forward.1} parent=1 // pred_region
      _
    $region41: #{forward.1} parent=1 // pred_fallthru
      _
    // Predicated region
    $region42: #{forward.1} parent=1 // pred_check
      _
    $region43: #{forward.1} parent=1 // pred_check_branch
      %2953 = sbr.rel (0) target = $region45
    $region44: #{forward.1} parent=1 // pred_region
      _
    $region45: #{forward.1} parent=1 // pred_fallthru
      _
    %2954 = vsyncpa [#allocation3], 1

</llo_original>
